<compile_context>
chip_gen: v6e
topology: v6e:2x2x1
jax: 0.10.0
libtpu: 0.0.40
codegen_flags: <defaults>
</compile_context>

<pallas_src>
import functools

import jax
import jax.numpy as jnp
from jax import lax
from jax.experimental import pallas as pl
from jax.experimental.pallas import tpu as pltpu

_BN_EPS = 1e-5
_LANE = 128


def _round_up(x, m):
    return ((x + m - 1) // m) * m


def _pick_vmem_limit():
    # Generation-dependent scoped VMEM (~3/4 of physical). Conservative fallback.
    try:
        cap = int(pltpu.get_tpu_info().vmem_capacity_bytes)
        if cap <= 0:
            raise ValueError
    except Exception:
        cap = 64 * 1024 * 1024
    return int(min(cap * 3 // 4, 100 * 1024 * 1024))


_VMEM_LIMIT = _pick_vmem_limit()


# ---------------------------------------------------------------------------
# Kernel 1: dilated Conv1d (valid) + ReLU + eval BatchNorm, fused.
# Channel-last (T, C) tiles; conv = K shifted MXU matmuls (bf16 x bf16 -> f32).
# ---------------------------------------------------------------------------
def _conv_relu_bn_kernel(x_ref, w_ref, b_ref, scale_ref, shift_ref, o_ref, *,
                         dilation):
    # x_ref: (T_in, C_in) bf16   w_ref: (K, C_in, C_out) bf16
    # b/scale/shift: (1, C_out) f32   o_ref: (T_out, C_out) bf16
    t_out = o_ref.shape[0]
    k = w_ref.shape[0]
    acc = jnp.zeros(o_ref.shape, jnp.float32)
    for j in range(k):  # static tap loop (k <= 7); slice starts are static ints
        xs = x_ref[pl.ds(j * dilation, t_out), :]
        acc = acc + jnp.dot(xs, w_ref[j], preferred_element_type=jnp.float32)
    y = jnp.maximum(acc + b_ref[...], 0.0)
    y = y * scale_ref[...] + shift_ref[...]
    o_ref[...] = y.astype(o_ref.dtype)


def conv1d_relu_bn(x_btc, layer):
    """x_btc: (B, T_in, C_in) bf16 channel-last. Returns (B, T_out, C_out) bf16."""
    w_kio = layer["w_kio"]
    dilation = layer["dilation"]
    B, T_in, C_in = x_btc.shape
    K, _, C_out = w_kio.shape
    T_out = T_in - (K - 1) * dilation
    kernel = functools.partial(_conv_relu_bn_kernel, dilation=dilation)
    return pl.pallas_call(
        kernel,
        out_shape=jax.ShapeDtypeStruct((B, T_out, C_out), jnp.bfloat16),
        grid=(B,),
        in_specs=[
            pl.BlockSpec((None, T_in, C_in), lambda b: (b, 0, 0)),
            pl.BlockSpec((K, C_in, C_out), lambda b: (0, 0, 0)),   # resident weights
            pl.BlockSpec((1, C_out), lambda b: (0, 0)),
            pl.BlockSpec((1, C_out), lambda b: (0, 0)),
            pl.BlockSpec((1, C_out), lambda b: (0, 0)),
        ],
        out_specs=pl.BlockSpec((None, T_out, C_out), lambda b: (b, 0, 0)),
        compiler_params=pltpu.CompilerParams(
            dimension_semantics=("parallel",),
            vmem_limit_bytes=_VMEM_LIMIT),
    )(x_btc, w_kio, layer["bias"], layer["bn_scale"], layer["bn_shift"])


# ---------------------------------------------------------------------------
# Kernel 2: tdnn4 (1x1) + tdnn5 (1x1) + statistics pooling, fully fused.
# T is tiled; s1/s2 accumulate in VMEM scratch; only (2, C5pad) per batch row
# (row 0 = mean, row 1 = unbiased std) is ever written to HBM.
# ---------------------------------------------------------------------------
def _tdnn45_pool_kernel(x_ref, w4_ref, b4_ref, g4_ref, h4_ref,
                        w5_ref, b5_ref, g5_ref, h5_ref,
                        o_ref, s1_ref, s2_ref, *, t_total):
    t = pl.program_id(1)
    n_t = pl.num_programs(1)
    tile_t = x_ref.shape[0]

    @pl.when(t == 0)
    def _():
        s1_ref[...] = jnp.zeros_like(s1_ref)
        s2_ref[...] = jnp.zeros_like(s2_ref)

    x = x_ref[...]                                             # (tile_t, C4_in) bf16
    y4 = jnp.dot(x, w4_ref[...], preferred_element_type=jnp.float32) + b4_ref[...]
    y4 = jnp.maximum(y4, 0.0) * g4_ref[...] + h4_ref[...]      # f32
    y5 = jnp.dot(y4.astype(jnp.bfloat16), w5_ref[...],
                 preferred_element_type=jnp.float32) + b5_ref[...]
    y5 = jnp.maximum(y5, 0.0) * g5_ref[...] + h5_ref[...]      # f32 (tile_t, C5pad)

    # Mask padded rows of the (possibly partial) last tile; `where` also discards
    # any garbage values read from the padded boundary block.
    row = lax.broadcasted_iota(jnp.int32, (tile_t, 1), 0)
    valid = (t * tile_t + row) < t_total
    y5 = jnp.where(valid, y5, 0.0)

    s1_ref[...] += jnp.sum(y5, axis=0, keepdims=True)
    s2_ref[...] += jnp.sum(y5 * y5, axis=0, keepdims=True)

    @pl.when(t == n_t - 1)
    def _():
        # f32 accumulation + O(1) post-BN magnitudes keep the one-pass formula accurate.
        mean = s1_ref[...] * (1.0 / t_total)
        var = (s2_ref[...] - t_total * mean * mean) * (1.0 / (t_total - 1))
        std = jnp.sqrt(jnp.maximum(var, 0.0))
        o_ref[0:1, :] = mean
        o_ref[1:2, :] = std


def tdnn45_stats_pool(x_btc, layer, *, tile_t=512):
    """x_btc: (B, T, C4_in) bf16. Returns (B, 2*C5pad) f32 == cat(mean, std)."""
    B, T, C_in = x_btc.shape
    w4, w5 = layer["w4"], layer["w5"]
    c4 = w4.shape[1]
    c5 = w5.shape[1]
    tile_t = max(8, min(int(tile_t), _round_up(T, 8)))
    n_t = pl.cdiv(T, tile_t)
    kernel = functools.partial(_tdnn45_pool_kernel, t_total=T)
    out = pl.pallas_call(
        kernel,
        out_shape=jax.ShapeDtypeStruct((B, 2, c5), jnp.float32),
        grid=(B, n_t),
        in_specs=[
            pl.BlockSpec((None, tile_t, C_in), lambda b, t: (b, t, 0)),
            pl.BlockSpec((C_in, c4), lambda b, t: (0, 0)),
            pl.BlockSpec((1, c4), lambda b, t: (0, 0)),
            pl.BlockSpec((1, c4), lambda b, t: (0, 0)),
            pl.BlockSpec((1, c4), lambda b, t: (0, 0)),
            pl.BlockSpec((c4, c5), lambda b, t: (0, 0)),
            pl.BlockSpec((1, c5), lambda b, t: (0, 0)),
            pl.BlockSpec((1, c5), lambda b, t: (0, 0)),
            pl.BlockSpec((1, c5), lambda b, t: (0, 0)),
        ],
        out_specs=pl.BlockSpec((None, 2, c5), lambda b, t: (b, 0, 0)),
        scratch_shapes=[pltpu.VMEM((1, c5), jnp.float32),
                        pltpu.VMEM((1, c5), jnp.float32)],
        compiler_params=pltpu.CompilerParams(
            dimension_semantics=("parallel", "arbitrary"),
            vmem_limit_bytes=_VMEM_LIMIT),
    )(x_btc, w4, layer["b4"], layer["g4"], layer["h4"],
      w5, layer["b5"], layer["g5"], layer["h5"])
    # Row-major reshape -> [mean(0..C5pad) | std(0..C5pad)] per batch row (free plumbing).
    return out.reshape(B, 2 * c5)


# ---------------------------------------------------------------------------
# Kernel 3: fused MLP head: fc6 -> ReLU -> bn6 -> fc7 -> ReLU -> bn7 -> fc8.
# (Dropout layers are identity in eval mode.)
# ---------------------------------------------------------------------------
def _head_kernel(s_ref, w6_ref, b6_ref, g6_ref, h6_ref,
                 w7_ref, b7_ref, g7_ref, h7_ref,
                 w8_ref, b8_ref, o_ref):
    y = jnp.dot(s_ref[...].astype(jnp.bfloat16), w6_ref[...],
                preferred_element_type=jnp.float32) + b6_ref[...]
    y = jnp.maximum(y, 0.0) * g6_ref[...] + h6_ref[...]
    y = jnp.dot(y.astype(jnp.bfloat16), w7_ref[...],
                preferred_element_type=jnp.float32) + b7_ref[...]
    y = jnp.maximum(y, 0.0) * g7_ref[...] + h7_ref[...]
    o_ref[...] = jnp.dot(y.astype(jnp.bfloat16), w8_ref[...],
                         preferred_element_type=jnp.float32) + b8_ref[...]


def mlp_head(stats, kp):
    fc6, fc7, fc8 = kp["fc6"], kp["fc7"], kp["fc8"]
    B = stats.shape[0]
    num_lang = fc8["w"].shape[1]
    return pl.pallas_call(
        _head_kernel,
        out_shape=jax.ShapeDtypeStruct((B, num_lang), jnp.float32),
        compiler_params=pltpu.CompilerParams(vmem_limit_bytes=_VMEM_LIMIT),
    )(stats,
      fc6["w"], fc6["bias"], fc6["bn_scale"], fc6["bn_shift"],
      fc7["w"], fc7["bias"], fc7["bn_scale"], fc7["bn_shift"],
      fc8["w"], fc8["bias"])


# ---------------------------------------------------------------------------
# Parameter handling: PyTorch layout -> kernel layout, BN folded to scale/shift,
# weights bf16, pooled channel dim padded to a multiple of 128.
# ---------------------------------------------------------------------------
def _fold_bn(running_mean, running_var):
    scale = 1.0 / jnp.sqrt(running_var + _BN_EPS)
    shift = -running_mean * scale
    return (scale.reshape(1, -1).astype(jnp.float32),
            shift.reshape(1, -1).astype(jnp.float32))


def prepare_kernel_params(p):
    kp = {}

    # tdnn1: fold the K taps into one matmul (contraction K*C_in); im2col in wrapper.
    w1, b1, rm1, rv1, d1 = p["tdnn1"]                 # w1: (C_out, C_in, K)
    sc1, sh1 = _fold_bn(rm1, rv1)
    k1, c_in1 = w1.shape[2], w1.shape[1]
    w1_mat = jnp.transpose(w1, (2, 1, 0)).reshape(k1 * c_in1, w1.shape[0])
    kp["tdnn1"] = dict(w_kio=w1_mat[None].astype(jnp.bfloat16),   # (1, K*C_in, C_out)
                       bias=b1.reshape(1, -1).astype(jnp.float32),
                       bn_scale=sc1, bn_shift=sh1, dilation=1,
                       fold_k=int(k1), fold_d=int(d1))

    for name in ("tdnn2", "tdnn3"):
        w, b, rm, rv, d = p[name]
        sc, sh = _fold_bn(rm, rv)
        kp[name] = dict(w_kio=jnp.transpose(w, (2, 1, 0)).astype(jnp.bfloat16),
                        bias=b.reshape(1, -1).astype(jnp.float32),
                        bn_scale=sc, bn_shift=sh, dilation=int(d))

    # tdnn4 + tdnn5 (both 1x1) + pooling are fused; pad pooled dim to multiple of 128.
    w4, b4, rm4, rv4, _ = p["tdnn4"]
    g4, h4 = _fold_bn(rm4, rv4)
    w5, b5, rm5, rv5, _ = p["tdnn5"]
    g5, h5 = _fold_bn(rm5, rv5)
    pooled = w5.shape[0]
    c5pad = _round_up(pooled, _LANE)

    def pad_c(a):  # zero-pad last axis to c5pad (padded channels -> exact zeros)
        return jnp.pad(a, [(0, 0)] * (a.ndim - 1) + [(0, c5pad - a.shape[-1])])

    kp["tdnn45"] = dict(
        w4=jnp.transpose(w4[:, :, 0]).astype(jnp.bfloat16),
        b4=b4.reshape(1, -1).astype(jnp.float32), g4=g4, h4=h4,
        w5=pad_c(jnp.transpose(w5[:, :, 0])).astype(jnp.bfloat16),
        b5=pad_c(b5.reshape(1, -1)).astype(jnp.float32),
        g5=pad_c(g5), h5=pad_c(h5))

    # fc6: remap input rows to the padded [mean(0..c5pad) | std(0..c5pad)] layout.
    w6, b6, rm6, rv6 = p["fc6"]                      # w6: (512, 2*pooled)
    g6, h6 = _fold_bn(rm6, rv6)
    w6t = jnp.transpose(w6)                          # (2*pooled, 512)
    w6_mean = jnp.pad(w6t[:pooled], ((0, c5pad - pooled), (0, 0)))
    w6_std = jnp.pad(w6t[pooled:], ((0, c5pad - pooled), (0, 0)))
    kp["fc6"] = dict(w=jnp.concatenate([w6_mean, w6_std], axis=0).astype(jnp.bfloat16),
                     bias=b6.reshape(1, -1).astype(jnp.float32),
                     bn_scale=g6, bn_shift=h6)

    w7, b7, rm7, rv7 = p["fc7"]
    g7, h7 = _fold_bn(rm7, rv7)
    kp["fc7"] = dict(w=jnp.transpose(w7).astype(jnp.bfloat16),
                     bias=b7.reshape(1, -1).astype(jnp.float32),
                     bn_scale=g7, bn_shift=h7)

    w8, b8 = p["fc8"]
    kp["fc8"] = dict(w=jnp.transpose(w8).astype(jnp.bfloat16),
                     bias=b8.reshape(1, -1).astype(jnp.float32))
    return kp


def xvec_tdnn_forward(kp, x_nct, *, pool_tile_t=512):
    """x_nct: (B, feature_dim, T) f32 (PyTorch Conv1d layout). Returns (B, num_lang) f32 logits."""
    # Only the small raw input is transposed / im2col'd; every wide activation stays (B, T, C).
    x = jnp.transpose(x_nct, (0, 2, 1)).astype(jnp.float32)
    l1 = kp["tdnn1"]
    k0, d0 = l1["fold_k"], l1["fold_d"]
    t1 = x.shape[1] - (k0 - 1) * d0
    x = jnp.concatenate([x[:, j * d0:j * d0 + t1, :] for j in range(k0)], axis=-1)
    x = conv1d_relu_bn(x.astype(jnp.bfloat16), l1)           # tdnn1 (+relu+bn1)
    x = conv1d_relu_bn(x, kp["tdnn2"])                       # tdnn2 (+relu+bn2)
    x = conv1d_relu_bn(x, kp["tdnn3"])                       # tdnn3 (+relu+bn3)
    stats = tdnn45_stats_pool(x, kp["tdnn45"], tile_t=pool_tile_t)   # tdnn4+5+pooling
    return mlp_head(stats, kp)                               # fc6..fc8 logits


# ---------------------------------------------------------------------------
# Synthetic "PyTorch-like" parameters + references for verification.
# ---------------------------------------------------------------------------
def init_torch_like_params(key, feature_dim, num_lang, hidden, pooled):
    keys = iter(jax.random.split(key, 32))

    def conv(c_in, c_out, ksize):
        kw, kb = next(keys), next(keys)
        w = jax.random.normal(kw, (c_out, c_in, ksize), jnp.float32) / jnp.sqrt(c_in * ksize)
        b = 0.05 * jax.random.normal(kb, (c_out,), jnp.float32)
        return w, b

    def bn(c):
        km, kv = next(keys), next(keys)
        rm = 0.1 * jax.random.normal(km, (c,), jnp.float32)
        rv = jax.random.uniform(kv, (c,), jnp.float32, minval=0.5, maxval=1.5)
        return rm, rv

    def fc(d_in, d_out):
        kw, kb = next(keys), next(keys)
        w = jax.random.normal(kw, (d_out, d_in), jnp.float32) / jnp.sqrt(d_in)
        b = 0.05 * jax.random.normal(kb, (d_out,), jnp.float32)
        return w, b

    p = {}
    p["tdnn1"] = conv(feature_dim, hidden, 5) + bn(hidden) + (1,)
    p["tdnn2"] = conv(hidden, hidden, 5) + bn(hidden) + (2,)
    p["tdnn3"] = conv(hidden, hidden, 7) + bn(hidden) + (3,)
    p["tdnn4"] = conv(hidden, hidden, 1) + bn(hidden) + (1,)
    p["tdnn5"] = conv(hidden, pooled, 1) + bn(pooled) + (1,)
    p["fc6"] = fc(2 * pooled, hidden) + bn(hidden)
    p["fc7"] = fc(hidden, hidden) + bn(hidden)
    p["fc8"] = fc(hidden, num_lang)
    return p


def _reference_forward(p, x_nct):
    """Pure-JAX f32 reference with the exact PyTorch-module semantics."""
    def conv_relu_bn_ref(x, layer):
        w, b, rm, rv, d = layer
        y = lax.conv_general_dilated(
            x, w, window_strides=(1,), padding="VALID", rhs_dilation=(d,),
            dimension_numbers=("NCH", "OIH", "NCH"))
        y = jnp.maximum(y + b[None, :, None], 0.0)
        return (y - rm[None, :, None]) / jnp.sqrt(rv[None, :, None] + _BN_EPS)

    def fc_relu_bn_ref(x, layer):
        w, b, rm, rv = layer
        y = jnp.maximum(x @ w.T + b, 0.0)
        return (y - rm) / jnp.sqrt(rv + _BN_EPS)

    x = x_nct
    for name in ("tdnn1", "tdnn2", "tdnn3", "tdnn4", "tdnn5"):
        x = conv_relu_bn_ref(x, p[name])
    stats = jnp.concatenate([jnp.mean(x, axis=2), jnp.std(x, axis=2, ddof=1)], axis=1)
    y = fc_relu_bn_ref(stats, p["fc6"])
    y = fc_relu_bn_ref(y, p["fc7"])
    w8, b8 = p["fc8"]
    return y @ w8.T + b8


def _kernel_math_reference(kp, x_nct):
    """Plain-JAX mirror of the exact kernel math (bf16 operands, f32 accumulation) —
    tight-tolerance check of the kernel logic independent of bf16 vs f32 drift."""
    f32 = jnp.float32
    x = jnp.transpose(x_nct, (0, 2, 1)).astype(f32)
    l1 = kp["tdnn1"]
    k0, d0 = l1["fold_k"], l1["fold_d"]
    t1 = x.shape[1] - (k0 - 1) * d0
    x = jnp.concatenate([x[:, j * d0:j * d0 + t1, :] for j in range(k0)],
                        axis=-1).astype(jnp.bfloat16)

    def conv(x, layer):
        w = layer["w_kio"].astype(f32)
        k, d = w.shape[0], layer["dilation"]
        t_out = x.shape[1] - (k - 1) * d
        acc = sum(jnp.einsum("btc,co->bto", x[:, j * d:j * d + t_out, :].astype(f32), w[j])
                  for j in range(k))
        y = jnp.maximum(acc + layer["bias"], 0.0) * layer["bn_scale"] + layer["bn_shift"]
        return y.astype(jnp.bfloat16)

    x = conv(x, l1)
    x = conv(x, kp["tdnn2"])
    x = conv(x, kp["tdnn3"])

    l45 = kp["tdnn45"]
    y4 = jnp.einsum("btc,co->bto", x.astype(f32), l45["w4"].astype(f32)) + l45["b4"]
    y4 = jnp.maximum(y4, 0.0) * l45["g4"] + l45["h4"]
    y5 = jnp.einsum("btc,co->bto", y4.astype(jnp.bfloat16).astype(f32),
                    l45["w5"].astype(f32)) + l45["b5"]
    y5 = jnp.maximum(y5, 0.0) * l45["g5"] + l45["h5"]
    t = y5.shape[1]
    mean = jnp.mean(y5, axis=1)
    var = (jnp.sum(y5 * y5, axis=1) - t * mean * mean) / (t - 1)
    std = jnp.sqrt(jnp.maximum(var, 0.0))
    stats = jnp.concatenate([mean, std], axis=-1)

    def fcbn(x, layer):
        y = x.astype(jnp.bfloat16).astype(f32) @ layer["w"].astype(f32) + layer["bias"]
        return jnp.maximum(y, 0.0) * layer["bn_scale"] + layer["bn_shift"]

    y = fcbn(stats, kp["fc6"])
    y = fcbn(y, kp["fc7"])
    return y.astype(jnp.bfloat16).astype(f32) @ kp["fc8"]["w"].astype(f32) + kp["fc8"]["bias"]


if __name__ == "__main__":
    # Small test shapes (the real module uses hidden=512, pooled=1500; kernels are
    # width-agnostic).  pooled=80 exercises the 128-lane padding path; pool_tile_t=8
    # exercises the T-tiled accumulation + masked tail (T5 = 18 -> 3 tiles, last has 2 rows).
    B, feature_dim, T = 2, 16, 48
    hidden, pooled, num_lang = 64, 80, 8     # total conv context = 30, so T5 = 18

    key = jax.random.PRNGKey(0)
    k_x, k_p = jax.random.split(key)
    x = jax.random.normal(k_x, (B, feature_dim, T), jnp.float32)

    torch_params = init_torch_like_params(k_p, feature_dim, num_lang, hidden, pooled)
    kernel_params = prepare_kernel_params(torch_params)

    fwd = jax.jit(lambda inp: xvec_tdnn_forward(kernel_params, inp, pool_tile_t=8))
    out = jax.block_until_ready(fwd(x))
    assert out.shape == (B, num_lang), out.shape

    # 1) Tight check vs a plain-JAX mirror of the kernel math (same bf16 rounding points).
    ref_exact = _kernel_math_reference(kernel_params, x)
    err_exact = float(jnp.max(jnp.abs(out - ref_exact)))
    assert jnp.allclose(out, ref_exact, atol=5e-3, rtol=5e-3), f"kernel-math mismatch {err_exact}"

    # 2) Loose check vs the f32 PyTorch-module semantics (bf16 MXU operands cause small drift).
    ref_f32 = _reference_forward(torch_params, x)
    err_f32 = float(jnp.max(jnp.abs(out - ref_f32)))
    assert jnp.allclose(out, ref_f32, atol=1e-1, rtol=1e-1), f"module-semantics mismatch {err_f32}"

    print("KERNEL_OK")
</pallas_src>

<mosaic_0001>
module attributes {stable_mosaic.version = 11 : i64} {
  func.func @_conv_relu_bn_kernel(%arg0: i32, %arg1: memref<1x44x80xbf16, #tpu.memory_space<vmem>>, %arg2: memref<1x80x64xbf16, #tpu.memory_space<vmem>>, %arg3: memref<1x64xf32, #tpu.memory_space<vmem>>, %arg4: memref<1x64xf32, #tpu.memory_space<vmem>>, %arg5: memref<1x64xf32, #tpu.memory_space<vmem>>, %arg6: memref<1x44x64xbf16, #tpu.memory_space<vmem>>) attributes {dimension_semantics = [#tpu.dimension_semantics<parallel>], iteration_bounds = array<i64: 2>, scalar_prefetch = 0 : i64, scratch_operands = 0 : i64, tpu.core_type = #tpu.core_type<tc>, window_params = [{transform_indices = @transform_0, window_bounds = array<i64: 1, 44, 80>}, {pipeline_mode = #tpu.pipeline_mode<synchronous>, transform_indices = @transform_1, window_bounds = array<i64: 1, 80, 64>}, {pipeline_mode = #tpu.pipeline_mode<synchronous>, transform_indices = @transform_2, window_bounds = array<i64: 1, 64>}, {pipeline_mode = #tpu.pipeline_mode<synchronous>, transform_indices = @transform_3, window_bounds = array<i64: 1, 64>}, {pipeline_mode = #tpu.pipeline_mode<synchronous>, transform_indices = @transform_4, window_bounds = array<i64: 1, 64>}, {transform_indices = @transform_5, window_bounds = array<i64: 1, 44, 64>}]} {
    %cst = arith.constant 0.000000e+00 : f32
    %0 = vector.broadcast %cst : f32 to vector<44x64xf32>
    %c0 = arith.constant 0 : index
    %c0_0 = arith.constant 0 : index
    %c0_1 = arith.constant 0 : index
    %1 = vector.load %arg1[%c0, %c0_0, %c0_1] : memref<1x44x80xbf16, #tpu.memory_space<vmem>>, vector<1x44x80xbf16>
    %2 = vector.shape_cast %1 : vector<1x44x80xbf16> to vector<44x80xbf16>
    %c0_2 = arith.constant 0 : index
    %c0_3 = arith.constant 0 : index
    %c0_4 = arith.constant 0 : index
    %3 = vector.load %arg2[%c0_2, %c0_3, %c0_4] : memref<1x80x64xbf16, #tpu.memory_space<vmem>>, vector<1x80x64xbf16>
    %4 = vector.shape_cast %3 : vector<1x80x64xbf16> to vector<80x64xbf16>
    %cst_5 = arith.constant dense<0.000000e+00> : vector<44x64xf32>
    %5 = tpu.matmul %2, %4, %cst_5 {dimension_numbers = #tpu.dot_dimension_numbers<[1], [0], [0], [1], [0, 0, 1, 1], [], []>} : vector<44x80xbf16>, vector<80x64xbf16>, vector<44x64xf32> -> vector<44x64xf32>
    %6 = arith.addf %0, %5 : vector<44x64xf32>
    %c0_6 = arith.constant 0 : index
    %c0_7 = arith.constant 0 : index
    %7 = vector.load %arg3[%c0_6, %c0_7] : memref<1x64xf32, #tpu.memory_space<vmem>>, vector<1x64xf32>
    %8 = vector.broadcast %7 : vector<1x64xf32> to vector<44x64xf32>
    %9 = arith.addf %6, %8 : vector<44x64xf32>
    %cst_8 = arith.constant 0.000000e+00 : f32
    %10 = vector.broadcast %cst_8 : f32 to vector<44x64xf32>
    %11 = arith.maximumf %9, %10 : vector<44x64xf32>
    %c0_9 = arith.constant 0 : index
    %c0_10 = arith.constant 0 : index
    %12 = vector.load %arg4[%c0_9, %c0_10] : memref<1x64xf32, #tpu.memory_space<vmem>>, vector<1x64xf32>
    %13 = vector.broadcast %12 : vector<1x64xf32> to vector<44x64xf32>
    %14 = arith.mulf %11, %13 : vector<44x64xf32>
    %c0_11 = arith.constant 0 : index
    %c0_12 = arith.constant 0 : index
    %15 = vector.load %arg5[%c0_11, %c0_12] : memref<1x64xf32, #tpu.memory_space<vmem>>, vector<1x64xf32>
    %16 = vector.broadcast %15 : vector<1x64xf32> to vector<44x64xf32>
    %17 = arith.addf %14, %16 : vector<44x64xf32>
    %18 = arith.truncf %17 : vector<44x64xf32> to vector<44x64xbf16>
    %c0_13 = arith.constant 0 : index
    %c0_14 = arith.constant 0 : index
    %c0_15 = arith.constant 0 : index
    %19 = vector.load %arg6[%c0_13, %c0_14, %c0_15] : memref<1x44x64xbf16, #tpu.memory_space<vmem>>, vector<1x44x64xbf16>
    %20 = vector.shape_cast %19 : vector<1x44x64xbf16> to vector<44x64xbf16>
    %21 = vector.shape_cast %18 : vector<44x64xbf16> to vector<1x44x64xbf16>
    tpu.vector_store %arg6[%c0_13, %c0_14, %c0_15], %21 {strides = array<i32>} : memref<1x44x64xbf16, #tpu.memory_space<vmem>>, vector<1x44x64xbf16>,
    return
  }
  func.func @transform_0(%arg0: i32) -> (i32, i32, i32) {
    %c0_i32 = arith.constant 0 : i32
    %c0_i32_0 = arith.constant 0 : i32
    %c0_i32_1 = arith.constant 0 : i32
    return %arg0, %c0_i32, %c0_i32_0 : i32, i32, i32
  }
  func.func @transform_1(%arg0: i32) -> (i32, i32, i32) {
    %c0_i32 = arith.constant 0 : i32
    %c0_i32_0 = arith.constant 0 : i32
    %c0_i32_1 = arith.constant 0 : i32
    %c0_i32_2 = arith.constant 0 : i32
    return %c0_i32, %c0_i32_0, %c0_i32_1 : i32, i32, i32
  }
  func.func @transform_2(%arg0: i32) -> (i32, i32) {
    %c0_i32 = arith.constant 0 : i32
    %c0_i32_0 = arith.constant 0 : i32
    %c0_i32_1 = arith.constant 0 : i32
    return %c0_i32, %c0_i32_0 : i32, i32
  }
  func.func @transform_3(%arg0: i32) -> (i32, i32) {
    %c0_i32 = arith.constant 0 : i32
    %c0_i32_0 = arith.constant 0 : i32
    %c0_i32_1 = arith.constant 0 : i32
    return %c0_i32, %c0_i32_0 : i32, i32
  }
  func.func @transform_4(%arg0: i32) -> (i32, i32) {
    %c0_i32 = arith.constant 0 : i32
    %c0_i32_0 = arith.constant 0 : i32
    %c0_i32_1 = arith.constant 0 : i32
    return %c0_i32, %c0_i32_0 : i32, i32
  }
  func.func @transform_5(%arg0: i32) -> (i32, i32, i32) {
    %c0_i32 = arith.constant 0 : i32
    %c0_i32_0 = arith.constant 0 : i32
    %c0_i32_1 = arith.constant 0 : i32
    return %arg0, %c0_i32, %c0_i32_0 : i32, i32, i32
  }
}

module attributes {stable_mosaic.version = 11 : i64} {
  func.func @_conv_relu_bn_kernel(%arg0: i32, %arg1: memref<1x44x64xbf16, #tpu.memory_space<vmem>>, %arg2: memref<5x64x64xbf16, #tpu.memory_space<vmem>>, %arg3: memref<1x64xf32, #tpu.memory_space<vmem>>, %arg4: memref<1x64xf32, #tpu.memory_space<vmem>>, %arg5: memref<1x64xf32, #tpu.memory_space<vmem>>, %arg6: memref<1x36x64xbf16, #tpu.memory_space<vmem>>) attributes {dimension_semantics = [#tpu.dimension_semantics<parallel>], iteration_bounds = array<i64: 2>, scalar_prefetch = 0 : i64, scratch_operands = 0 : i64, tpu.core_type = #tpu.core_type<tc>, window_params = [{transform_indices = @transform_0, window_bounds = array<i64: 1, 44, 64>}, {pipeline_mode = #tpu.pipeline_mode<synchronous>, transform_indices = @transform_1, window_bounds = array<i64: 5, 64, 64>}, {pipeline_mode = #tpu.pipeline_mode<synchronous>, transform_indices = @transform_2, window_bounds = array<i64: 1, 64>}, {pipeline_mode = #tpu.pipeline_mode<synchronous>, transform_indices = @transform_3, window_bounds = array<i64: 1, 64>}, {pipeline_mode = #tpu.pipeline_mode<synchronous>, transform_indices = @transform_4, window_bounds = array<i64: 1, 64>}, {transform_indices = @transform_5, window_bounds = array<i64: 1, 36, 64>}]} {
    %cst = arith.constant 0.000000e+00 : f32
    %0 = vector.broadcast %cst : f32 to vector<36x64xf32>
    %c0 = arith.constant 0 : index
    %c0_0 = arith.constant 0 : index
    %c0_1 = arith.constant 0 : index
    %1 = vector.load %arg1[%c0, %c0_0, %c0_1] : memref<1x44x64xbf16, #tpu.memory_space<vmem>>, vector<1x36x64xbf16>
    %2 = vector.shape_cast %1 : vector<1x36x64xbf16> to vector<36x64xbf16>
    %c0_2 = arith.constant 0 : index
    %c0_3 = arith.constant 0 : index
    %c0_4 = arith.constant 0 : index
    %3 = vector.load %arg2[%c0_2, %c0_3, %c0_4] : memref<5x64x64xbf16, #tpu.memory_space<vmem>>, vector<1x64x64xbf16>
    %4 = vector.shape_cast %3 : vector<1x64x64xbf16> to vector<64x64xbf16>
    %cst_5 = arith.constant dense<0.000000e+00> : vector<36x64xf32>
    %5 = tpu.matmul %2, %4, %cst_5 {dimension_numbers = #tpu.dot_dimension_numbers<[1], [0], [0], [1], [0, 0, 1, 1], [], []>} : vector<36x64xbf16>, vector<64x64xbf16>, vector<36x64xf32> -> vector<36x64xf32>
    %6 = arith.addf %0, %5 : vector<36x64xf32>
    %c0_6 = arith.constant 0 : index
    %c2 = arith.constant 2 : index
    %c0_7 = arith.constant 0 : index
    %7 = vector.load %arg1[%c0_6, %c2, %c0_7] : memref<1x44x64xbf16, #tpu.memory_space<vmem>>, vector<1x36x64xbf16>
    %8 = vector.shape_cast %7 : vector<1x36x64xbf16> to vector<36x64xbf16>
    %c1 = arith.constant 1 : index
    %c0_8 = arith.constant 0 : index
    %c0_9 = arith.constant 0 : index
    %9 = vector.load %arg2[%c1, %c0_8, %c0_9] : memref<5x64x64xbf16, #tpu.memory_space<vmem>>, vector<1x64x64xbf16>
    %10 = vector.shape_cast %9 : vector<1x64x64xbf16> to vector<64x64xbf16>
    %cst_10 = arith.constant dense<0.000000e+00> : vector<36x64xf32>
    %11 = tpu.matmul %8, %10, %cst_10 {dimension_numbers = #tpu.dot_dimension_numbers<[1], [0], [0], [1], [0, 0, 1, 1], [], []>} : vector<36x64xbf16>, vector<64x64xbf16>, vector<36x64xf32> -> vector<36x64xf32>
    %12 = arith.addf %6, %11 : vector<36x64xf32>
    %c0_11 = arith.constant 0 : index
    %c4 = arith.constant 4 : index
    %c0_12 = arith.constant 0 : index
    %13 = vector.load %arg1[%c0_11, %c4, %c0_12] : memref<1x44x64xbf16, #tpu.memory_space<vmem>>, vector<1x36x64xbf16>
    %14 = vector.shape_cast %13 : vector<1x36x64xbf16> to vector<36x64xbf16>
    %c2_13 = arith.constant 2 : index
    %c0_14 = arith.constant 0 : index
    %c0_15 = arith.constant 0 : index
    %15 = vector.load %arg2[%c2_13, %c0_14, %c0_15] : memref<5x64x64xbf16, #tpu.memory_space<vmem>>, vector<1x64x64xbf16>
    %16 = vector.shape_cast %15 : vector<1x64x64xbf16> to vector<64x64xbf16>
    %cst_16 = arith.constant dense<0.000000e+00> : vector<36x64xf32>
    %17 = tpu.matmul %14, %16, %cst_16 {dimension_numbers = #tpu.dot_dimension_numbers<[1], [0], [0], [1], [0, 0, 1, 1], [], []>} : vector<36x64xbf16>, vector<64x64xbf16>, vector<36x64xf32> -> vector<36x64xf32>
    %18 = arith.addf %12, %17 : vector<36x64xf32>
    %c0_17 = arith.constant 0 : index
    %c6 = arith.constant 6 : index
    %c0_18 = arith.constant 0 : index
    %19 = vector.load %arg1[%c0_17, %c6, %c0_18] : memref<1x44x64xbf16, #tpu.memory_space<vmem>>, vector<1x36x64xbf16>
    %20 = vector.shape_cast %19 : vector<1x36x64xbf16> to vector<36x64xbf16>
    %c3 = arith.constant 3 : index
    %c0_19 = arith.constant 0 : index
    %c0_20 = arith.constant 0 : index
    %21 = vector.load %arg2[%c3, %c0_19, %c0_20] : memref<5x64x64xbf16, #tpu.memory_space<vmem>>, vector<1x64x64xbf16>
    %22 = vector.shape_cast %21 : vector<1x64x64xbf16> to vector<64x64xbf16>
    %cst_21 = arith.constant dense<0.000000e+00> : vector<36x64xf32>
    %23 = tpu.matmul %20, %22, %cst_21 {dimension_numbers = #tpu.dot_dimension_numbers<[1], [0], [0], [1], [0, 0, 1, 1], [], []>} : vector<36x64xbf16>, vector<64x64xbf16>, vector<36x64xf32> -> vector<36x64xf32>
    %24 = arith.addf %18, %23 : vector<36x64xf32>
    %c0_22 = arith.constant 0 : index
    %c8 = arith.constant 8 : index
    %c0_23 = arith.constant 0 : index
    %25 = vector.load %arg1[%c0_22, %c8, %c0_23] : memref<1x44x64xbf16, #tpu.memory_space<vmem>>, vector<1x36x64xbf16>
    %26 = vector.shape_cast %25 : vector<1x36x64xbf16> to vector<36x64xbf16>
    %c4_24 = arith.constant 4 : index
    %c0_25 = arith.constant 0 : index
    %c0_26 = arith.constant 0 : index
    %27 = vector.load %arg2[%c4_24, %c0_25, %c0_26] : memref<5x64x64xbf16, #tpu.memory_space<vmem>>, vector<1x64x64xbf16>
    %28 = vector.shape_cast %27 : vector<1x64x64xbf16> to vector<64x64xbf16>
    %cst_27 = arith.constant dense<0.000000e+00> : vector<36x64xf32>
    %29 = tpu.matmul %26, %28, %cst_27 {dimension_numbers = #tpu.dot_dimension_numbers<[1], [0], [0], [1], [0, 0, 1, 1], [], []>} : vector<36x64xbf16>, vector<64x64xbf16>, vector<36x64xf32> -> vector<36x64xf32>
    %30 = arith.addf %24, %29 : vector<36x64xf32>
    %c0_28 = arith.constant 0 : index
    %c0_29 = arith.constant 0 : index
    %31 = vector.load %arg3[%c0_28, %c0_29] : memref<1x64xf32, #tpu.memory_space<vmem>>, vector<1x64xf32>
    %32 = vector.broadcast %31 : vector<1x64xf32> to vector<36x64xf32>
    %33 = arith.addf %30, %32 : vector<36x64xf32>
    %cst_30 = arith.constant 0.000000e+00 : f32
    %34 = vector.broadcast %cst_30 : f32 to vector<36x64xf32>
    %35 = arith.maximumf %33, %34 : vector<36x64xf32>
    %c0_31 = arith.constant 0 : index
    %c0_32 = arith.constant 0 : index
    %36 = vector.load %arg4[%c0_31, %c0_32] : memref<1x64xf32, #tpu.memory_space<vmem>>, vector<1x64xf32>
    %37 = vector.broadcast %36 : vector<1x64xf32> to vector<36x64xf32>
    %38 = arith.mulf %35, %37 : vector<36x64xf32>
    %c0_33 = arith.constant 0 : index
    %c0_34 = arith.constant 0 : index
    %39 = vector.load %arg5[%c0_33, %c0_34] : memref<1x64xf32, #tpu.memory_space<vmem>>, vector<1x64xf32>
    %40 = vector.broadcast %39 : vector<1x64xf32> to vector<36x64xf32>
    %41 = arith.addf %38, %40 : vector<36x64xf32>
    %42 = arith.truncf %41 : vector<36x64xf32> to vector<36x64xbf16>
    %c0_35 = arith.constant 0 : index
    %c0_36 = arith.constant 0 : index
    %c0_37 = arith.constant 0 : index
    %43 = vector.load %arg6[%c0_35, %c0_36, %c0_37] : memref<1x36x64xbf16, #tpu.memory_space<vmem>>, vector<1x36x64xbf16>
    %44 = vector.shape_cast %43 : vector<1x36x64xbf16> to vector<36x64xbf16>
    %45 = vector.shape_cast %42 : vector<36x64xbf16> to vector<1x36x64xbf16>
    tpu.vector_store %arg6[%c0_35, %c0_36, %c0_37], %45 {strides = array<i32>} : memref<1x36x64xbf16, #tpu.memory_space<vmem>>, vector<1x36x64xbf16>,
    return
  }
  func.func @transform_0(%arg0: i32) -> (i32, i32, i32) {
    %c0_i32 = arith.constant 0 : i32
    %c0_i32_0 = arith.constant 0 : i32
    %c0_i32_1 = arith.constant 0 : i32
    return %arg0, %c0_i32, %c0_i32_0 : i32, i32, i32
  }
  func.func @transform_1(%arg0: i32) -> (i32, i32, i32) {
    %c0_i32 = arith.constant 0 : i32
    %c0_i32_0 = arith.constant 0 : i32
    %c0_i32_1 = arith.constant 0 : i32
    %c0_i32_2 = arith.constant 0 : i32
    return %c0_i32, %c0_i32_0, %c0_i32_1 : i32, i32, i32
  }
  func.func @transform_2(%arg0: i32) -> (i32, i32) {
    %c0_i32 = arith.constant 0 : i32
    %c0_i32_0 = arith.constant 0 : i32
    %c0_i32_1 = arith.constant 0 : i32
    return %c0_i32, %c0_i32_0 : i32, i32
  }
  func.func @transform_3(%arg0: i32) -> (i32, i32) {
    %c0_i32 = arith.constant 0 : i32
    %c0_i32_0 = arith.constant 0 : i32
    %c0_i32_1 = arith.constant 0 : i32
    return %c0_i32, %c0_i32_0 : i32, i32
  }
  func.func @transform_4(%arg0: i32) -> (i32, i32) {
    %c0_i32 = arith.constant 0 : i32
    %c0_i32_0 = arith.constant 0 : i32
    %c0_i32_1 = arith.constant 0 : i32
    return %c0_i32, %c0_i32_0 : i32, i32
  }
  func.func @transform_5(%arg0: i32) -> (i32, i32, i32) {
    %c0_i32 = arith.constant 0 : i32
    %c0_i32_0 = arith.constant 0 : i32
    %c0_i32_1 = arith.constant 0 : i32
    return %arg0, %c0_i32, %c0_i32_0 : i32, i32, i32
  }
}

module attributes {stable_mosaic.version = 11 : i64} {
  func.func @_conv_relu_bn_kernel(%arg0: i32, %arg1: memref<1x36x64xbf16, #tpu.memory_space<vmem>>, %arg2: memref<7x64x64xbf16, #tpu.memory_space<vmem>>, %arg3: memref<1x64xf32, #tpu.memory_space<vmem>>, %arg4: memref<1x64xf32, #tpu.memory_space<vmem>>, %arg5: memref<1x64xf32, #tpu.memory_space<vmem>>, %arg6: memref<1x18x64xbf16, #tpu.memory_space<vmem>>) attributes {dimension_semantics = [#tpu.dimension_semantics<parallel>], iteration_bounds = array<i64: 2>, scalar_prefetch = 0 : i64, scratch_operands = 0 : i64, tpu.core_type = #tpu.core_type<tc>, window_params = [{transform_indices = @transform_0, window_bounds = array<i64: 1, 36, 64>}, {pipeline_mode = #tpu.pipeline_mode<synchronous>, transform_indices = @transform_1, window_bounds = array<i64: 7, 64, 64>}, {pipeline_mode = #tpu.pipeline_mode<synchronous>, transform_indices = @transform_2, window_bounds = array<i64: 1, 64>}, {pipeline_mode = #tpu.pipeline_mode<synchronous>, transform_indices = @transform_3, window_bounds = array<i64: 1, 64>}, {pipeline_mode = #tpu.pipeline_mode<synchronous>, transform_indices = @transform_4, window_bounds = array<i64: 1, 64>}, {transform_indices = @transform_5, window_bounds = array<i64: 1, 18, 64>}]} {
    %cst = arith.constant 0.000000e+00 : f32
    %0 = vector.broadcast %cst : f32 to vector<18x64xf32>
    %c0 = arith.constant 0 : index
    %c0_0 = arith.constant 0 : index
    %c0_1 = arith.constant 0 : index
    %1 = vector.load %arg1[%c0, %c0_0, %c0_1] : memref<1x36x64xbf16, #tpu.memory_space<vmem>>, vector<1x18x64xbf16>
    %2 = vector.shape_cast %1 : vector<1x18x64xbf16> to vector<18x64xbf16>
    %c0_2 = arith.constant 0 : index
    %c0_3 = arith.constant 0 : index
    %c0_4 = arith.constant 0 : index
    %3 = vector.load %arg2[%c0_2, %c0_3, %c0_4] : memref<7x64x64xbf16, #tpu.memory_space<vmem>>, vector<1x64x64xbf16>
    %4 = vector.shape_cast %3 : vector<1x64x64xbf16> to vector<64x64xbf16>
    %cst_5 = arith.constant dense<0.000000e+00> : vector<18x64xf32>
    %5 = tpu.matmul %2, %4, %cst_5 {dimension_numbers = #tpu.dot_dimension_numbers<[1], [0], [0], [1], [0, 0, 1, 1], [], []>} : vector<18x64xbf16>, vector<64x64xbf16>, vector<18x64xf32> -> vector<18x64xf32>
    %6 = arith.addf %0, %5 : vector<18x64xf32>
    %c0_6 = arith.constant 0 : index
    %c3 = arith.constant 3 : index
    %c0_7 = arith.constant 0 : index
    %7 = vector.load %arg1[%c0_6, %c3, %c0_7] : memref<1x36x64xbf16, #tpu.memory_space<vmem>>, vector<1x18x64xbf16>
    %8 = vector.shape_cast %7 : vector<1x18x64xbf16> to vector<18x64xbf16>
    %c1 = arith.constant 1 : index
    %c0_8 = arith.constant 0 : index
    %c0_9 = arith.constant 0 : index
    %9 = vector.load %arg2[%c1, %c0_8, %c0_9] : memref<7x64x64xbf16, #tpu.memory_space<vmem>>, vector<1x64x64xbf16>
    %10 = vector.shape_cast %9 : vector<1x64x64xbf16> to vector<64x64xbf16>
    %cst_10 = arith.constant dense<0.000000e+00> : vector<18x64xf32>
    %11 = tpu.matmul %8, %10, %cst_10 {dimension_numbers = #tpu.dot_dimension_numbers<[1], [0], [0], [1], [0, 0, 1, 1], [], []>} : vector<18x64xbf16>, vector<64x64xbf16>, vector<18x64xf32> -> vector<18x64xf32>
    %12 = arith.addf %6, %11 : vector<18x64xf32>
    %c0_11 = arith.constant 0 : index
    %c6 = arith.constant 6 : index
    %c0_12 = arith.constant 0 : index
    %13 = vector.load %arg1[%c0_11, %c6, %c0_12] : memref<1x36x64xbf16, #tpu.memory_space<vmem>>, vector<1x18x64xbf16>
    %14 = vector.shape_cast %13 : vector<1x18x64xbf16> to vector<18x64xbf16>
    %c2 = arith.constant 2 : index
    %c0_13 = arith.constant 0 : index
    %c0_14 = arith.constant 0 : index
    %15 = vector.load %arg2[%c2, %c0_13, %c0_14] : memref<7x64x64xbf16, #tpu.memory_space<vmem>>, vector<1x64x64xbf16>
    %16 = vector.shape_cast %15 : vector<1x64x64xbf16> to vector<64x64xbf16>
    %cst_15 = arith.constant dense<0.000000e+00> : vector<18x64xf32>
    %17 = tpu.matmul %14, %16, %cst_15 {dimension_numbers = #tpu.dot_dimension_numbers<[1], [0], [0], [1], [0, 0, 1, 1], [], []>} : vector<18x64xbf16>, vector<64x64xbf16>, vector<18x64xf32> -> vector<18x64xf32>
    %18 = arith.addf %12, %17 : vector<18x64xf32>
    %c0_16 = arith.constant 0 : index
    %c9 = arith.constant 9 : index
    %c0_17 = arith.constant 0 : index
    %19 = vector.load %arg1[%c0_16, %c9, %c0_17] : memref<1x36x64xbf16, #tpu.memory_space<vmem>>, vector<1x18x64xbf16>
    %20 = vector.shape_cast %19 : vector<1x18x64xbf16> to vector<18x64xbf16>
    %c3_18 = arith.constant 3 : index
    %c0_19 = arith.constant 0 : index
    %c0_20 = arith.constant 0 : index
    %21 = vector.load %arg2[%c3_18, %c0_19, %c0_20] : memref<7x64x64xbf16, #tpu.memory_space<vmem>>, vector<1x64x64xbf16>
    %22 = vector.shape_cast %21 : vector<1x64x64xbf16> to vector<64x64xbf16>
    %cst_21 = arith.constant dense<0.000000e+00> : vector<18x64xf32>
    %23 = tpu.matmul %20, %22, %cst_21 {dimension_numbers = #tpu.dot_dimension_numbers<[1], [0], [0], [1], [0, 0, 1, 1], [], []>} : vector<18x64xbf16>, vector<64x64xbf16>, vector<18x64xf32> -> vector<18x64xf32>
    %24 = arith.addf %18, %23 : vector<18x64xf32>
    %c0_22 = arith.constant 0 : index
    %c12 = arith.constant 12 : index
    %c0_23 = arith.constant 0 : index
    %25 = vector.load %arg1[%c0_22, %c12, %c0_23] : memref<1x36x64xbf16, #tpu.memory_space<vmem>>, vector<1x18x64xbf16>
    %26 = vector.shape_cast %25 : vector<1x18x64xbf16> to vector<18x64xbf16>
    %c4 = arith.constant 4 : index
    %c0_24 = arith.constant 0 : index
    %c0_25 = arith.constant 0 : index
    %27 = vector.load %arg2[%c4, %c0_24, %c0_25] : memref<7x64x64xbf16, #tpu.memory_space<vmem>>, vector<1x64x64xbf16>
    %28 = vector.shape_cast %27 : vector<1x64x64xbf16> to vector<64x64xbf16>
    %cst_26 = arith.constant dense<0.000000e+00> : vector<18x64xf32>
    %29 = tpu.matmul %26, %28, %cst_26 {dimension_numbers = #tpu.dot_dimension_numbers<[1], [0], [0], [1], [0, 0, 1, 1], [], []>} : vector<18x64xbf16>, vector<64x64xbf16>, vector<18x64xf32> -> vector<18x64xf32>
    %30 = arith.addf %24, %29 : vector<18x64xf32>
    %c0_27 = arith.constant 0 : index
    %c15 = arith.constant 15 : index
    %c0_28 = arith.constant 0 : index
    %31 = vector.load %arg1[%c0_27, %c15, %c0_28] : memref<1x36x64xbf16, #tpu.memory_space<vmem>>, vector<1x18x64xbf16>
    %32 = vector.shape_cast %31 : vector<1x18x64xbf16> to vector<18x64xbf16>
    %c5 = arith.constant 5 : index
    %c0_29 = arith.constant 0 : index
    %c0_30 = arith.constant 0 : index
    %33 = vector.load %arg2[%c5, %c0_29, %c0_30] : memref<7x64x64xbf16, #tpu.memory_space<vmem>>, vector<1x64x64xbf16>
    %34 = vector.shape_cast %33 : vector<1x64x64xbf16> to vector<64x64xbf16>
    %cst_31 = arith.constant dense<0.000000e+00> : vector<18x64xf32>
    %35 = tpu.matmul %32, %34, %cst_31 {dimension_numbers = #tpu.dot_dimension_numbers<[1], [0], [0], [1], [0, 0, 1, 1], [], []>} : vector<18x64xbf16>, vector<64x64xbf16>, vector<18x64xf32> -> vector<18x64xf32>
    %36 = arith.addf %30, %35 : vector<18x64xf32>
    %c0_32 = arith.constant 0 : index
    %c18 = arith.constant 18 : index
    %c0_33 = arith.constant 0 : index
    %37 = vector.load %arg1[%c0_32, %c18, %c0_33] : memref<1x36x64xbf16, #tpu.memory_space<vmem>>, vector<1x18x64xbf16>
    %38 = vector.shape_cast %37 : vector<1x18x64xbf16> to vector<18x64xbf16>
    %c6_34 = arith.constant 6 : index
    %c0_35 = arith.constant 0 : index
    %c0_36 = arith.constant 0 : index
    %39 = vector.load %arg2[%c6_34, %c0_35, %c0_36] : memref<7x64x64xbf16, #tpu.memory_space<vmem>>, vector<1x64x64xbf16>
    %40 = vector.shape_cast %39 : vector<1x64x64xbf16> to vector<64x64xbf16>
    %cst_37 = arith.constant dense<0.000000e+00> : vector<18x64xf32>
    %41 = tpu.matmul %38, %40, %cst_37 {dimension_numbers = #tpu.dot_dimension_numbers<[1], [0], [0], [1], [0, 0, 1, 1], [], []>} : vector<18x64xbf16>, vector<64x64xbf16>, vector<18x64xf32> -> vector<18x64xf32>
    %42 = arith.addf %36, %41 : vector<18x64xf32>
    %c0_38 = arith.constant 0 : index
    %c0_39 = arith.constant 0 : index
    %43 = vector.load %arg3[%c0_38, %c0_39] : memref<1x64xf32, #tpu.memory_space<vmem>>, vector<1x64xf32>
    %44 = vector.broadcast %43 : vector<1x64xf32> to vector<18x64xf32>
    %45 = arith.addf %42, %44 : vector<18x64xf32>
    %cst_40 = arith.constant 0.000000e+00 : f32
    %46 = vector.broadcast %cst_40 : f32 to vector<18x64xf32>
    %47 = arith.maximumf %45, %46 : vector<18x64xf32>
    %c0_41 = arith.constant 0 : index
    %c0_42 = arith.constant 0 : index
    %48 = vector.load %arg4[%c0_41, %c0_42] : memref<1x64xf32, #tpu.memory_space<vmem>>, vector<1x64xf32>
    %49 = vector.broadcast %48 : vector<1x64xf32> to vector<18x64xf32>
    %50 = arith.mulf %47, %49 : vector<18x64xf32>
    %c0_43 = arith.constant 0 : index
    %c0_44 = arith.constant 0 : index
    %51 = vector.load %arg5[%c0_43, %c0_44] : memref<1x64xf32, #tpu.memory_space<vmem>>, vector<1x64xf32>
    %52 = vector.broadcast %51 : vector<1x64xf32> to vector<18x64xf32>
    %53 = arith.addf %50, %52 : vector<18x64xf32>
    %54 = arith.truncf %53 : vector<18x64xf32> to vector<18x64xbf16>
    %c0_45 = arith.constant 0 : index
    %c0_46 = arith.constant 0 : index
    %c0_47 = arith.constant 0 : index
    %55 = vector.load %arg6[%c0_45, %c0_46, %c0_47] : memref<1x18x64xbf16, #tpu.memory_space<vmem>>, vector<1x18x64xbf16>
    %56 = vector.shape_cast %55 : vector<1x18x64xbf16> to vector<18x64xbf16>
    %57 = vector.shape_cast %54 : vector<18x64xbf16> to vector<1x18x64xbf16>
    tpu.vector_store %arg6[%c0_45, %c0_46, %c0_47], %57 {strides = array<i32>} : memref<1x18x64xbf16, #tpu.memory_space<vmem>>, vector<1x18x64xbf16>,
    return
  }
  func.func @transform_0(%arg0: i32) -> (i32, i32, i32) {
    %c0_i32 = arith.constant 0 : i32
    %c0_i32_0 = arith.constant 0 : i32
    %c0_i32_1 = arith.constant 0 : i32
    return %arg0, %c0_i32, %c0_i32_0 : i32, i32, i32
  }
  func.func @transform_1(%arg0: i32) -> (i32, i32, i32) {
    %c0_i32 = arith.constant 0 : i32
    %c0_i32_0 = arith.constant 0 : i32
    %c0_i32_1 = arith.constant 0 : i32
    %c0_i32_2 = arith.constant 0 : i32
    return %c0_i32, %c0_i32_0, %c0_i32_1 : i32, i32, i32
  }
  func.func @transform_2(%arg0: i32) -> (i32, i32) {
    %c0_i32 = arith.constant 0 : i32
    %c0_i32_0 = arith.constant 0 : i32
    %c0_i32_1 = arith.constant 0 : i32
    return %c0_i32, %c0_i32_0 : i32, i32
  }
  func.func @transform_3(%arg0: i32) -> (i32, i32) {
    %c0_i32 = arith.constant 0 : i32
    %c0_i32_0 = arith.constant 0 : i32
    %c0_i32_1 = arith.constant 0 : i32
    return %c0_i32, %c0_i32_0 : i32, i32
  }
  func.func @transform_4(%arg0: i32) -> (i32, i32) {
    %c0_i32 = arith.constant 0 : i32
    %c0_i32_0 = arith.constant 0 : i32
    %c0_i32_1 = arith.constant 0 : i32
    return %c0_i32, %c0_i32_0 : i32, i32
  }
  func.func @transform_5(%arg0: i32) -> (i32, i32, i32) {
    %c0_i32 = arith.constant 0 : i32
    %c0_i32_0 = arith.constant 0 : i32
    %c0_i32_1 = arith.constant 0 : i32
    return %arg0, %c0_i32, %c0_i32_0 : i32, i32, i32
  }
}

module attributes {stable_mosaic.version = 11 : i64} {
  func.func @_tdnn45_pool_kernel(%arg0: i32, %arg1: i32, %arg2: memref<1x8x64xbf16, #tpu.memory_space<vmem>>, %arg3: memref<64x64xbf16, #tpu.memory_space<vmem>>, %arg4: memref<1x64xf32, #tpu.memory_space<vmem>>, %arg5: memref<1x64xf32, #tpu.memory_space<vmem>>, %arg6: memref<1x64xf32, #tpu.memory_space<vmem>>, %arg7: memref<64x128xbf16, #tpu.memory_space<vmem>>, %arg8: memref<1x128xf32, #tpu.memory_space<vmem>>, %arg9: memref<1x128xf32, #tpu.memory_space<vmem>>, %arg10: memref<1x128xf32, #tpu.memory_space<vmem>>, %arg11: memref<1x2x128xf32, #tpu.memory_space<vmem>>, %arg12: memref<1x128xf32, #tpu.memory_space<vmem>>, %arg13: memref<1x128xf32, #tpu.memory_space<vmem>>) attributes {dimension_semantics = [#tpu.dimension_semantics<parallel>, #tpu.dimension_semantics<arbitrary>], iteration_bounds = array<i64: 2, 3>, scalar_prefetch = 0 : i64, scratch_operands = 2 : i64, tpu.core_type = #tpu.core_type<tc>, window_params = [{transform_indices = @transform_0, window_bounds = array<i64: 1, 8, 64>}, {pipeline_mode = #tpu.pipeline_mode<synchronous>, transform_indices = @transform_1, window_bounds = array<i64: 64, 64>}, {pipeline_mode = #tpu.pipeline_mode<synchronous>, transform_indices = @transform_2, window_bounds = array<i64: 1, 64>}, {pipeline_mode = #tpu.pipeline_mode<synchronous>, transform_indices = @transform_3, window_bounds = array<i64: 1, 64>}, {pipeline_mode = #tpu.pipeline_mode<synchronous>, transform_indices = @transform_4, window_bounds = array<i64: 1, 64>}, {pipeline_mode = #tpu.pipeline_mode<synchronous>, transform_indices = @transform_5, window_bounds = array<i64: 64, 128>}, {pipeline_mode = #tpu.pipeline_mode<synchronous>, transform_indices = @transform_6, window_bounds = array<i64: 1, 128>}, {pipeline_mode = #tpu.pipeline_mode<synchronous>, transform_indices = @transform_7, window_bounds = array<i64: 1, 128>}, {pipeline_mode = #tpu.pipeline_mode<synchronous>, transform_indices = @transform_8, window_bounds = array<i64: 1, 128>}, {transform_indices = @transform_9, window_bounds = array<i64: 1, 2, 128>}]} {
    %c0_i32 = arith.constant 0 : i32
    %0 = arith.cmpi eq, %arg1, %c0_i32 : i32
    %1 = arith.extui %0 : i1 to i32
    %c0_i32_0 = arith.constant 0 : i32
    %2 = arith.cmpi ne, %1, %c0_i32_0 : i32
    scf.if %2 {
      %cst_34 = arith.constant 0.000000e+00 : f32
      %56 = vector.broadcast %cst_34 : f32 to vector<1x128xf32>
      %c0_35 = arith.constant 0 : index
      %c0_36 = arith.constant 0 : index
      %57 = vector.load %arg12[%c0_35, %c0_36] : memref<1x128xf32, #tpu.memory_space<vmem>>, vector<1x128xf32>
      tpu.vector_store %arg12[%c0_35, %c0_36], %56 {strides = array<i32>} : memref<1x128xf32, #tpu.memory_space<vmem>>, vector<1x128xf32>,
      %cst_37 = arith.constant 0.000000e+00 : f32
      %58 = vector.broadcast %cst_37 : f32 to vector<1x128xf32>
      %c0_38 = arith.constant 0 : index
      %c0_39 = arith.constant 0 : index
      %59 = vector.load %arg13[%c0_38, %c0_39] : memref<1x128xf32, #tpu.memory_space<vmem>>, vector<1x128xf32>
      tpu.vector_store %arg13[%c0_38, %c0_39], %58 {strides = array<i32>} : memref<1x128xf32, #tpu.memory_space<vmem>>, vector<1x128xf32>,
    } else {
    }
    %c0 = arith.constant 0 : index
    %c0_1 = arith.constant 0 : index
    %c0_2 = arith.constant 0 : index
    %3 = vector.load %arg2[%c0, %c0_1, %c0_2] : memref<1x8x64xbf16, #tpu.memory_space<vmem>>, vector<1x8x64xbf16>
    %4 = vector.shape_cast %3 : vector<1x8x64xbf16> to vector<8x64xbf16>
    %c0_3 = arith.constant 0 : index
    %c0_4 = arith.constant 0 : index
    %5 = vector.load %arg3[%c0_3, %c0_4] : memref<64x64xbf16, #tpu.memory_space<vmem>>, vector<64x64xbf16>
    %cst = arith.constant dense<0.000000e+00> : vector<8x64xf32>
    %6 = tpu.matmul %4, %5, %cst {dimension_numbers = #tpu.dot_dimension_numbers<[1], [0], [0], [1], [0, 0, 1, 1], [], []>} : vector<8x64xbf16>, vector<64x64xbf16>, vector<8x64xf32> -> vector<8x64xf32>
    %c0_5 = arith.constant 0 : index
    %c0_6 = arith.constant 0 : index
    %7 = vector.load %arg4[%c0_5, %c0_6] : memref<1x64xf32, #tpu.memory_space<vmem>>, vector<1x64xf32>
    %8 = vector.broadcast %7 : vector<1x64xf32> to vector<8x64xf32>
    %9 = arith.addf %6, %8 : vector<8x64xf32>
    %cst_7 = arith.constant 0.000000e+00 : f32
    %10 = vector.broadcast %cst_7 : f32 to vector<8x64xf32>
    %11 = arith.maximumf %9, %10 : vector<8x64xf32>
    %c0_8 = arith.constant 0 : index
    %c0_9 = arith.constant 0 : index
    %12 = vector.load %arg5[%c0_8, %c0_9] : memref<1x64xf32, #tpu.memory_space<vmem>>, vector<1x64xf32>
    %13 = vector.broadcast %12 : vector<1x64xf32> to vector<8x64xf32>
    %14 = arith.mulf %11, %13 : vector<8x64xf32>
    %c0_10 = arith.constant 0 : index
    %c0_11 = arith.constant 0 : index
    %15 = vector.load %arg6[%c0_10, %c0_11] : memref<1x64xf32, #tpu.memory_space<vmem>>, vector<1x64xf32>
    %16 = vector.broadcast %15 : vector<1x64xf32> to vector<8x64xf32>
    %17 = arith.addf %14, %16 : vector<8x64xf32>
    %18 = arith.truncf %17 : vector<8x64xf32> to vector<8x64xbf16>
    %c0_12 = arith.constant 0 : index
    %c0_13 = arith.constant 0 : index
    %19 = vector.load %arg7[%c0_12, %c0_13] : memref<64x128xbf16, #tpu.memory_space<vmem>>, vector<64x128xbf16>
    %cst_14 = arith.constant dense<0.000000e+00> : vector<8x128xf32>
    %20 = tpu.matmul %18, %19, %cst_14 {dimension_numbers = #tpu.dot_dimension_numbers<[1], [0], [0], [1], [0, 0, 1, 1], [], []>} : vector<8x64xbf16>, vector<64x128xbf16>, vector<8x128xf32> -> vector<8x128xf32>
    %c0_15 = arith.constant 0 : index
    %c0_16 = arith.constant 0 : index
    %21 = vector.load %arg8[%c0_15, %c0_16] : memref<1x128xf32, #tpu.memory_space<vmem>>, vector<1x128xf32>
    %22 = vector.broadcast %21 : vector<1x128xf32> to vector<8x128xf32>
    %23 = arith.addf %20, %22 : vector<8x128xf32>
    %cst_17 = arith.constant 0.000000e+00 : f32
    %24 = vector.broadcast %cst_17 : f32 to vector<8x128xf32>
    %25 = arith.maximumf %23, %24 : vector<8x128xf32>
    %c0_18 = arith.constant 0 : index
    %c0_19 = arith.constant 0 : index
    %26 = vector.load %arg9[%c0_18, %c0_19] : memref<1x128xf32, #tpu.memory_space<vmem>>, vector<1x128xf32>
    %27 = vector.broadcast %26 : vector<1x128xf32> to vector<8x128xf32>
    %28 = arith.mulf %25, %27 : vector<8x128xf32>
    %c0_20 = arith.constant 0 : index
    %c0_21 = arith.constant 0 : index
    %29 = vector.load %arg10[%c0_20, %c0_21] : memref<1x128xf32, #tpu.memory_space<vmem>>, vector<1x128xf32>
    %30 = vector.broadcast %29 : vector<1x128xf32> to vector<8x128xf32>
    %31 = arith.addf %28, %30 : vector<8x128xf32>
    %32 = tpu.iota {dimensions = array<i32: 0>} : vector<8x1xi32>
    %c8_i32 = arith.constant 8 : i32
    %33 = arith.muli %arg1, %c8_i32 : i32
    %34 = vector.broadcast %33 : i32 to vector<8x1xi32>
    %35 = arith.addi %34, %32 : vector<8x1xi32>
    %c18_i32 = arith.constant 18 : i32
    %36 = vector.broadcast %c18_i32 : i32 to vector<8x1xi32>
    %37 = arith.cmpi slt, %35, %36 : vector<8x1xi32>
    %cst_22 = arith.constant 0.000000e+00 : f32
    %38 = vector.shape_cast %37 : vector<8x1xi1> to vector<8x1xi1>
    %39 = vector.broadcast %38 : vector<8x1xi1> to vector<8x128xi1>
    %40 = vector.broadcast %cst_22 : f32 to vector<8x128xf32>
    %41 = arith.select %39, %31, %40 : vector<8x128xi1>, vector<8x128xf32>
    %c0_23 = arith.constant 0 : index
    %c0_24 = arith.constant 0 : index
    %42 = vector.load %arg12[%c0_23, %c0_24] : memref<1x128xf32, #tpu.memory_space<vmem>>, vector<1x128xf32>
    %cst_25 = arith.constant dense<0.000000e+00> : vector<128xf32>
    %43 = vector.multi_reduction <add>, %41, %cst_25 [0] : vector<8x128xf32> to vector<128xf32>
    %44 = vector.shape_cast %43 : vector<128xf32> to vector<1x128xf32>
    %45 = arith.addf %42, %44 : vector<1x128xf32>
    %c0_26 = arith.constant 0 : index
    %c0_27 = arith.constant 0 : index
    %46 = vector.load %arg12[%c0_26, %c0_27] : memref<1x128xf32, #tpu.memory_space<vmem>>, vector<1x128xf32>
    tpu.vector_store %arg12[%c0_26, %c0_27], %45 {strides = array<i32>} : memref<1x128xf32, #tpu.memory_space<vmem>>, vector<1x128xf32>,
    %c0_28 = arith.constant 0 : index
    %c0_29 = arith.constant 0 : index
    %47 = vector.load %arg13[%c0_28, %c0_29] : memref<1x128xf32, #tpu.memory_space<vmem>>, vector<1x128xf32>
    %48 = arith.mulf %41, %41 : vector<8x128xf32>
    %cst_30 = arith.constant dense<0.000000e+00> : vector<128xf32>
    %49 = vector.multi_reduction <add>, %48, %cst_30 [0] : vector<8x128xf32> to vector<128xf32>
    %50 = vector.shape_cast %49 : vector<128xf32> to vector<1x128xf32>
    %51 = arith.addf %47, %50 : vector<1x128xf32>
    %c0_31 = arith.constant 0 : index
    %c0_32 = arith.constant 0 : index
    %52 = vector.load %arg13[%c0_31, %c0_32] : memref<1x128xf32, #tpu.memory_space<vmem>>, vector<1x128xf32>
    tpu.vector_store %arg13[%c0_31, %c0_32], %51 {strides = array<i32>} : memref<1x128xf32, #tpu.memory_space<vmem>>, vector<1x128xf32>,
    %c2_i32 = arith.constant 2 : i32
    %53 = arith.cmpi eq, %arg1, %c2_i32 : i32
    %54 = arith.extui %53 : i1 to i32
    %c0_i32_33 = arith.constant 0 : i32
    %55 = arith.cmpi ne, %54, %c0_i32_33 : i32
    scf.if %55 {
      %c0_34 = arith.constant 0 : index
      %c0_35 = arith.constant 0 : index
      %56 = vector.load %arg12[%c0_34, %c0_35] : memref<1x128xf32, #tpu.memory_space<vmem>>, vector<1x128xf32>
      %cst_36 = arith.constant 0.055555556 : f32
      %57 = vector.broadcast %cst_36 : f32 to vector<1x128xf32>
      %58 = arith.mulf %56, %57 : vector<1x128xf32>
      %c0_37 = arith.constant 0 : index
      %c0_38 = arith.constant 0 : index
      %59 = vector.load %arg13[%c0_37, %c0_38] : memref<1x128xf32, #tpu.memory_space<vmem>>, vector<1x128xf32>
      %cst_39 = arith.constant 1.800000e+01 : f32
      %60 = vector.broadcast %cst_39 : f32 to vector<1x128xf32>
      %61 = arith.mulf %60, %58 : vector<1x128xf32>
      %62 = arith.mulf %61, %58 : vector<1x128xf32>
      %63 = arith.subf %59, %62 : vector<1x128xf32>
      %cst_40 = arith.constant 0.0588235296 : f32
      %64 = vector.broadcast %cst_40 : f32 to vector<1x128xf32>
      %65 = arith.mulf %63, %64 : vector<1x128xf32>
      %cst_41 = arith.constant 0.000000e+00 : f32
      %66 = vector.broadcast %cst_41 : f32 to vector<1x128xf32>
      %67 = arith.maximumf %65, %66 : vector<1x128xf32>
      %68 = math.sqrt %67 : vector<1x128xf32>
      %c0_42 = arith.constant 0 : index
      %c0_43 = arith.constant 0 : index
      %c0_44 = arith.constant 0 : index
      %69 = vector.load %arg11[%c0_42, %c0_43, %c0_44] : memref<1x2x128xf32, #tpu.memory_space<vmem>>, vector<1x1x128xf32>
      %70 = vector.shape_cast %69 : vector<1x1x128xf32> to vector<1x128xf32>
      %71 = vector.shape_cast %58 : vector<1x128xf32> to vector<1x1x128xf32>
      tpu.vector_store %arg11[%c0_42, %c0_43, %c0_44], %71 {strides = array<i32>} : memref<1x2x128xf32, #tpu.memory_space<vmem>>, vector<1x1x128xf32>,
      %c0_45 = arith.constant 0 : index
      %c1 = arith.constant 1 : index
      %c0_46 = arith.constant 0 : index
      %72 = vector.load %arg11[%c0_45, %c1, %c0_46] : memref<1x2x128xf32, #tpu.memory_space<vmem>>, vector<1x1x128xf32>
      %73 = vector.shape_cast %72 : vector<1x1x128xf32> to vector<1x128xf32>
      %74 = vector.shape_cast %68 : vector<1x128xf32> to vector<1x1x128xf32>
      tpu.vector_store %arg11[%c0_45, %c1, %c0_46], %74 {strides = array<i32>} : memref<1x2x128xf32, #tpu.memory_space<vmem>>, vector<1x1x128xf32>,
    } else {
    }
    return
  }
  func.func @transform_0(%arg0: i32, %arg1: i32) -> (i32, i32, i32) {
    %c0_i32 = arith.constant 0 : i32
    %c0_i32_0 = arith.constant 0 : i32
    return %arg0, %arg1, %c0_i32 : i32, i32, i32
  }
  func.func @transform_1(%arg0: i32, %arg1: i32) -> (i32, i32) {
    %c0_i32 = arith.constant 0 : i32
    %c0_i32_0 = arith.constant 0 : i32
    %c0_i32_1 = arith.constant 0 : i32
    return %c0_i32, %c0_i32_0 : i32, i32
  }
  func.func @transform_2(%arg0: i32, %arg1: i32) -> (i32, i32) {
    %c0_i32 = arith.constant 0 : i32
    %c0_i32_0 = arith.constant 0 : i32
    %c0_i32_1 = arith.constant 0 : i32
    return %c0_i32, %c0_i32_0 : i32, i32
  }
  func.func @transform_3(%arg0: i32, %arg1: i32) -> (i32, i32) {
    %c0_i32 = arith.constant 0 : i32
    %c0_i32_0 = arith.constant 0 : i32
    %c0_i32_1 = arith.constant 0 : i32
    return %c0_i32, %c0_i32_0 : i32, i32
  }
  func.func @transform_4(%arg0: i32, %arg1: i32) -> (i32, i32) {
    %c0_i32 = arith.constant 0 : i32
    %c0_i32_0 = arith.constant 0 : i32
    %c0_i32_1 = arith.constant 0 : i32
    return %c0_i32, %c0_i32_0 : i32, i32
  }
  func.func @transform_5(%arg0: i32, %arg1: i32) -> (i32, i32) {
    %c0_i32 = arith.constant 0 : i32
    %c0_i32_0 = arith.constant 0 : i32
    %c0_i32_1 = arith.constant 0 : i32
    return %c0_i32, %c0_i32_0 : i32, i32
  }
  func.func @transform_6(%arg0: i32, %arg1: i32) -> (i32, i32) {
    %c0_i32 = arith.constant 0 : i32
    %c0_i32_0 = arith.constant 0 : i32
    %c0_i32_1 = arith.constant 0 : i32
    return %c0_i32, %c0_i32_0 : i32, i32
  }
  func.func @transform_7(%arg0: i32, %arg1: i32) -> (i32, i32) {
    %c0_i32 = arith.constant 0 : i32
    %c0_i32_0 = arith.constant 0 : i32
    %c0_i32_1 = arith.constant 0 : i32
    return %c0_i32, %c0_i32_0 : i32, i32
  }
  func.func @transform_8(%arg0: i32, %arg1: i32) -> (i32, i32) {
    %c0_i32 = arith.constant 0 : i32
    %c0_i32_0 = arith.constant 0 : i32
    %c0_i32_1 = arith.constant 0 : i32
    return %c0_i32, %c0_i32_0 : i32, i32
  }
  func.func @transform_9(%arg0: i32, %arg1: i32) -> (i32, i32, i32) {
    %c0_i32 = arith.constant 0 : i32
    %c0_i32_0 = arith.constant 0 : i32
    %c0_i32_1 = arith.constant 0 : i32
    return %arg0, %c0_i32, %c0_i32_0 : i32, i32, i32
  }
}

module attributes {stable_mosaic.version = 11 : i64} {
  func.func @_head_kernel(%arg0: memref<2x256xf32, #tpu.memory_space<vmem>>, %arg1: memref<256x64xbf16, #tpu.memory_space<vmem>>, %arg2: memref<1x64xf32, #tpu.memory_space<vmem>>, %arg3: memref<1x64xf32, #tpu.memory_space<vmem>>, %arg4: memref<1x64xf32, #tpu.memory_space<vmem>>, %arg5: memref<64x64xbf16, #tpu.memory_space<vmem>>, %arg6: memref<1x64xf32, #tpu.memory_space<vmem>>, %arg7: memref<1x64xf32, #tpu.memory_space<vmem>>, %arg8: memref<1x64xf32, #tpu.memory_space<vmem>>, %arg9: memref<64x8xbf16, #tpu.memory_space<vmem>>, %arg10: memref<1x8xf32, #tpu.memory_space<vmem>>, %arg11: memref<2x8xf32, #tpu.memory_space<vmem>>) attributes {dimension_semantics = [], scalar_prefetch = 0 : i64, scratch_operands = 0 : i64, tpu.core_type = #tpu.core_type<tc>} {
    %c0 = arith.constant 0 : index
    %c0_0 = arith.constant 0 : index
    %0 = vector.load %arg0[%c0, %c0_0] : memref<2x256xf32, #tpu.memory_space<vmem>>, vector<2x256xf32>
    %1 = arith.truncf %0 : vector<2x256xf32> to vector<2x256xbf16>
    %c0_1 = arith.constant 0 : index
    %c0_2 = arith.constant 0 : index
    %2 = vector.load %arg1[%c0_1, %c0_2] : memref<256x64xbf16, #tpu.memory_space<vmem>>, vector<256x64xbf16>
    %cst = arith.constant dense<0.000000e+00> : vector<2x64xf32>
    %3 = tpu.matmul %1, %2, %cst {dimension_numbers = #tpu.dot_dimension_numbers<[1], [0], [0], [1], [0, 0, 1, 1], [], []>} : vector<2x256xbf16>, vector<256x64xbf16>, vector<2x64xf32> -> vector<2x64xf32>
    %c0_3 = arith.constant 0 : index
    %c0_4 = arith.constant 0 : index
    %4 = vector.load %arg2[%c0_3, %c0_4] : memref<1x64xf32, #tpu.memory_space<vmem>>, vector<1x64xf32>
    %5 = vector.broadcast %4 : vector<1x64xf32> to vector<2x64xf32>
    %6 = arith.addf %3, %5 : vector<2x64xf32>
    %cst_5 = arith.constant 0.000000e+00 : f32
    %7 = vector.broadcast %cst_5 : f32 to vector<2x64xf32>
    %8 = arith.maximumf %6, %7 : vector<2x64xf32>
    %c0_6 = arith.constant 0 : index
    %c0_7 = arith.constant 0 : index
    %9 = vector.load %arg3[%c0_6, %c0_7] : memref<1x64xf32, #tpu.memory_space<vmem>>, vector<1x64xf32>
    %10 = vector.broadcast %9 : vector<1x64xf32> to vector<2x64xf32>
    %11 = arith.mulf %8, %10 : vector<2x64xf32>
    %c0_8 = arith.constant 0 : index
    %c0_9 = arith.constant 0 : index
    %12 = vector.load %arg4[%c0_8, %c0_9] : memref<1x64xf32, #tpu.memory_space<vmem>>, vector<1x64xf32>
    %13 = vector.broadcast %12 : vector<1x64xf32> to vector<2x64xf32>
    %14 = arith.addf %11, %13 : vector<2x64xf32>
    %15 = arith.truncf %14 : vector<2x64xf32> to vector<2x64xbf16>
    %c0_10 = arith.constant 0 : index
    %c0_11 = arith.constant 0 : index
    %16 = vector.load %arg5[%c0_10, %c0_11] : memref<64x64xbf16, #tpu.memory_space<vmem>>, vector<64x64xbf16>
    %cst_12 = arith.constant dense<0.000000e+00> : vector<2x64xf32>
    %17 = tpu.matmul %15, %16, %cst_12 {dimension_numbers = #tpu.dot_dimension_numbers<[1], [0], [0], [1], [0, 0, 1, 1], [], []>} : vector<2x64xbf16>, vector<64x64xbf16>, vector<2x64xf32> -> vector<2x64xf32>
    %c0_13 = arith.constant 0 : index
    %c0_14 = arith.constant 0 : index
    %18 = vector.load %arg6[%c0_13, %c0_14] : memref<1x64xf32, #tpu.memory_space<vmem>>, vector<1x64xf32>
    %19 = vector.broadcast %18 : vector<1x64xf32> to vector<2x64xf32>
    %20 = arith.addf %17, %19 : vector<2x64xf32>
    %cst_15 = arith.constant 0.000000e+00 : f32
    %21 = vector.broadcast %cst_15 : f32 to vector<2x64xf32>
    %22 = arith.maximumf %20, %21 : vector<2x64xf32>
    %c0_16 = arith.constant 0 : index
    %c0_17 = arith.constant 0 : index
    %23 = vector.load %arg7[%c0_16, %c0_17] : memref<1x64xf32, #tpu.memory_space<vmem>>, vector<1x64xf32>
    %24 = vector.broadcast %23 : vector<1x64xf32> to vector<2x64xf32>
    %25 = arith.mulf %22, %24 : vector<2x64xf32>
    %c0_18 = arith.constant 0 : index
    %c0_19 = arith.constant 0 : index
    %26 = vector.load %arg8[%c0_18, %c0_19] : memref<1x64xf32, #tpu.memory_space<vmem>>, vector<1x64xf32>
    %27 = vector.broadcast %26 : vector<1x64xf32> to vector<2x64xf32>
    %28 = arith.addf %25, %27 : vector<2x64xf32>
    %29 = arith.truncf %28 : vector<2x64xf32> to vector<2x64xbf16>
    %c0_20 = arith.constant 0 : index
    %c0_21 = arith.constant 0 : index
    %30 = vector.load %arg9[%c0_20, %c0_21] : memref<64x8xbf16, #tpu.memory_space<vmem>>, vector<64x8xbf16>
    %cst_22 = arith.constant dense<0.000000e+00> : vector<2x8xf32>
    %31 = tpu.matmul %29, %30, %cst_22 {dimension_numbers = #tpu.dot_dimension_numbers<[1], [0], [0], [1], [0, 0, 1, 1], [], []>} : vector<2x64xbf16>, vector<64x8xbf16>, vector<2x8xf32> -> vector<2x8xf32>
    %c0_23 = arith.constant 0 : index
    %c0_24 = arith.constant 0 : index
    %32 = vector.load %arg10[%c0_23, %c0_24] : memref<1x8xf32, #tpu.memory_space<vmem>>, vector<1x8xf32>
    %33 = vector.broadcast %32 : vector<1x8xf32> to vector<2x8xf32>
    %34 = arith.addf %31, %33 : vector<2x8xf32>
    %c0_25 = arith.constant 0 : index
    %c0_26 = arith.constant 0 : index
    %35 = vector.load %arg11[%c0_25, %c0_26] : memref<2x8xf32, #tpu.memory_space<vmem>>, vector<2x8xf32>
    tpu.vector_store %arg11[%c0_25, %c0_26], %34 {strides = array<i32>} : memref<2x8xf32, #tpu.memory_space<vmem>>, vector<2x8xf32>,
    return
  }
}

</mosaic_0001>

<llo_original>
// kernel: _lambda_.5
$region0: #{_lambda_.5}
  #allocation0 [shape = 'u32[]', space=smem, size = 0x4, offset = 0x4, fixed_abs, tag = 'smem constant byte address 0x4 - core index']
  #allocation1 [shape = 'u32[144,128]{1,0:T(1,128)}', space=vmem, size = 0x12000, scoped, tag = 'internal scratch']
  %s0 = inlined_call_operand.vmem [shape: bf16[2,44,80], index: 0, kind: input, shape index: {}]
  %s1 = inlined_call_operand.vmem [shape: bf16[1,80,64], index: 1, kind: input, shape index: {}]
  %s2 = inlined_call_operand.vmem [shape: f32[1,64], index: 2, kind: input, shape index: {}]
  %s3 = inlined_call_operand.vmem [shape: f32[1,64], index: 3, kind: input, shape index: {}]
  %s4 = inlined_call_operand.vmem [shape: f32[1,64], index: 4, kind: input, shape index: {}]
  %s5 = inlined_call_operand.vmem [shape: bf16[2,44,64], index: 5, kind: output, shape index: {}]
  %s6 = sld [smem:[#allocation0]]
  $region53: #{_lambda_.5} parent=0
    _
  %s8 = ssub.s32 1, %s6
  %s9 = scalar_select 0, %s8, %s6
  loop: start=0, step=1, limit=4
  $region2: #{_lambda_.5} parent=0 // loop_pre_header
    _
  $region3: #{_lambda_.5} parent=0 // loop_header
    %s11 = sphi 0, %s15
    %p12 = scmp.ge.s32.totalorder %s11, 4
    %s21 = sphi 0, %s23
    %s24 = sphi 0, %s21
    %s25 = sphi 0, %s24
    %s41 = sphi 0, %s25
    %s45 = sphi 0, %s45
    %s47 = sphi 0, %s45
    %s48 = sphi 0, %s47
    %s62 = sphi 0, %s48
    %s66 = sphi 0, %s66
    %s68 = sphi 0, %s66
    %s69 = sphi 0, %s68
    %s83 = sphi 0, %s69
    %s87 = sphi 0, %s87
    %s89 = sphi 0, %s87
    %s90 = sphi 0, %s89
    %s104 = sphi 0, %s90
    %s108 = sphi 0, %s108
    %s110 = sphi 0, %s108
    %s111 = sphi 0, %s110
    %s125 = sphi 0, %s111
    %s131 = sphi 0, %s133
    %s134 = sphi 0, %s131
    %s135 = sphi 0, %s134
    %s151 = sphi 0, %s135
  $region4: #{_lambda_.5} parent=0 // loop_header_branch
    %14 = sbr.rel (%p12) target = $region8
  $region5: #{_lambda_.5} parent=0 // loop_body
    %s16 = ssub.s32 %s11, 1
    %s17 = ssub.s32 %s11, 2
    %s18 = sadd.s32 %s11, 1
    %s19 = ssub.s32 %s11, %s18
    %p20 = scmp.eq.s32.totalorder %s19, 0
    %s22 = sadd.s32 %s21, 1
    %s23 = scalar_select %p20, %s21, %s22
    %p26 = pneg %p20
    %p27 = scmp.eq.s32.totalorder %s11, 1
    %p28 = por %p26, %p27
    %p29 = scmp.ne.s32.totalorder %s21, %s24
    %p30 = scmp.eq.s32.totalorder %s11, 0
    %p31 = por %p29, %p30
    %p32 = scmp.ne.s32.totalorder %s21, %s24
    %p33 = scmp.eq.s32.totalorder %s16, 1
    %p34 = por %p32, %p33
    %p35 = scmp.ne.s32.totalorder %s24, %s25
    %p36 = scmp.eq.s32.totalorder %s16, 0
    %p37 = por %p35, %p36
    %p38 = scmp.ne.s32.totalorder %s24, %s25
    %p39 = scmp.eq.s32.totalorder %s17, 1
    %p40 = por %p38, %p39
    %p42 = scmp.ne.s32.totalorder %s25, %s41
    %p43 = scmp.eq.s32.totalorder %s17, 0
    %p44 = por %p42, %p43
    %s46 = sadd.s32 %s45, 1
    %p49 = scmp.eq.s32.totalorder %s11, 1
    %p50 = scmp.ne.s32.totalorder %s45, %s47
    %p51 = scmp.eq.s32.totalorder %s11, 0
    %p52 = por %p50, %p51
    %p53 = scmp.ne.s32.totalorder %s45, %s47
    %p54 = scmp.eq.s32.totalorder %s16, 1
    %p55 = por %p53, %p54
    %p56 = scmp.ne.s32.totalorder %s47, %s48
    %p57 = scmp.eq.s32.totalorder %s16, 0
    %p58 = por %p56, %p57
    %p59 = scmp.ne.s32.totalorder %s47, %s48
    %p60 = scmp.eq.s32.totalorder %s17, 1
    %p61 = por %p59, %p60
    %p63 = scmp.ne.s32.totalorder %s48, %s62
    %p64 = scmp.eq.s32.totalorder %s17, 0
    %p65 = por %p63, %p64
    %s67 = sadd.s32 %s66, 1
    %p70 = scmp.eq.s32.totalorder %s11, 1
    %p71 = scmp.ne.s32.totalorder %s66, %s68
    %p72 = scmp.eq.s32.totalorder %s11, 0
    %p73 = por %p71, %p72
    %p74 = scmp.ne.s32.totalorder %s66, %s68
    %p75 = scmp.eq.s32.totalorder %s16, 1
    %p76 = por %p74, %p75
    %p77 = scmp.ne.s32.totalorder %s68, %s69
    %p78 = scmp.eq.s32.totalorder %s16, 0
    %p79 = por %p77, %p78
    %p80 = scmp.ne.s32.totalorder %s68, %s69
    %p81 = scmp.eq.s32.totalorder %s17, 1
    %p82 = por %p80, %p81
    %p84 = scmp.ne.s32.totalorder %s69, %s83
    %p85 = scmp.eq.s32.totalorder %s17, 0
    %p86 = por %p84, %p85
    %s88 = sadd.s32 %s87, 1
    %p91 = scmp.eq.s32.totalorder %s11, 1
    %p92 = scmp.ne.s32.totalorder %s87, %s89
    %p93 = scmp.eq.s32.totalorder %s11, 0
    %p94 = por %p92, %p93
    %p95 = scmp.ne.s32.totalorder %s87, %s89
    %p96 = scmp.eq.s32.totalorder %s16, 1
    %p97 = por %p95, %p96
    %p98 = scmp.ne.s32.totalorder %s89, %s90
    %p99 = scmp.eq.s32.totalorder %s16, 0
    %p100 = por %p98, %p99
    %p101 = scmp.ne.s32.totalorder %s89, %s90
    %p102 = scmp.eq.s32.totalorder %s17, 1
    %p103 = por %p101, %p102
    %p105 = scmp.ne.s32.totalorder %s90, %s104
    %p106 = scmp.eq.s32.totalorder %s17, 0
    %p107 = por %p105, %p106
    %s109 = sadd.s32 %s108, 1
    %p112 = scmp.eq.s32.totalorder %s11, 1
    %p113 = scmp.ne.s32.totalorder %s108, %s110
    %p114 = scmp.eq.s32.totalorder %s11, 0
    %p115 = por %p113, %p114
    %p116 = scmp.ne.s32.totalorder %s108, %s110
    %p117 = scmp.eq.s32.totalorder %s16, 1
    %p118 = por %p116, %p117
    %p119 = scmp.ne.s32.totalorder %s110, %s111
    %p120 = scmp.eq.s32.totalorder %s16, 0
    %p121 = por %p119, %p120
    %p122 = scmp.ne.s32.totalorder %s110, %s111
    %p123 = scmp.eq.s32.totalorder %s17, 1
    %p124 = por %p122, %p123
    %p126 = scmp.ne.s32.totalorder %s111, %s125
    %p127 = scmp.eq.s32.totalorder %s17, 0
    %p128 = por %p126, %p127
    %s129 = ssub.s32 %s11, %s18
    %p130 = scmp.eq.s32.totalorder %s129, 0
    %s132 = sadd.s32 %s131, 1
    %s133 = scalar_select %p130, %s131, %s132
    %p136 = pneg %p130
    %p137 = scmp.eq.s32.totalorder %s11, 1
    %p138 = por %p136, %p137
    %p139 = scmp.ne.s32.totalorder %s131, %s134
    %p140 = scmp.eq.s32.totalorder %s11, 0
    %p141 = por %p139, %p140
    %p142 = scmp.ne.s32.totalorder %s131, %s134
    %p143 = scmp.eq.s32.totalorder %s16, 1
    %p144 = por %p142, %p143
    %p145 = scmp.ne.s32.totalorder %s134, %s135
    %p146 = scmp.eq.s32.totalorder %s16, 0
    %p147 = por %p145, %p146
    %p148 = scmp.ne.s32.totalorder %s134, %s135
    %p149 = scmp.eq.s32.totalorder %s17, 1
    %p150 = por %p148, %p149
    %p152 = scmp.ne.s32.totalorder %s135, %s151
    %p153 = scmp.eq.s32.totalorder %s17, 0
    %p154 = por %p152, %p153
    %p155 = scmp.le.s32.totalorder 1, %s11
    %p156 = scmp.lt.s32.totalorder %s11, 3
    %p157 = pnand %p155, %p156
    %p158 = pneg %p157
    // Predicated region
    $region9: #{_lambda_.5} parent=5 // pred_check
      _
    $region10: #{_lambda_.5} parent=5 // pred_check_branch
      %160 = sbr.rel (%p157) target = $region12
    $region11: #{_lambda_.5} parent=5 // pred_region
      %s161 = ssub.s32 %s11, 1
      // Predicated region
      $region13: #{_lambda_.5} parent=11 // pred_check
        %p162 = pneg %p58
      $region14: #{_lambda_.5} parent=11 // pred_check_branch
        %164 = sbr.rel (%p162) target = $region16
      $region15: #{_lambda_.5} parent=11 // pred_region
        _
      $region16: #{_lambda_.5} parent=11 // pred_fallthru
        _
      // Predicated region
      $region17: #{_lambda_.5} parent=11 // pred_check
        %p165 = pneg %p79
      $region18: #{_lambda_.5} parent=11 // pred_check_branch
        %167 = sbr.rel (%p165) target = $region20
      $region19: #{_lambda_.5} parent=11 // pred_region
        _
      $region20: #{_lambda_.5} parent=11 // pred_fallthru
        _
      // Predicated region
      $region21: #{_lambda_.5} parent=11 // pred_check
        %p168 = pneg %p100
      $region22: #{_lambda_.5} parent=11 // pred_check_branch
        %170 = sbr.rel (%p168) target = $region24
      $region23: #{_lambda_.5} parent=11 // pred_region
        _
      $region24: #{_lambda_.5} parent=11 // pred_fallthru
        _
      // Predicated region
      $region25: #{_lambda_.5} parent=11 // pred_check
        %p171 = pneg %p121
      $region26: #{_lambda_.5} parent=11 // pred_check_branch
        %173 = sbr.rel (%p171) target = $region28
      $region27: #{_lambda_.5} parent=11 // pred_region
        _
      $region28: #{_lambda_.5} parent=11 // pred_fallthru
        _
    $region12: #{_lambda_.5} parent=5 // pred_fallthru
      _
    %p174 = scmp.lt.s32.totalorder %s11, 2
    // Predicated region
    $region29: #{_lambda_.5} parent=5 // pred_check
      %p175 = pneg %p174
    $region30: #{_lambda_.5} parent=5 // pred_check_branch
      %177 = sbr.rel (%p175) target = $region32
    $region31: #{_lambda_.5} parent=5 // pred_region
      // Predicated region
      $region33: #{_lambda_.5} parent=31 // pred_check
        %p178 = pneg %p31
      $region34: #{_lambda_.5} parent=31 // pred_check_branch
        %180 = sbr.rel (%p178) target = $region36
      $region35: #{_lambda_.5} parent=31 // pred_region
        %p181 = scmp.lt.s32.totalorder %s11, 1
        %s182 = scalar_select %p181, %s11, 1
        %s183 = smul.addr %s182, 6
        %s184 = smul.addr %s183, 4
        %s185 = scalar_lea.vmem %s0, %s184
      $region36: #{_lambda_.5} parent=31 // pred_fallthru
        _
    $region32: #{_lambda_.5} parent=5 // pred_fallthru
      _
    %p186 = scmp.le.s32.totalorder 1, %s11
    %p187 = scmp.lt.s32.totalorder %s11, 3
    %p188 = pnand %p186, %p187
    %p189 = pneg %p188
    // Predicated region
    $region37: #{_lambda_.5} parent=5 // pred_check
      _
    $region38: #{_lambda_.5} parent=5 // pred_check_branch
      %191 = sbr.rel (%p188) target = $region40
    $region39: #{_lambda_.5} parent=5 // pred_region
      %s192 = ssub.s32 %s11, 1
      %p193 = scmp.lt.s32.totalorder %s16, 1
      %s194 = scalar_select %p193, %s16, 1
      %s195 = smul.addr %s194, 6
      %s196 = smul.addr %s195, 4
      %s197 = scalar_lea.vmem %s0, %s196
      %p198 = pneg %p37
      %p199 = pneg %p34
      %p200 = pneg %p58
      %p201 = pneg %p55
      %p202 = pneg %p79
      %p203 = pneg %p76
      %p204 = pneg %p100
      %p205 = pneg %p97
      %p206 = pneg %p121
      %p207 = pneg %p118
      %p208 = pneg %p147
      %p209 = pneg %p144
      %p210 = scmp.lt.s32.totalorder %s16, 1
      %s211 = scalar_select %p210, %s16, 1
      %s212 = smul.addr %s211, 6
      %s213 = smul.addr %s212, 4
      %s214 = scalar_lea.vmem %s5, %s213
      %p215 = scmp.lt.s32.totalorder %s16, 1
      %s216 = scalar_select %p215, %s16, 1
      %s217 = smul.addr %s216, 6
      %s218 = smul.addr %s217, 4
      %s219 = scalar_lea.vmem %s0, %s218
      %p220 = scmp.lt.s32.totalorder %s16, 1
      %s221 = scalar_select %p220, %s16, 1
      %s222 = smul.addr %s221, 6
      %s223 = smul.addr %s222, 4
      %s224 = scalar_lea.vmem %s5, %s223
      %v226 = vld [vmem:[%s219] sm:$0xf]
      %v227 = vld [vmem:[%s219 + $0x4] sm:$0xf]
      %v228 = vld [vmem:[%s219 + $0x8] sm:$0xf]
      %v229 = vld [vmem:[%s219 + $0xc] sm:$0xf]
      %v230 = vld [vmem:[%s219 + $0x10] sm:$0xf]
      %v231 = vld [vmem:[%s219 + $0x14] sm:$0x3]
      %v232 = vld [vmem:[%s1] sm:$0xf]
      %v233 = vld [vmem:[%s1 + $0x4] sm:$0xf]
      %v234 = vld [vmem:[%s1 + $0x8] sm:$0xf]
      %v235 = vld [vmem:[%s1 + $0xc] sm:$0xf]
      %v236 = vld [vmem:[%s1 + $0x10] sm:$0xf]
      %v237 = vld [vmem:[%s1 + $0x14] sm:$0xf]
      %v238 = vld [vmem:[%s1 + $0x18] sm:$0xf]
      %v239 = vld [vmem:[%s1 + $0x1c] sm:$0xf]
      %v240 = vld [vmem:[%s1 + $0x20] sm:$0xf]
      %v241 = vld [vmem:[%s1 + $0x24] sm:$0xf]
      %v242 = vld [vmem:[%s2] sm:$0x1]
      %v244 = vlaneseq
      %v245 = vshrl.u32 %v244, 7
      %v246 = vsub.s32 0, %v245
      %v247 = vrot.slane %v242, %v246
      %v255 = vunpack.c.l.b16 %v226
      %v256 = vunpack.c.l.b16 %v227
      %v257 = vunpack.c.l.b16 %v228
      %v258 = vunpack.c.l.b16 %v229
      %v259 = vunpack.c.l.b16 %v230
      %v260 = vunpack.c.l.b16 %v231
      %v261 = vpack.c.b16 %v256, %v255
      %v262 = vpack.c.b16 %v258, %v257
      %v263 = vpack.c.b16 %v260, %v259
      %v274 = vunpack.c.l.b16 %v232
      %v275 = vunpack.c.l.b16 %v233
      %v276 = vunpack.c.l.b16 %v234
      %v277 = vunpack.c.l.b16 %v235
      %v278 = vunpack.c.l.b16 %v236
      %v279 = vunpack.c.l.b16 %v237
      %v280 = vunpack.c.l.b16 %v238
      %v281 = vunpack.c.l.b16 %v239
      %v282 = vunpack.c.l.b16 %v240
      %v283 = vunpack.c.l.b16 %v241
      %v284 = vpack.c.b16 %v275, %v274
      %v285 = vpack.c.b16 %v277, %v276
      %v286 = vpack.c.b16 %v279, %v278
      %v287 = vpack.c.b16 %v281, %v280
      %v288 = vpack.c.b16 %v283, %v282
      %vm294 = vcmask 654336
      %v296 = vsel %vm294, %v261, 0
      %v299 = vsel %vm294, %v262, 0
      %v302 = vsel %vm294, %v263, 0
      %304 = vmatprep.subr.bf16.mxu0 0
      %305 = vmatpush1.bf16.msra.mxu0 0
      %306 = vmatprep.subr.bf16.mxu0 0
      %307 = vmatpush1.bf16.msra.mxu0 0
      %308 = vmatprep.subr.bf16.mxu0 0
      %309 = vmatpush1.bf16.msra.mxu0 0
      %310 = vmatprep.subr.bf16.mxu0 0
      %311 = vmatpush1.bf16.msra.mxu0 %v288
      %312 = vmatprep.subr.bf16.mxu0 0
      %313 = vmatpush1.bf16.msra.mxu0 %v287
      %314 = vmatprep.subr.bf16.mxu0 0
      %315 = vmatpush1.bf16.msra.mxu0 %v286
      %316 = vmatprep.subr.bf16.mxu0 0
      %317 = vmatpush1.bf16.msra.mxu0 %v285
      %318 = vmatprep.subr.bf16.mxu0 0
      %319 = vmatpush1.bf16.msra.mxu0 %v284
      %320 = vmatprep.subr.bf16.mxu0 0
      %321 = vmatpush2.bf16.msra.mxu0 0
      %322 = vmatprep.subr.bf16.mxu0 0
      %323 = vmatpush2.bf16.msra.mxu0 0
      %324 = vmatprep.subr.bf16.mxu0 0
      %325 = vmatpush2.bf16.msra.mxu0 0
      %326 = vmatprep.subr.bf16.mxu0 0
      %327 = vmatpush2.bf16.msra.mxu0 0
      %328 = vmatprep.subr.bf16.mxu0 0
      %329 = vmatpush2.bf16.msra.mxu0 0
      %330 = vmatprep.subr.bf16.mxu0 0
      %331 = vmatpush2.bf16.msra.mxu0 0
      %332 = vmatprep.subr.bf16.mxu0 0
      %333 = vmatpush2.bf16.msra.mxu0 0
      %334 = vmatprep.subr.bf16.mxu0 0
      %335 = vmatpush2.bf16.msra.mxu0 0
      %336 = vmatprep.mubr.bf16.mxu0 0
      %337 = vmatmul.mubr.bf16.gmra.mxu0 %v296
      %v338 = vpop.f32.mrf.mxu0
      %v339 = vadd.f32 %v247, %v338
      %v340 = vpop.f32.mrf.mxu0
      %v341 = vpop.f32.mrf.mxu0
      %v342 = vadd.f32 %v247, %v341
      %v343 = vpop.f32.mrf.mxu0
      %344 = vmatprep.mubr.bf16.mxu0 0
      %345 = vmatmul.mubr.bf16.gmra.mxu0 %v299
      %v346 = vpop.f32.mrf.mxu0
      %v347 = vadd.f32 %v247, %v346
      %v348 = vpop.f32.mrf.mxu0
      %v349 = vpop.f32.mrf.mxu0
      %v350 = vadd.f32 %v247, %v349
      %v351 = vpop.f32.mrf.mxu0
      %352 = vmatprep.mubr.bf16.mxu0 0
      %353 = vmatmul.mubr.bf16.gmra.mxu0 %v302
      %v354 = vpop.f32.mrf.mxu0
      %v355 = vadd.f32 %v247, %v354
      %v356 = vpop.f32.mrf.mxu0
      %v357 = vpop.f32.mrf.mxu0
      %v358 = vadd.f32 %v247, %v357
      %v359 = vpop.f32.mrf.mxu0
      %360 = vdwg.mxu0
      %v361 = vmax.f32 %v339, 0.0
      %v362 = vmax.f32 %v342, 0.0
      %v363 = vmax.f32 %v347, 0.0
      %v364 = vmax.f32 %v350, 0.0
      %v365 = vmax.f32 %v355, 0.0
      %v366 = vmax.f32 %v358, 0.0
      %v367 = vld [vmem:[%s3] sm:$0x1]
      %v369 = vlaneseq
      %v370 = vshrl.u32 %v369, 7
      %v371 = vsub.s32 0, %v370
      %v372 = vrot.slane %v367, %v371
      %v374 = vmul.f32 %v361, %v372
      %v375 = vmul.f32 %v362, %v372
      %v376 = vmul.f32 %v363, %v372
      %v377 = vmul.f32 %v364, %v372
      %v378 = vmul.f32 %v365, %v372
      %v379 = vmul.f32 %v366, %v372
      %v380 = vld [vmem:[%s4] sm:$0x1]
      %v382 = vlaneseq
      %v383 = vshrl.u32 %v382, 7
      %v384 = vsub.s32 0, %v383
      %v385 = vrot.slane %v380, %v384
      %v387 = vadd.f32 %v374, %v385
      %v388 = vadd.f32 %v375, %v385
      %v389 = vadd.f32 %v376, %v385
      %v390 = vadd.f32 %v377, %v385
      %v391 = vadd.f32 %v378, %v385
      %v392 = vadd.f32 %v379, %v385
      %v393 = vpack.c.bf16 %v388, %v387
      %v394 = vpack.c.bf16 %v390, %v389
      %v395 = vpack.c.bf16 %v392, %v391
      %v399 = vunpack.c.l.b16 %v393
      %v400 = vunpack.c.h.b16 %v393
      %v401 = vunpack.c.l.b16 %v394
      %v402 = vunpack.c.h.b16 %v394
      %v403 = vunpack.c.l.b16 %v395
      %v404 = vunpack.c.h.b16 %v395
      %v405 = vpack.c.b16 %v399, %v399
      %v406 = vpack.c.b16 %v400, %v400
      %v407 = vpack.c.b16 %v401, %v401
      %v408 = vpack.c.b16 %v402, %v402
      %v409 = vpack.c.b16 %v403, %v403
      %v410 = vpack.c.b16 %v404, %v404
      %vm417 = vcmask 519168
      %418 = vst.msk [vmem:[%s224] sm:$0xf] %vm417, %v405
      %419 = vst.msk [vmem:[%s224 + $0x4] sm:$0xf] %vm417, %v406
      %420 = vst.msk [vmem:[%s224 + $0x8] sm:$0xf] %vm417, %v407
      %421 = vst.msk [vmem:[%s224 + $0xc] sm:$0xf] %vm417, %v408
      %422 = vst.msk [vmem:[%s224 + $0x10] sm:$0xf] %vm417, %v409
      %vm423 = vcmask 517120
      %424 = vst.msk [vmem:[%s224 + $0x14] sm:$0x3] %vm423, %v410
      %p425 = scmp.lt.s32.totalorder %s16, 1
      %s426 = scalar_select %p425, %s16, 1
      %s427 = smul.addr %s426, 6
      %s428 = smul.addr %s427, 4
      %s429 = scalar_lea.vmem %s5, %s428
      // Predicated region
      $region41: #{_lambda_.5} parent=39 // pred_check
        %p430 = pneg %p144
      $region42: #{_lambda_.5} parent=39 // pred_check_branch
        %432 = sbr.rel (%p430) target = $region44
      $region43: #{_lambda_.5} parent=39 // pred_region
        _
      $region44: #{_lambda_.5} parent=39 // pred_fallthru
        _
    $region40: #{_lambda_.5} parent=5 // pred_fallthru
      _
    %p433 = scmp.le.s32.totalorder 2, %s11
    // Predicated region
    $region45: #{_lambda_.5} parent=5 // pred_check
      %p434 = pneg %p433
    $region46: #{_lambda_.5} parent=5 // pred_check_branch
      %436 = sbr.rel (%p434) target = $region48
    $region47: #{_lambda_.5} parent=5 // pred_region
      %s437 = ssub.s32 %s11, 2
      // Predicated region
      $region49: #{_lambda_.5} parent=47 // pred_check
        %p438 = pneg %p150
      $region50: #{_lambda_.5} parent=47 // pred_check_branch
        %440 = sbr.rel (%p438) target = $region52
      $region51: #{_lambda_.5} parent=47 // pred_region
        %p441 = scmp.lt.s32.totalorder %s17, 1
        %s442 = scalar_select %p441, %s17, 1
        %s443 = smul.addr %s442, 6
        %s444 = smul.addr %s443, 4
        %s445 = scalar_lea.vmem %s5, %s444
      $region52: #{_lambda_.5} parent=47 // pred_fallthru
        _
    $region48: #{_lambda_.5} parent=5 // pred_fallthru
      _
  $region6: #{_lambda_.5} parent=0 // loop_footer
    %s15 = sadd.s32 1, %s11
  $region7: #{_lambda_.5} parent=0 // loop_footer_branch
    %10 = sbr.rel target = $region3
  $region8: #{_lambda_.5} parent=0 // loop_exit
    _

// kernel: _lambda_.6
$region0: #{_lambda_.6}
  #allocation0 [shape = 'u32[]', space=smem, size = 0x4, offset = 0x4, fixed_abs, tag = 'smem constant byte address 0x4 - core index']
  #allocation1 [shape = 'u32[144,128]{1,0:T(1,128)}', space=vmem, size = 0x12000, scoped, tag = 'internal scratch']
  %s0 = inlined_call_operand.vmem [shape: bf16[2,44,64], index: 0, kind: input, shape index: {}]
  %s1 = inlined_call_operand.vmem [shape: bf16[5,64,64], index: 1, kind: input, shape index: {}]
  %s2 = inlined_call_operand.vmem [shape: f32[1,64], index: 2, kind: input, shape index: {}]
  %s3 = inlined_call_operand.vmem [shape: f32[1,64], index: 3, kind: input, shape index: {}]
  %s4 = inlined_call_operand.vmem [shape: f32[1,64], index: 4, kind: input, shape index: {}]
  %s5 = inlined_call_operand.vmem [shape: bf16[2,36,64], index: 5, kind: output, shape index: {}]
  %s6 = sld [smem:[#allocation0]]
  $region53: #{_lambda_.6} parent=0
    _
  %s8 = ssub.s32 1, %s6
  %s9 = scalar_select 0, %s8, %s6
  loop: start=0, step=1, limit=4
  $region2: #{_lambda_.6} parent=0 // loop_pre_header
    _
  $region3: #{_lambda_.6} parent=0 // loop_header
    %s11 = sphi 0, %s15
    %p12 = scmp.ge.s32.totalorder %s11, 4
    %s21 = sphi 0, %s23
    %s24 = sphi 0, %s21
    %s25 = sphi 0, %s24
    %s41 = sphi 0, %s25
    %s45 = sphi 0, %s45
    %s47 = sphi 0, %s45
    %s48 = sphi 0, %s47
    %s62 = sphi 0, %s48
    %s66 = sphi 0, %s66
    %s68 = sphi 0, %s66
    %s69 = sphi 0, %s68
    %s83 = sphi 0, %s69
    %s87 = sphi 0, %s87
    %s89 = sphi 0, %s87
    %s90 = sphi 0, %s89
    %s104 = sphi 0, %s90
    %s108 = sphi 0, %s108
    %s110 = sphi 0, %s108
    %s111 = sphi 0, %s110
    %s125 = sphi 0, %s111
    %s131 = sphi 0, %s133
    %s134 = sphi 0, %s131
    %s135 = sphi 0, %s134
    %s151 = sphi 0, %s135
  $region4: #{_lambda_.6} parent=0 // loop_header_branch
    %14 = sbr.rel (%p12) target = $region8
  $region5: #{_lambda_.6} parent=0 // loop_body
    %s16 = ssub.s32 %s11, 1
    %s17 = ssub.s32 %s11, 2
    %s18 = sadd.s32 %s11, 1
    %s19 = ssub.s32 %s11, %s18
    %p20 = scmp.eq.s32.totalorder %s19, 0
    %s22 = sadd.s32 %s21, 1
    %s23 = scalar_select %p20, %s21, %s22
    %p26 = pneg %p20
    %p27 = scmp.eq.s32.totalorder %s11, 1
    %p28 = por %p26, %p27
    %p29 = scmp.ne.s32.totalorder %s21, %s24
    %p30 = scmp.eq.s32.totalorder %s11, 0
    %p31 = por %p29, %p30
    %p32 = scmp.ne.s32.totalorder %s21, %s24
    %p33 = scmp.eq.s32.totalorder %s16, 1
    %p34 = por %p32, %p33
    %p35 = scmp.ne.s32.totalorder %s24, %s25
    %p36 = scmp.eq.s32.totalorder %s16, 0
    %p37 = por %p35, %p36
    %p38 = scmp.ne.s32.totalorder %s24, %s25
    %p39 = scmp.eq.s32.totalorder %s17, 1
    %p40 = por %p38, %p39
    %p42 = scmp.ne.s32.totalorder %s25, %s41
    %p43 = scmp.eq.s32.totalorder %s17, 0
    %p44 = por %p42, %p43
    %s46 = sadd.s32 %s45, 1
    %p49 = scmp.eq.s32.totalorder %s11, 1
    %p50 = scmp.ne.s32.totalorder %s45, %s47
    %p51 = scmp.eq.s32.totalorder %s11, 0
    %p52 = por %p50, %p51
    %p53 = scmp.ne.s32.totalorder %s45, %s47
    %p54 = scmp.eq.s32.totalorder %s16, 1
    %p55 = por %p53, %p54
    %p56 = scmp.ne.s32.totalorder %s47, %s48
    %p57 = scmp.eq.s32.totalorder %s16, 0
    %p58 = por %p56, %p57
    %p59 = scmp.ne.s32.totalorder %s47, %s48
    %p60 = scmp.eq.s32.totalorder %s17, 1
    %p61 = por %p59, %p60
    %p63 = scmp.ne.s32.totalorder %s48, %s62
    %p64 = scmp.eq.s32.totalorder %s17, 0
    %p65 = por %p63, %p64
    %s67 = sadd.s32 %s66, 1
    %p70 = scmp.eq.s32.totalorder %s11, 1
    %p71 = scmp.ne.s32.totalorder %s66, %s68
    %p72 = scmp.eq.s32.totalorder %s11, 0
    %p73 = por %p71, %p72
    %p74 = scmp.ne.s32.totalorder %s66, %s68
    %p75 = scmp.eq.s32.totalorder %s16, 1
    %p76 = por %p74, %p75
    %p77 = scmp.ne.s32.totalorder %s68, %s69
    %p78 = scmp.eq.s32.totalorder %s16, 0
    %p79 = por %p77, %p78
    %p80 = scmp.ne.s32.totalorder %s68, %s69
    %p81 = scmp.eq.s32.totalorder %s17, 1
    %p82 = por %p80, %p81
    %p84 = scmp.ne.s32.totalorder %s69, %s83
    %p85 = scmp.eq.s32.totalorder %s17, 0
    %p86 = por %p84, %p85
    %s88 = sadd.s32 %s87, 1
    %p91 = scmp.eq.s32.totalorder %s11, 1
    %p92 = scmp.ne.s32.totalorder %s87, %s89
    %p93 = scmp.eq.s32.totalorder %s11, 0
    %p94 = por %p92, %p93
    %p95 = scmp.ne.s32.totalorder %s87, %s89
    %p96 = scmp.eq.s32.totalorder %s16, 1
    %p97 = por %p95, %p96
    %p98 = scmp.ne.s32.totalorder %s89, %s90
    %p99 = scmp.eq.s32.totalorder %s16, 0
    %p100 = por %p98, %p99
    %p101 = scmp.ne.s32.totalorder %s89, %s90
    %p102 = scmp.eq.s32.totalorder %s17, 1
    %p103 = por %p101, %p102
    %p105 = scmp.ne.s32.totalorder %s90, %s104
    %p106 = scmp.eq.s32.totalorder %s17, 0
    %p107 = por %p105, %p106
    %s109 = sadd.s32 %s108, 1
    %p112 = scmp.eq.s32.totalorder %s11, 1
    %p113 = scmp.ne.s32.totalorder %s108, %s110
    %p114 = scmp.eq.s32.totalorder %s11, 0
    %p115 = por %p113, %p114
    %p116 = scmp.ne.s32.totalorder %s108, %s110
    %p117 = scmp.eq.s32.totalorder %s16, 1
    %p118 = por %p116, %p117
    %p119 = scmp.ne.s32.totalorder %s110, %s111
    %p120 = scmp.eq.s32.totalorder %s16, 0
    %p121 = por %p119, %p120
    %p122 = scmp.ne.s32.totalorder %s110, %s111
    %p123 = scmp.eq.s32.totalorder %s17, 1
    %p124 = por %p122, %p123
    %p126 = scmp.ne.s32.totalorder %s111, %s125
    %p127 = scmp.eq.s32.totalorder %s17, 0
    %p128 = por %p126, %p127
    %s129 = ssub.s32 %s11, %s18
    %p130 = scmp.eq.s32.totalorder %s129, 0
    %s132 = sadd.s32 %s131, 1
    %s133 = scalar_select %p130, %s131, %s132
    %p136 = pneg %p130
    %p137 = scmp.eq.s32.totalorder %s11, 1
    %p138 = por %p136, %p137
    %p139 = scmp.ne.s32.totalorder %s131, %s134
    %p140 = scmp.eq.s32.totalorder %s11, 0
    %p141 = por %p139, %p140
    %p142 = scmp.ne.s32.totalorder %s131, %s134
    %p143 = scmp.eq.s32.totalorder %s16, 1
    %p144 = por %p142, %p143
    %p145 = scmp.ne.s32.totalorder %s134, %s135
    %p146 = scmp.eq.s32.totalorder %s16, 0
    %p147 = por %p145, %p146
    %p148 = scmp.ne.s32.totalorder %s134, %s135
    %p149 = scmp.eq.s32.totalorder %s17, 1
    %p150 = por %p148, %p149
    %p152 = scmp.ne.s32.totalorder %s135, %s151
    %p153 = scmp.eq.s32.totalorder %s17, 0
    %p154 = por %p152, %p153
    %p155 = scmp.le.s32.totalorder 1, %s11
    %p156 = scmp.lt.s32.totalorder %s11, 3
    %p157 = pnand %p155, %p156
    %p158 = pneg %p157
    // Predicated region
    $region9: #{_lambda_.6} parent=5 // pred_check
      _
    $region10: #{_lambda_.6} parent=5 // pred_check_branch
      %160 = sbr.rel (%p157) target = $region12
    $region11: #{_lambda_.6} parent=5 // pred_region
      %s161 = ssub.s32 %s11, 1
      // Predicated region
      $region13: #{_lambda_.6} parent=11 // pred_check
        %p162 = pneg %p58
      $region14: #{_lambda_.6} parent=11 // pred_check_branch
        %164 = sbr.rel (%p162) target = $region16
      $region15: #{_lambda_.6} parent=11 // pred_region
        _
      $region16: #{_lambda_.6} parent=11 // pred_fallthru
        _
      // Predicated region
      $region17: #{_lambda_.6} parent=11 // pred_check
        %p165 = pneg %p79
      $region18: #{_lambda_.6} parent=11 // pred_check_branch
        %167 = sbr.rel (%p165) target = $region20
      $region19: #{_lambda_.6} parent=11 // pred_region
        _
      $region20: #{_lambda_.6} parent=11 // pred_fallthru
        _
      // Predicated region
      $region21: #{_lambda_.6} parent=11 // pred_check
        %p168 = pneg %p100
      $region22: #{_lambda_.6} parent=11 // pred_check_branch
        %170 = sbr.rel (%p168) target = $region24
      $region23: #{_lambda_.6} parent=11 // pred_region
        _
      $region24: #{_lambda_.6} parent=11 // pred_fallthru
        _
      // Predicated region
      $region25: #{_lambda_.6} parent=11 // pred_check
        %p171 = pneg %p121
      $region26: #{_lambda_.6} parent=11 // pred_check_branch
        %173 = sbr.rel (%p171) target = $region28
      $region27: #{_lambda_.6} parent=11 // pred_region
        _
      $region28: #{_lambda_.6} parent=11 // pred_fallthru
        _
    $region12: #{_lambda_.6} parent=5 // pred_fallthru
      _
    %p174 = scmp.lt.s32.totalorder %s11, 2
    // Predicated region
    $region29: #{_lambda_.6} parent=5 // pred_check
      %p175 = pneg %p174
    $region30: #{_lambda_.6} parent=5 // pred_check_branch
      %177 = sbr.rel (%p175) target = $region32
    $region31: #{_lambda_.6} parent=5 // pred_region
      // Predicated region
      $region33: #{_lambda_.6} parent=31 // pred_check
        %p178 = pneg %p31
      $region34: #{_lambda_.6} parent=31 // pred_check_branch
        %180 = sbr.rel (%p178) target = $region36
      $region35: #{_lambda_.6} parent=31 // pred_region
        %p181 = scmp.lt.s32.totalorder %s11, 1
        %s182 = scalar_select %p181, %s11, 1
        %s183 = smul.addr %s182, 6
        %s184 = smul.addr %s183, 4
        %s185 = scalar_lea.vmem %s0, %s184
      $region36: #{_lambda_.6} parent=31 // pred_fallthru
        _
    $region32: #{_lambda_.6} parent=5 // pred_fallthru
      _
    %p186 = scmp.le.s32.totalorder 1, %s11
    %p187 = scmp.lt.s32.totalorder %s11, 3
    %p188 = pnand %p186, %p187
    %p189 = pneg %p188
    // Predicated region
    $region37: #{_lambda_.6} parent=5 // pred_check
      _
    $region38: #{_lambda_.6} parent=5 // pred_check_branch
      %191 = sbr.rel (%p188) target = $region40
    $region39: #{_lambda_.6} parent=5 // pred_region
      %s192 = ssub.s32 %s11, 1
      %p193 = scmp.lt.s32.totalorder %s16, 1
      %s194 = scalar_select %p193, %s16, 1
      %s195 = smul.addr %s194, 6
      %s196 = smul.addr %s195, 4
      %s197 = scalar_lea.vmem %s0, %s196
      %p198 = pneg %p37
      %p199 = pneg %p34
      %p200 = pneg %p58
      %p201 = pneg %p55
      %p202 = pneg %p79
      %p203 = pneg %p76
      %p204 = pneg %p100
      %p205 = pneg %p97
      %p206 = pneg %p121
      %p207 = pneg %p118
      %p208 = pneg %p147
      %p209 = pneg %p144
      %p210 = scmp.lt.s32.totalorder %s16, 1
      %s211 = scalar_select %p210, %s16, 1
      %s212 = smul.addr %s211, 5
      %s213 = smul.addr %s212, 4
      %s214 = scalar_lea.vmem %s5, %s213
      %p215 = scmp.lt.s32.totalorder %s16, 1
      %s216 = scalar_select %p215, %s16, 1
      %s217 = smul.addr %s216, 6
      %s218 = smul.addr %s217, 4
      %s219 = scalar_lea.vmem %s0, %s218
      %p220 = scmp.lt.s32.totalorder %s16, 1
      %s221 = scalar_select %p220, %s16, 1
      %s222 = smul.addr %s221, 5
      %s223 = smul.addr %s222, 4
      %s224 = scalar_lea.vmem %s5, %s223
      %v226 = vld [vmem:[%s219] sm:$0xf]
      %v227 = vld [vmem:[%s219 + $0x4] sm:$0xf]
      %v228 = vld [vmem:[%s219 + $0x8] sm:$0xf]
      %v229 = vld [vmem:[%s219 + $0xc] sm:$0xf]
      %v230 = vld [vmem:[%s219 + $0x10] sm:$0x3]
      %v231 = vld [vmem:[%s1] sm:$0xf]
      %v232 = vld [vmem:[%s1 + $0x4] sm:$0xf]
      %v233 = vld [vmem:[%s1 + $0x8] sm:$0xf]
      %v234 = vld [vmem:[%s1 + $0xc] sm:$0xf]
      %v235 = vld [vmem:[%s1 + $0x10] sm:$0xf]
      %v236 = vld [vmem:[%s1 + $0x14] sm:$0xf]
      %v237 = vld [vmem:[%s1 + $0x18] sm:$0xf]
      %v238 = vld [vmem:[%s1 + $0x1c] sm:$0xf]
      %v239 = vld [vmem:[%s219] sm:$0xe]
      %v240 = vld [vmem:[%s219 + $0x10] sm:$0x7]
      %s241 = scalar_lea.vmem %s1, 32
      %v242 = vld [vmem:[%s241] sm:$0xf]
      %v243 = vld [vmem:[%s241 + $0x4] sm:$0xf]
      %v244 = vld [vmem:[%s241 + $0x8] sm:$0xf]
      %v245 = vld [vmem:[%s241 + $0xc] sm:$0xf]
      %v246 = vld [vmem:[%s241 + $0x10] sm:$0xf]
      %v247 = vld [vmem:[%s241 + $0x14] sm:$0xf]
      %v248 = vld [vmem:[%s241 + $0x18] sm:$0xf]
      %v249 = vld [vmem:[%s241 + $0x1c] sm:$0xf]
      %v255 = vunpack.c.l.b16 %v239
      %v256 = vunpack.c.l.b16 %v227
      %v257 = vunpack.c.l.b16 %v228
      %v258 = vunpack.c.l.b16 %v229
      %v259 = vunpack.c.l.b16 %v240
      %v260 = vpack.c.b16 %v256, %v255
      %v261 = vpack.c.b16 %v258, %v257
      %v262 = vpack.c.b16 %v259, %v259
      %vm263 = vcmask 1046528
      %v264 = vrot.slane %v260, 1
      %v265 = vrot.slane %v261, 1
      %v266 = vsel %vm263, %v264, %v265
      %v267 = vrot.slane %v262, 1
      %v268 = vsel %vm263, %v265, %v267
      %v277 = vunpack.c.l.b16 %v242
      %v278 = vunpack.c.l.b16 %v243
      %v279 = vunpack.c.l.b16 %v244
      %v280 = vunpack.c.l.b16 %v245
      %v281 = vunpack.c.l.b16 %v246
      %v282 = vunpack.c.l.b16 %v247
      %v283 = vunpack.c.l.b16 %v248
      %v284 = vunpack.c.l.b16 %v249
      %v285 = vpack.c.b16 %v278, %v277
      %v286 = vpack.c.b16 %v280, %v279
      %v287 = vpack.c.b16 %v282, %v281
      %v288 = vpack.c.b16 %v284, %v283
      %vm293 = vcmask 523264
      %v295 = vsel %vm293, %v266, 0
      %v298 = vsel %vm293, %v268, 0
      %v301 = vsel %vm293, %v267, 0
      %303 = vmatprep.subr.bf16.mxu0 0
      %304 = vmatpush1.bf16.msra.mxu0 0
      %305 = vmatprep.subr.bf16.mxu0 0
      %306 = vmatpush1.bf16.msra.mxu0 0
      %307 = vmatprep.subr.bf16.mxu0 0
      %308 = vmatpush1.bf16.msra.mxu0 0
      %309 = vmatprep.subr.bf16.mxu0 0
      %310 = vmatpush1.bf16.msra.mxu0 0
      %311 = vmatprep.subr.bf16.mxu0 0
      %312 = vmatpush1.bf16.msra.mxu0 %v288
      %313 = vmatprep.subr.bf16.mxu0 0
      %314 = vmatpush1.bf16.msra.mxu0 %v287
      %315 = vmatprep.subr.bf16.mxu0 0
      %316 = vmatpush1.bf16.msra.mxu0 %v286
      %317 = vmatprep.subr.bf16.mxu0 0
      %318 = vmatpush1.bf16.msra.mxu0 %v285
      %319 = vmatprep.subr.bf16.mxu0 0
      %320 = vmatpush2.bf16.msra.mxu0 0
      %321 = vmatprep.subr.bf16.mxu0 0
      %322 = vmatpush2.bf16.msra.mxu0 0
      %323 = vmatprep.subr.bf16.mxu0 0
      %324 = vmatpush2.bf16.msra.mxu0 0
      %325 = vmatprep.subr.bf16.mxu0 0
      %326 = vmatpush2.bf16.msra.mxu0 0
      %327 = vmatprep.subr.bf16.mxu0 0
      %328 = vmatpush2.bf16.msra.mxu0 0
      %329 = vmatprep.subr.bf16.mxu0 0
      %330 = vmatpush2.bf16.msra.mxu0 0
      %331 = vmatprep.subr.bf16.mxu0 0
      %332 = vmatpush2.bf16.msra.mxu0 0
      %333 = vmatprep.subr.bf16.mxu0 0
      %334 = vmatpush2.bf16.msra.mxu0 0
      %335 = vmatprep.mubr.bf16.mxu0 0
      %336 = vmatmul.mubr.bf16.gmra.mxu0 %v295
      %v337 = vpop.f32.mrf.mxu0
      %v338 = vadd.f32 0.0, %v337
      %v339 = vpop.f32.mrf.mxu0
      %v340 = vpop.f32.mrf.mxu0
      %v341 = vadd.f32 0.0, %v340
      %v342 = vpop.f32.mrf.mxu0
      %343 = vmatprep.mubr.bf16.mxu0 0
      %344 = vmatmul.mubr.bf16.gmra.mxu0 %v298
      %v345 = vpop.f32.mrf.mxu0
      %v346 = vadd.f32 0.0, %v345
      %v347 = vpop.f32.mrf.mxu0
      %v348 = vpop.f32.mrf.mxu0
      %v349 = vadd.f32 0.0, %v348
      %v350 = vpop.f32.mrf.mxu0
      %351 = vmatprep.mubr.bf16.mxu0 0
      %352 = vmatmul.mubr.bf16.gmra.mxu0 %v301
      %v353 = vpop.f32.mrf.mxu0
      %v354 = vadd.f32 0.0, %v353
      %v355 = vpop.f32.mrf.mxu0
      %v356 = vpop.f32.mrf.mxu0
      %v357 = vpop.f32.mrf.mxu0
      %358 = vdwg.mxu0
      %v361 = vunpack.c.l.b16 %v226
      %v362 = vunpack.c.l.b16 %v230
      %v363 = vpack.c.b16 %v256, %v361
      %v364 = vpack.c.b16 %v362, %v362
      %v373 = vunpack.c.l.b16 %v231
      %v374 = vunpack.c.l.b16 %v232
      %v375 = vunpack.c.l.b16 %v233
      %v376 = vunpack.c.l.b16 %v234
      %v377 = vunpack.c.l.b16 %v235
      %v378 = vunpack.c.l.b16 %v236
      %v379 = vunpack.c.l.b16 %v237
      %v380 = vunpack.c.l.b16 %v238
      %v381 = vpack.c.b16 %v374, %v373
      %v382 = vpack.c.b16 %v376, %v375
      %v383 = vpack.c.b16 %v378, %v377
      %v384 = vpack.c.b16 %v380, %v379
      %v390 = vsel %vm293, %v363, 0
      %v393 = vsel %vm293, %v261, 0
      %v396 = vsel %vm293, %v364, 0
      %398 = vmatprep.subr.bf16.mxu0 0
      %399 = vmatpush1.bf16.msra.mxu0 0
      %400 = vmatprep.subr.bf16.mxu0 0
      %401 = vmatpush1.bf16.msra.mxu0 0
      %402 = vmatprep.subr.bf16.mxu0 0
      %403 = vmatpush1.bf16.msra.mxu0 0
      %404 = vmatprep.subr.bf16.mxu0 0
      %405 = vmatpush1.bf16.msra.mxu0 0
      %406 = vmatprep.subr.bf16.mxu0 0
      %407 = vmatpush1.bf16.msra.mxu0 %v384
      %408 = vmatprep.subr.bf16.mxu0 0
      %409 = vmatpush1.bf16.msra.mxu0 %v383
      %410 = vmatprep.subr.bf16.mxu0 0
      %411 = vmatpush1.bf16.msra.mxu0 %v382
      %412 = vmatprep.subr.bf16.mxu0 0
      %413 = vmatpush1.bf16.msra.mxu0 %v381
      %414 = vmatprep.subr.bf16.mxu0 0
      %415 = vmatpush2.bf16.msra.mxu0 0
      %416 = vmatprep.subr.bf16.mxu0 0
      %417 = vmatpush2.bf16.msra.mxu0 0
      %418 = vmatprep.subr.bf16.mxu0 0
      %419 = vmatpush2.bf16.msra.mxu0 0
      %420 = vmatprep.subr.bf16.mxu0 0
      %421 = vmatpush2.bf16.msra.mxu0 0
      %422 = vmatprep.subr.bf16.mxu0 0
      %423 = vmatpush2.bf16.msra.mxu0 0
      %424 = vmatprep.subr.bf16.mxu0 0
      %425 = vmatpush2.bf16.msra.mxu0 0
      %426 = vmatprep.subr.bf16.mxu0 0
      %427 = vmatpush2.bf16.msra.mxu0 0
      %428 = vmatprep.subr.bf16.mxu0 0
      %429 = vmatpush2.bf16.msra.mxu0 0
      %430 = vmatprep.mubr.bf16.mxu0 0
      %431 = vmatmul.mubr.bf16.gmra.mxu0 %v390
      %v432 = vpop.f32.mrf.mxu0
      %v433 = vadd.f32 %v338, %v432
      %v434 = vpop.f32.mrf.mxu0
      %v435 = vpop.f32.mrf.mxu0
      %v436 = vadd.f32 %v341, %v435
      %v437 = vpop.f32.mrf.mxu0
      %438 = vmatprep.mubr.bf16.mxu0 0
      %439 = vmatmul.mubr.bf16.gmra.mxu0 %v393
      %v440 = vpop.f32.mrf.mxu0
      %v441 = vadd.f32 %v346, %v440
      %v442 = vpop.f32.mrf.mxu0
      %v443 = vpop.f32.mrf.mxu0
      %v444 = vadd.f32 %v349, %v443
      %v445 = vpop.f32.mrf.mxu0
      %446 = vmatprep.mubr.bf16.mxu0 0
      %447 = vmatmul.mubr.bf16.gmra.mxu0 %v396
      %v448 = vpop.f32.mrf.mxu0
      %v449 = vadd.f32 %v354, %v448
      %v450 = vpop.f32.mrf.mxu0
      %v451 = vpop.f32.mrf.mxu0
      %v452 = vpop.f32.mrf.mxu0
      %453 = vdwg.mxu0
      %v454 = vld [vmem:[%s219] sm:$0xc]
      %v455 = vld [vmem:[%s219 + $0x10] sm:$0xf]
      %s456 = scalar_lea.vmem %s1, 64
      %v457 = vld [vmem:[%s456] sm:$0xf]
      %v458 = vld [vmem:[%s456 + $0x4] sm:$0xf]
      %v459 = vld [vmem:[%s456 + $0x8] sm:$0xf]
      %v460 = vld [vmem:[%s456 + $0xc] sm:$0xf]
      %v461 = vld [vmem:[%s456 + $0x10] sm:$0xf]
      %v462 = vld [vmem:[%s456 + $0x14] sm:$0xf]
      %v463 = vld [vmem:[%s456 + $0x18] sm:$0xf]
      %v464 = vld [vmem:[%s456 + $0x1c] sm:$0xf]
      %v467 = vunpack.c.l.b16 %v454
      %v468 = vunpack.c.l.b16 %v455
      %v469 = vpack.c.b16 %v256, %v467
      %v470 = vpack.c.b16 %v468, %v468
      %vm471 = vcmask 1045504
      %v472 = vrot.slane %v469, 2
      %v473 = vrot.slane %v261, 2
      %v474 = vsel %vm471, %v472, %v473
      %v475 = vrot.slane %v470, 2
      %v476 = vsel %vm471, %v473, %v475
      %v485 = vunpack.c.l.b16 %v457
      %v486 = vunpack.c.l.b16 %v458
      %v487 = vunpack.c.l.b16 %v459
      %v488 = vunpack.c.l.b16 %v460
      %v489 = vunpack.c.l.b16 %v461
      %v490 = vunpack.c.l.b16 %v462
      %v491 = vunpack.c.l.b16 %v463
      %v492 = vunpack.c.l.b16 %v464
      %v493 = vpack.c.b16 %v486, %v485
      %v494 = vpack.c.b16 %v488, %v487
      %v495 = vpack.c.b16 %v490, %v489
      %v496 = vpack.c.b16 %v492, %v491
      %v502 = vsel %vm293, %v474, 0
      %v505 = vsel %vm293, %v476, 0
      %v508 = vsel %vm293, %v475, 0
      %510 = vmatprep.subr.bf16.mxu0 0
      %511 = vmatpush1.bf16.msra.mxu0 0
      %512 = vmatprep.subr.bf16.mxu0 0
      %513 = vmatpush1.bf16.msra.mxu0 0
      %514 = vmatprep.subr.bf16.mxu0 0
      %515 = vmatpush1.bf16.msra.mxu0 0
      %516 = vmatprep.subr.bf16.mxu0 0
      %517 = vmatpush1.bf16.msra.mxu0 0
      %518 = vmatprep.subr.bf16.mxu0 0
      %519 = vmatpush1.bf16.msra.mxu0 %v496
      %520 = vmatprep.subr.bf16.mxu0 0
      %521 = vmatpush1.bf16.msra.mxu0 %v495
      %522 = vmatprep.subr.bf16.mxu0 0
      %523 = vmatpush1.bf16.msra.mxu0 %v494
      %524 = vmatprep.subr.bf16.mxu0 0
      %525 = vmatpush1.bf16.msra.mxu0 %v493
      %526 = vmatprep.subr.bf16.mxu0 0
      %527 = vmatpush2.bf16.msra.mxu0 0
      %528 = vmatprep.subr.bf16.mxu0 0
      %529 = vmatpush2.bf16.msra.mxu0 0
      %530 = vmatprep.subr.bf16.mxu0 0
      %531 = vmatpush2.bf16.msra.mxu0 0
      %532 = vmatprep.subr.bf16.mxu0 0
      %533 = vmatpush2.bf16.msra.mxu0 0
      %534 = vmatprep.subr.bf16.mxu0 0
      %535 = vmatpush2.bf16.msra.mxu0 0
      %536 = vmatprep.subr.bf16.mxu0 0
      %537 = vmatpush2.bf16.msra.mxu0 0
      %538 = vmatprep.subr.bf16.mxu0 0
      %539 = vmatpush2.bf16.msra.mxu0 0
      %540 = vmatprep.subr.bf16.mxu0 0
      %541 = vmatpush2.bf16.msra.mxu0 0
      %542 = vmatprep.mubr.bf16.mxu0 0
      %543 = vmatmul.mubr.bf16.gmra.mxu0 %v502
      %v544 = vpop.f32.mrf.mxu0
      %v545 = vadd.f32 0.0, %v544
      %v546 = vpop.f32.mrf.mxu0
      %v547 = vpop.f32.mrf.mxu0
      %v548 = vadd.f32 0.0, %v547
      %v549 = vpop.f32.mrf.mxu0
      %550 = vmatprep.mubr.bf16.mxu0 0
      %551 = vmatmul.mubr.bf16.gmra.mxu0 %v505
      %v552 = vpop.f32.mrf.mxu0
      %v553 = vadd.f32 0.0, %v552
      %v554 = vpop.f32.mrf.mxu0
      %v555 = vpop.f32.mrf.mxu0
      %v556 = vadd.f32 0.0, %v555
      %v557 = vpop.f32.mrf.mxu0
      %558 = vmatprep.mubr.bf16.mxu0 0
      %559 = vmatmul.mubr.bf16.gmra.mxu0 %v508
      %v560 = vpop.f32.mrf.mxu0
      %v561 = vadd.f32 0.0, %v560
      %v562 = vpop.f32.mrf.mxu0
      %v563 = vpop.f32.mrf.mxu0
      %v564 = vpop.f32.mrf.mxu0
      %565 = vdwg.mxu0
      %v566 = vadd.f32 %v433, %v545
      %v567 = vadd.f32 %v436, %v548
      %v568 = vadd.f32 %v441, %v553
      %v569 = vadd.f32 %v444, %v556
      %v570 = vadd.f32 %v449, %v561
      %v571 = vld [vmem:[%s219] sm:$0x8]
      %v572 = vld [vmem:[%s219 + $0x4] sm:$0xf]
      %v573 = vld [vmem:[%s219 + $0x8] sm:$0xf]
      %v574 = vld [vmem:[%s219 + $0xc] sm:$0xf]
      %v575 = vld [vmem:[%s219 + $0x10] sm:$0xf]
      %v576 = vld [vmem:[%s219 + $0x14] sm:$0x1]
      %s577 = scalar_lea.vmem %s1, 96
      %v578 = vld [vmem:[%s577] sm:$0xf]
      %v579 = vld [vmem:[%s577 + $0x4] sm:$0xf]
      %v580 = vld [vmem:[%s577 + $0x8] sm:$0xf]
      %v581 = vld [vmem:[%s577 + $0xc] sm:$0xf]
      %v582 = vld [vmem:[%s577 + $0x10] sm:$0xf]
      %v583 = vld [vmem:[%s577 + $0x14] sm:$0xf]
      %v584 = vld [vmem:[%s577 + $0x18] sm:$0xf]
      %v585 = vld [vmem:[%s577 + $0x1c] sm:$0xf]
      %v592 = vunpack.c.l.b16 %v571
      %v593 = vunpack.c.l.b16 %v572
      %v594 = vunpack.c.l.b16 %v573
      %v595 = vunpack.c.l.b16 %v574
      %v596 = vunpack.c.l.b16 %v575
      %v597 = vunpack.c.l.b16 %v576
      %v598 = vpack.c.b16 %v593, %v592
      %v599 = vpack.c.b16 %v595, %v594
      %v600 = vpack.c.b16 %v597, %v596
      %vm601 = vcmask 1044480
      %v602 = vrot.slane %v598, 3
      %v603 = vrot.slane %v599, 3
      %v604 = vsel %vm601, %v602, %v603
      %v605 = vrot.slane %v600, 3
      %v606 = vsel %vm601, %v603, %v605
      %v615 = vunpack.c.l.b16 %v578
      %v616 = vunpack.c.l.b16 %v579
      %v617 = vunpack.c.l.b16 %v580
      %v618 = vunpack.c.l.b16 %v581
      %v619 = vunpack.c.l.b16 %v582
      %v620 = vunpack.c.l.b16 %v583
      %v621 = vunpack.c.l.b16 %v584
      %v622 = vunpack.c.l.b16 %v585
      %v623 = vpack.c.b16 %v616, %v615
      %v624 = vpack.c.b16 %v618, %v617
      %v625 = vpack.c.b16 %v620, %v619
      %v626 = vpack.c.b16 %v622, %v621
      %v632 = vsel %vm293, %v604, 0
      %v635 = vsel %vm293, %v606, 0
      %v638 = vsel %vm293, %v605, 0
      %640 = vmatprep.subr.bf16.mxu0 0
      %641 = vmatpush1.bf16.msra.mxu0 0
      %642 = vmatprep.subr.bf16.mxu0 0
      %643 = vmatpush1.bf16.msra.mxu0 0
      %644 = vmatprep.subr.bf16.mxu0 0
      %645 = vmatpush1.bf16.msra.mxu0 0
      %646 = vmatprep.subr.bf16.mxu0 0
      %647 = vmatpush1.bf16.msra.mxu0 0
      %648 = vmatprep.subr.bf16.mxu0 0
      %649 = vmatpush1.bf16.msra.mxu0 %v626
      %650 = vmatprep.subr.bf16.mxu0 0
      %651 = vmatpush1.bf16.msra.mxu0 %v625
      %652 = vmatprep.subr.bf16.mxu0 0
      %653 = vmatpush1.bf16.msra.mxu0 %v624
      %654 = vmatprep.subr.bf16.mxu0 0
      %655 = vmatpush1.bf16.msra.mxu0 %v623
      %656 = vmatprep.subr.bf16.mxu0 0
      %657 = vmatpush2.bf16.msra.mxu0 0
      %658 = vmatprep.subr.bf16.mxu0 0
      %659 = vmatpush2.bf16.msra.mxu0 0
      %660 = vmatprep.subr.bf16.mxu0 0
      %661 = vmatpush2.bf16.msra.mxu0 0
      %662 = vmatprep.subr.bf16.mxu0 0
      %663 = vmatpush2.bf16.msra.mxu0 0
      %664 = vmatprep.subr.bf16.mxu0 0
      %665 = vmatpush2.bf16.msra.mxu0 0
      %666 = vmatprep.subr.bf16.mxu0 0
      %667 = vmatpush2.bf16.msra.mxu0 0
      %668 = vmatprep.subr.bf16.mxu0 0
      %669 = vmatpush2.bf16.msra.mxu0 0
      %670 = vmatprep.subr.bf16.mxu0 0
      %671 = vmatpush2.bf16.msra.mxu0 0
      %672 = vmatprep.mubr.bf16.mxu0 0
      %673 = vmatmul.mubr.bf16.gmra.mxu0 %v632
      %v674 = vpop.f32.mrf.mxu0
      %v675 = vadd.f32 0.0, %v674
      %v676 = vpop.f32.mrf.mxu0
      %v677 = vpop.f32.mrf.mxu0
      %v678 = vadd.f32 0.0, %v677
      %v679 = vpop.f32.mrf.mxu0
      %680 = vmatprep.mubr.bf16.mxu0 0
      %681 = vmatmul.mubr.bf16.gmra.mxu0 %v635
      %v682 = vpop.f32.mrf.mxu0
      %v683 = vadd.f32 0.0, %v682
      %v684 = vpop.f32.mrf.mxu0
      %v685 = vpop.f32.mrf.mxu0
      %v686 = vadd.f32 0.0, %v685
      %v687 = vpop.f32.mrf.mxu0
      %688 = vmatprep.mubr.bf16.mxu0 0
      %689 = vmatmul.mubr.bf16.gmra.mxu0 %v638
      %v690 = vpop.f32.mrf.mxu0
      %v691 = vadd.f32 0.0, %v690
      %v692 = vpop.f32.mrf.mxu0
      %v693 = vpop.f32.mrf.mxu0
      %v694 = vpop.f32.mrf.mxu0
      %695 = vdwg.mxu0
      %v696 = vadd.f32 %v566, %v675
      %v697 = vadd.f32 %v567, %v678
      %v698 = vadd.f32 %v568, %v683
      %v699 = vadd.f32 %v569, %v686
      %v700 = vadd.f32 %v570, %v691
      %v701 = vld [vmem:[%s219 + $0x14] sm:$0x3]
      %s702 = scalar_lea.vmem %s1, 128
      %v703 = vld [vmem:[%s702] sm:$0xf]
      %v704 = vld [vmem:[%s702 + $0x4] sm:$0xf]
      %v705 = vld [vmem:[%s702 + $0x8] sm:$0xf]
      %v706 = vld [vmem:[%s702 + $0xc] sm:$0xf]
      %v707 = vld [vmem:[%s702 + $0x10] sm:$0xf]
      %v708 = vld [vmem:[%s702 + $0x14] sm:$0xf]
      %v709 = vld [vmem:[%s702 + $0x18] sm:$0xf]
      %v710 = vld [vmem:[%s702 + $0x1c] sm:$0xf]
      %v712 = vunpack.c.l.b16 %v701
      %v713 = vpack.c.b16 %v594, %v593
      %v714 = vpack.c.b16 %v596, %v595
      %v715 = vpack.c.b16 %v712, %v712
      %v724 = vunpack.c.l.b16 %v703
      %v725 = vunpack.c.l.b16 %v704
      %v726 = vunpack.c.l.b16 %v705
      %v727 = vunpack.c.l.b16 %v706
      %v728 = vunpack.c.l.b16 %v707
      %v729 = vunpack.c.l.b16 %v708
      %v730 = vunpack.c.l.b16 %v709
      %v731 = vunpack.c.l.b16 %v710
      %v732 = vpack.c.b16 %v725, %v724
      %v733 = vpack.c.b16 %v727, %v726
      %v734 = vpack.c.b16 %v729, %v728
      %v735 = vpack.c.b16 %v731, %v730
      %v741 = vsel %vm293, %v713, 0
      %v744 = vsel %vm293, %v714, 0
      %v747 = vsel %vm293, %v715, 0
      %749 = vmatprep.subr.bf16.mxu0 0
      %750 = vmatpush1.bf16.msra.mxu0 0
      %751 = vmatprep.subr.bf16.mxu0 0
      %752 = vmatpush1.bf16.msra.mxu0 0
      %753 = vmatprep.subr.bf16.mxu0 0
      %754 = vmatpush1.bf16.msra.mxu0 0
      %755 = vmatprep.subr.bf16.mxu0 0
      %756 = vmatpush1.bf16.msra.mxu0 0
      %757 = vmatprep.subr.bf16.mxu0 0
      %758 = vmatpush1.bf16.msra.mxu0 %v735
      %759 = vmatprep.subr.bf16.mxu0 0
      %760 = vmatpush1.bf16.msra.mxu0 %v734
      %761 = vmatprep.subr.bf16.mxu0 0
      %762 = vmatpush1.bf16.msra.mxu0 %v733
      %763 = vmatprep.subr.bf16.mxu0 0
      %764 = vmatpush1.bf16.msra.mxu0 %v732
      %765 = vmatprep.subr.bf16.mxu0 0
      %766 = vmatpush2.bf16.msra.mxu0 0
      %767 = vmatprep.subr.bf16.mxu0 0
      %768 = vmatpush2.bf16.msra.mxu0 0
      %769 = vmatprep.subr.bf16.mxu0 0
      %770 = vmatpush2.bf16.msra.mxu0 0
      %771 = vmatprep.subr.bf16.mxu0 0
      %772 = vmatpush2.bf16.msra.mxu0 0
      %773 = vmatprep.subr.bf16.mxu0 0
      %774 = vmatpush2.bf16.msra.mxu0 0
      %775 = vmatprep.subr.bf16.mxu0 0
      %776 = vmatpush2.bf16.msra.mxu0 0
      %777 = vmatprep.subr.bf16.mxu0 0
      %778 = vmatpush2.bf16.msra.mxu0 0
      %779 = vmatprep.subr.bf16.mxu0 0
      %780 = vmatpush2.bf16.msra.mxu0 0
      %781 = vmatprep.mubr.bf16.mxu0 0
      %782 = vmatmul.mubr.bf16.gmra.mxu0 %v741
      %v783 = vpop.f32.mrf.mxu0
      %v784 = vadd.f32 0.0, %v783
      %v785 = vpop.f32.mrf.mxu0
      %v786 = vpop.f32.mrf.mxu0
      %v787 = vadd.f32 0.0, %v786
      %v788 = vpop.f32.mrf.mxu0
      %789 = vmatprep.mubr.bf16.mxu0 0
      %790 = vmatmul.mubr.bf16.gmra.mxu0 %v744
      %v791 = vpop.f32.mrf.mxu0
      %v792 = vadd.f32 0.0, %v791
      %v793 = vpop.f32.mrf.mxu0
      %v794 = vpop.f32.mrf.mxu0
      %v795 = vadd.f32 0.0, %v794
      %v796 = vpop.f32.mrf.mxu0
      %797 = vmatprep.mubr.bf16.mxu0 0
      %798 = vmatmul.mubr.bf16.gmra.mxu0 %v747
      %v799 = vpop.f32.mrf.mxu0
      %v800 = vadd.f32 0.0, %v799
      %v801 = vpop.f32.mrf.mxu0
      %v802 = vpop.f32.mrf.mxu0
      %v803 = vpop.f32.mrf.mxu0
      %804 = vdwg.mxu0
      %v805 = vadd.f32 %v696, %v784
      %v806 = vadd.f32 %v697, %v787
      %v807 = vadd.f32 %v698, %v792
      %v808 = vadd.f32 %v699, %v795
      %v809 = vadd.f32 %v700, %v800
      %v810 = vld [vmem:[%s2] sm:$0x1]
      %v812 = vlaneseq
      %v813 = vshrl.u32 %v812, 7
      %v814 = vsub.s32 0, %v813
      %v815 = vrot.slane %v810, %v814
      %v817 = vadd.f32 %v805, %v815
      %v818 = vadd.f32 %v806, %v815
      %v819 = vadd.f32 %v807, %v815
      %v820 = vadd.f32 %v808, %v815
      %v821 = vadd.f32 %v809, %v815
      %v822 = vmax.f32 %v817, 0.0
      %v823 = vmax.f32 %v818, 0.0
      %v824 = vmax.f32 %v819, 0.0
      %v825 = vmax.f32 %v820, 0.0
      %v826 = vmax.f32 %v821, 0.0
      %v827 = vld [vmem:[%s3] sm:$0x1]
      %v829 = vlaneseq
      %v830 = vshrl.u32 %v829, 7
      %v831 = vsub.s32 0, %v830
      %v832 = vrot.slane %v827, %v831
      %v834 = vmul.f32 %v822, %v832
      %v835 = vmul.f32 %v823, %v832
      %v836 = vmul.f32 %v824, %v832
      %v837 = vmul.f32 %v825, %v832
      %v838 = vmul.f32 %v826, %v832
      %v839 = vld [vmem:[%s4] sm:$0x1]
      %v841 = vlaneseq
      %v842 = vshrl.u32 %v841, 7
      %v843 = vsub.s32 0, %v842
      %v844 = vrot.slane %v839, %v843
      %v846 = vadd.f32 %v834, %v844
      %v847 = vadd.f32 %v835, %v844
      %v848 = vadd.f32 %v836, %v844
      %v849 = vadd.f32 %v837, %v844
      %v850 = vadd.f32 %v838, %v844
      %v851 = vpack.c.bf16 %v847, %v846
      %v852 = vpack.c.bf16 %v849, %v848
      %v853 = vpack.c.bf16 %v850, %v850
      %v857 = vunpack.c.l.b16 %v851
      %v858 = vunpack.c.h.b16 %v851
      %v859 = vunpack.c.l.b16 %v852
      %v860 = vunpack.c.h.b16 %v852
      %v861 = vunpack.c.l.b16 %v853
      %v862 = vpack.c.b16 %v857, %v857
      %v863 = vpack.c.b16 %v858, %v858
      %v864 = vpack.c.b16 %v859, %v859
      %v865 = vpack.c.b16 %v860, %v860
      %v866 = vpack.c.b16 %v861, %v861
      %vm872 = vcmask 519168
      %873 = vst.msk [vmem:[%s224] sm:$0xf] %vm872, %v862
      %874 = vst.msk [vmem:[%s224 + $0x4] sm:$0xf] %vm872, %v863
      %875 = vst.msk [vmem:[%s224 + $0x8] sm:$0xf] %vm872, %v864
      %876 = vst.msk [vmem:[%s224 + $0xc] sm:$0xf] %vm872, %v865
      %vm877 = vcmask 517120
      %878 = vst.msk [vmem:[%s224 + $0x10] sm:$0x3] %vm877, %v866
      %p879 = scmp.lt.s32.totalorder %s16, 1
      %s880 = scalar_select %p879, %s16, 1
      %s881 = smul.addr %s880, 5
      %s882 = smul.addr %s881, 4
      %s883 = scalar_lea.vmem %s5, %s882
      // Predicated region
      $region41: #{_lambda_.6} parent=39 // pred_check
        %p884 = pneg %p144
      $region42: #{_lambda_.6} parent=39 // pred_check_branch
        %886 = sbr.rel (%p884) target = $region44
      $region43: #{_lambda_.6} parent=39 // pred_region
        _
      $region44: #{_lambda_.6} parent=39 // pred_fallthru
        _
    $region40: #{_lambda_.6} parent=5 // pred_fallthru
      _
    %p887 = scmp.le.s32.totalorder 2, %s11
    // Predicated region
    $region45: #{_lambda_.6} parent=5 // pred_check
      %p888 = pneg %p887
    $region46: #{_lambda_.6} parent=5 // pred_check_branch
      %890 = sbr.rel (%p888) target = $region48
    $region47: #{_lambda_.6} parent=5 // pred_region
      %s891 = ssub.s32 %s11, 2
      // Predicated region
      $region49: #{_lambda_.6} parent=47 // pred_check
        %p892 = pneg %p150
      $region50: #{_lambda_.6} parent=47 // pred_check_branch
        %894 = sbr.rel (%p892) target = $region52
      $region51: #{_lambda_.6} parent=47 // pred_region
        %p895 = scmp.lt.s32.totalorder %s17, 1
        %s896 = scalar_select %p895, %s17, 1
        %s897 = smul.addr %s896, 5
        %s898 = smul.addr %s897, 4
        %s899 = scalar_lea.vmem %s5, %s898
      $region52: #{_lambda_.6} parent=47 // pred_fallthru
        _
    $region48: #{_lambda_.6} parent=5 // pred_fallthru
      _
  $region6: #{_lambda_.6} parent=0 // loop_footer
    %s15 = sadd.s32 1, %s11
  $region7: #{_lambda_.6} parent=0 // loop_footer_branch
    %10 = sbr.rel target = $region3
  $region8: #{_lambda_.6} parent=0 // loop_exit
    _

// kernel: _lambda_.7
$region0: #{_lambda_.7}
  #allocation0 [shape = 'u32[]', space=smem, size = 0x4, offset = 0x4, fixed_abs, tag = 'smem constant byte address 0x4 - core index']
  #allocation1 [shape = 'u32[144,128]{1,0:T(1,128)}', space=vmem, size = 0x12000, scoped, tag = 'internal scratch']
  %s0 = inlined_call_operand.vmem [shape: bf16[2,36,64], index: 0, kind: input, shape index: {}]
  %s1 = inlined_call_operand.vmem [shape: bf16[7,64,64], index: 1, kind: input, shape index: {}]
  %s2 = inlined_call_operand.vmem [shape: f32[1,64], index: 2, kind: input, shape index: {}]
  %s3 = inlined_call_operand.vmem [shape: f32[1,64], index: 3, kind: input, shape index: {}]
  %s4 = inlined_call_operand.vmem [shape: f32[1,64], index: 4, kind: input, shape index: {}]
  %s5 = inlined_call_operand.vmem [shape: bf16[2,18,64], index: 5, kind: output, shape index: {}]
  %s6 = sld [smem:[#allocation0]]
  $region53: #{_lambda_.7} parent=0
    _
  %s8 = ssub.s32 1, %s6
  %s9 = scalar_select 0, %s8, %s6
  loop: start=0, step=1, limit=4
  $region2: #{_lambda_.7} parent=0 // loop_pre_header
    _
  $region3: #{_lambda_.7} parent=0 // loop_header
    %s11 = sphi 0, %s15
    %p12 = scmp.ge.s32.totalorder %s11, 4
    %s21 = sphi 0, %s23
    %s24 = sphi 0, %s21
    %s25 = sphi 0, %s24
    %s41 = sphi 0, %s25
    %s45 = sphi 0, %s45
    %s47 = sphi 0, %s45
    %s48 = sphi 0, %s47
    %s62 = sphi 0, %s48
    %s66 = sphi 0, %s66
    %s68 = sphi 0, %s66
    %s69 = sphi 0, %s68
    %s83 = sphi 0, %s69
    %s87 = sphi 0, %s87
    %s89 = sphi 0, %s87
    %s90 = sphi 0, %s89
    %s104 = sphi 0, %s90
    %s108 = sphi 0, %s108
    %s110 = sphi 0, %s108
    %s111 = sphi 0, %s110
    %s125 = sphi 0, %s111
    %s131 = sphi 0, %s133
    %s134 = sphi 0, %s131
    %s135 = sphi 0, %s134
    %s151 = sphi 0, %s135
  $region4: #{_lambda_.7} parent=0 // loop_header_branch
    %14 = sbr.rel (%p12) target = $region8
  $region5: #{_lambda_.7} parent=0 // loop_body
    %s16 = ssub.s32 %s11, 1
    %s17 = ssub.s32 %s11, 2
    %s18 = sadd.s32 %s11, 1
    %s19 = ssub.s32 %s11, %s18
    %p20 = scmp.eq.s32.totalorder %s19, 0
    %s22 = sadd.s32 %s21, 1
    %s23 = scalar_select %p20, %s21, %s22
    %p26 = pneg %p20
    %p27 = scmp.eq.s32.totalorder %s11, 1
    %p28 = por %p26, %p27
    %p29 = scmp.ne.s32.totalorder %s21, %s24
    %p30 = scmp.eq.s32.totalorder %s11, 0
    %p31 = por %p29, %p30
    %p32 = scmp.ne.s32.totalorder %s21, %s24
    %p33 = scmp.eq.s32.totalorder %s16, 1
    %p34 = por %p32, %p33
    %p35 = scmp.ne.s32.totalorder %s24, %s25
    %p36 = scmp.eq.s32.totalorder %s16, 0
    %p37 = por %p35, %p36
    %p38 = scmp.ne.s32.totalorder %s24, %s25
    %p39 = scmp.eq.s32.totalorder %s17, 1
    %p40 = por %p38, %p39
    %p42 = scmp.ne.s32.totalorder %s25, %s41
    %p43 = scmp.eq.s32.totalorder %s17, 0
    %p44 = por %p42, %p43
    %s46 = sadd.s32 %s45, 1
    %p49 = scmp.eq.s32.totalorder %s11, 1
    %p50 = scmp.ne.s32.totalorder %s45, %s47
    %p51 = scmp.eq.s32.totalorder %s11, 0
    %p52 = por %p50, %p51
    %p53 = scmp.ne.s32.totalorder %s45, %s47
    %p54 = scmp.eq.s32.totalorder %s16, 1
    %p55 = por %p53, %p54
    %p56 = scmp.ne.s32.totalorder %s47, %s48
    %p57 = scmp.eq.s32.totalorder %s16, 0
    %p58 = por %p56, %p57
    %p59 = scmp.ne.s32.totalorder %s47, %s48
    %p60 = scmp.eq.s32.totalorder %s17, 1
    %p61 = por %p59, %p60
    %p63 = scmp.ne.s32.totalorder %s48, %s62
    %p64 = scmp.eq.s32.totalorder %s17, 0
    %p65 = por %p63, %p64
    %s67 = sadd.s32 %s66, 1
    %p70 = scmp.eq.s32.totalorder %s11, 1
    %p71 = scmp.ne.s32.totalorder %s66, %s68
    %p72 = scmp.eq.s32.totalorder %s11, 0
    %p73 = por %p71, %p72
    %p74 = scmp.ne.s32.totalorder %s66, %s68
    %p75 = scmp.eq.s32.totalorder %s16, 1
    %p76 = por %p74, %p75
    %p77 = scmp.ne.s32.totalorder %s68, %s69
    %p78 = scmp.eq.s32.totalorder %s16, 0
    %p79 = por %p77, %p78
    %p80 = scmp.ne.s32.totalorder %s68, %s69
    %p81 = scmp.eq.s32.totalorder %s17, 1
    %p82 = por %p80, %p81
    %p84 = scmp.ne.s32.totalorder %s69, %s83
    %p85 = scmp.eq.s32.totalorder %s17, 0
    %p86 = por %p84, %p85
    %s88 = sadd.s32 %s87, 1
    %p91 = scmp.eq.s32.totalorder %s11, 1
    %p92 = scmp.ne.s32.totalorder %s87, %s89
    %p93 = scmp.eq.s32.totalorder %s11, 0
    %p94 = por %p92, %p93
    %p95 = scmp.ne.s32.totalorder %s87, %s89
    %p96 = scmp.eq.s32.totalorder %s16, 1
    %p97 = por %p95, %p96
    %p98 = scmp.ne.s32.totalorder %s89, %s90
    %p99 = scmp.eq.s32.totalorder %s16, 0
    %p100 = por %p98, %p99
    %p101 = scmp.ne.s32.totalorder %s89, %s90
    %p102 = scmp.eq.s32.totalorder %s17, 1
    %p103 = por %p101, %p102
    %p105 = scmp.ne.s32.totalorder %s90, %s104
    %p106 = scmp.eq.s32.totalorder %s17, 0
    %p107 = por %p105, %p106
    %s109 = sadd.s32 %s108, 1
    %p112 = scmp.eq.s32.totalorder %s11, 1
    %p113 = scmp.ne.s32.totalorder %s108, %s110
    %p114 = scmp.eq.s32.totalorder %s11, 0
    %p115 = por %p113, %p114
    %p116 = scmp.ne.s32.totalorder %s108, %s110
    %p117 = scmp.eq.s32.totalorder %s16, 1
    %p118 = por %p116, %p117
    %p119 = scmp.ne.s32.totalorder %s110, %s111
    %p120 = scmp.eq.s32.totalorder %s16, 0
    %p121 = por %p119, %p120
    %p122 = scmp.ne.s32.totalorder %s110, %s111
    %p123 = scmp.eq.s32.totalorder %s17, 1
    %p124 = por %p122, %p123
    %p126 = scmp.ne.s32.totalorder %s111, %s125
    %p127 = scmp.eq.s32.totalorder %s17, 0
    %p128 = por %p126, %p127
    %s129 = ssub.s32 %s11, %s18
    %p130 = scmp.eq.s32.totalorder %s129, 0
    %s132 = sadd.s32 %s131, 1
    %s133 = scalar_select %p130, %s131, %s132
    %p136 = pneg %p130
    %p137 = scmp.eq.s32.totalorder %s11, 1
    %p138 = por %p136, %p137
    %p139 = scmp.ne.s32.totalorder %s131, %s134
    %p140 = scmp.eq.s32.totalorder %s11, 0
    %p141 = por %p139, %p140
    %p142 = scmp.ne.s32.totalorder %s131, %s134
    %p143 = scmp.eq.s32.totalorder %s16, 1
    %p144 = por %p142, %p143
    %p145 = scmp.ne.s32.totalorder %s134, %s135
    %p146 = scmp.eq.s32.totalorder %s16, 0
    %p147 = por %p145, %p146
    %p148 = scmp.ne.s32.totalorder %s134, %s135
    %p149 = scmp.eq.s32.totalorder %s17, 1
    %p150 = por %p148, %p149
    %p152 = scmp.ne.s32.totalorder %s135, %s151
    %p153 = scmp.eq.s32.totalorder %s17, 0
    %p154 = por %p152, %p153
    %p155 = scmp.le.s32.totalorder 1, %s11
    %p156 = scmp.lt.s32.totalorder %s11, 3
    %p157 = pnand %p155, %p156
    %p158 = pneg %p157
    // Predicated region
    $region9: #{_lambda_.7} parent=5 // pred_check
      _
    $region10: #{_lambda_.7} parent=5 // pred_check_branch
      %160 = sbr.rel (%p157) target = $region12
    $region11: #{_lambda_.7} parent=5 // pred_region
      %s161 = ssub.s32 %s11, 1
      // Predicated region
      $region13: #{_lambda_.7} parent=11 // pred_check
        %p162 = pneg %p58
      $region14: #{_lambda_.7} parent=11 // pred_check_branch
        %164 = sbr.rel (%p162) target = $region16
      $region15: #{_lambda_.7} parent=11 // pred_region
        _
      $region16: #{_lambda_.7} parent=11 // pred_fallthru
        _
      // Predicated region
      $region17: #{_lambda_.7} parent=11 // pred_check
        %p165 = pneg %p79
      $region18: #{_lambda_.7} parent=11 // pred_check_branch
        %167 = sbr.rel (%p165) target = $region20
      $region19: #{_lambda_.7} parent=11 // pred_region
        _
      $region20: #{_lambda_.7} parent=11 // pred_fallthru
        _
      // Predicated region
      $region21: #{_lambda_.7} parent=11 // pred_check
        %p168 = pneg %p100
      $region22: #{_lambda_.7} parent=11 // pred_check_branch
        %170 = sbr.rel (%p168) target = $region24
      $region23: #{_lambda_.7} parent=11 // pred_region
        _
      $region24: #{_lambda_.7} parent=11 // pred_fallthru
        _
      // Predicated region
      $region25: #{_lambda_.7} parent=11 // pred_check
        %p171 = pneg %p121
      $region26: #{_lambda_.7} parent=11 // pred_check_branch
        %173 = sbr.rel (%p171) target = $region28
      $region27: #{_lambda_.7} parent=11 // pred_region
        _
      $region28: #{_lambda_.7} parent=11 // pred_fallthru
        _
    $region12: #{_lambda_.7} parent=5 // pred_fallthru
      _
    %p174 = scmp.lt.s32.totalorder %s11, 2
    // Predicated region
    $region29: #{_lambda_.7} parent=5 // pred_check
      %p175 = pneg %p174
    $region30: #{_lambda_.7} parent=5 // pred_check_branch
      %177 = sbr.rel (%p175) target = $region32
    $region31: #{_lambda_.7} parent=5 // pred_region
      // Predicated region
      $region33: #{_lambda_.7} parent=31 // pred_check
        %p178 = pneg %p31
      $region34: #{_lambda_.7} parent=31 // pred_check_branch
        %180 = sbr.rel (%p178) target = $region36
      $region35: #{_lambda_.7} parent=31 // pred_region
        %p181 = scmp.lt.s32.totalorder %s11, 1
        %s182 = scalar_select %p181, %s11, 1
        %s183 = smul.addr %s182, 5
        %s184 = smul.addr %s183, 4
        %s185 = scalar_lea.vmem %s0, %s184
      $region36: #{_lambda_.7} parent=31 // pred_fallthru
        _
    $region32: #{_lambda_.7} parent=5 // pred_fallthru
      _
    %p186 = scmp.le.s32.totalorder 1, %s11
    %p187 = scmp.lt.s32.totalorder %s11, 3
    %p188 = pnand %p186, %p187
    %p189 = pneg %p188
    // Predicated region
    $region37: #{_lambda_.7} parent=5 // pred_check
      _
    $region38: #{_lambda_.7} parent=5 // pred_check_branch
      %191 = sbr.rel (%p188) target = $region40
    $region39: #{_lambda_.7} parent=5 // pred_region
      %s192 = ssub.s32 %s11, 1
      %p193 = scmp.lt.s32.totalorder %s16, 1
      %s194 = scalar_select %p193, %s16, 1
      %s195 = smul.addr %s194, 5
      %s196 = smul.addr %s195, 4
      %s197 = scalar_lea.vmem %s0, %s196
      %p198 = pneg %p37
      %p199 = pneg %p34
      %p200 = pneg %p58
      %p201 = pneg %p55
      %p202 = pneg %p79
      %p203 = pneg %p76
      %p204 = pneg %p100
      %p205 = pneg %p97
      %p206 = pneg %p121
      %p207 = pneg %p118
      %p208 = pneg %p147
      %p209 = pneg %p144
      %p210 = scmp.lt.s32.totalorder %s16, 1
      %s211 = scalar_select %p210, %s16, 1
      %s212 = smul.addr %s211, 3
      %s213 = smul.addr %s212, 4
      %s214 = scalar_lea.vmem %s5, %s213
      %p215 = scmp.lt.s32.totalorder %s16, 1
      %s216 = scalar_select %p215, %s16, 1
      %s217 = smul.addr %s216, 5
      %s218 = smul.addr %s217, 4
      %s219 = scalar_lea.vmem %s0, %s218
      %p220 = scmp.lt.s32.totalorder %s16, 1
      %s221 = scalar_select %p220, %s16, 1
      %s222 = smul.addr %s221, 3
      %s223 = smul.addr %s222, 4
      %s224 = scalar_lea.vmem %s5, %s223
      %v226 = vld [vmem:[%s219] sm:$0xf]
      %v227 = vld [vmem:[%s219 + $0x4] sm:$0xf]
      %v228 = vld [vmem:[%s219 + $0x8] sm:$0x1]
      %v229 = vld [vmem:[%s1] sm:$0xf]
      %v230 = vld [vmem:[%s1 + $0x4] sm:$0xf]
      %v231 = vld [vmem:[%s1 + $0x8] sm:$0xf]
      %v232 = vld [vmem:[%s1 + $0xc] sm:$0xf]
      %v233 = vld [vmem:[%s1 + $0x10] sm:$0xf]
      %v234 = vld [vmem:[%s1 + $0x14] sm:$0xf]
      %v235 = vld [vmem:[%s1 + $0x18] sm:$0xf]
      %v236 = vld [vmem:[%s1 + $0x1c] sm:$0xf]
      %v237 = vld [vmem:[%s219] sm:$0xe]
      %v238 = vld [vmem:[%s219 + $0x8] sm:$0x7]
      %s239 = scalar_lea.vmem %s1, 32
      %v240 = vld [vmem:[%s239] sm:$0xf]
      %v241 = vld [vmem:[%s239 + $0x4] sm:$0xf]
      %v242 = vld [vmem:[%s239 + $0x8] sm:$0xf]
      %v243 = vld [vmem:[%s239 + $0xc] sm:$0xf]
      %v244 = vld [vmem:[%s239 + $0x10] sm:$0xf]
      %v245 = vld [vmem:[%s239 + $0x14] sm:$0xf]
      %v246 = vld [vmem:[%s239 + $0x18] sm:$0xf]
      %v247 = vld [vmem:[%s239 + $0x1c] sm:$0xf]
      %v251 = vunpack.c.l.b16 %v237
      %v252 = vunpack.c.l.b16 %v227
      %v253 = vunpack.c.l.b16 %v238
      %v254 = vpack.c.b16 %v252, %v251
      %v255 = vpack.c.b16 %v253, %v253
      %vm256 = vsmask.f32 6400
      %v258 = vshrl.u32 %v254, 16
      %v260 = vrot.slane %v258, 1
      %v261 = vshll.u32 %v254, 16
      %v263 = vrot.slane %v261, 2
      %v264 = vor.u32 %v260, %v263
      %v266 = vshrl.u32 %v255, 16
      %v268 = vrot.slane %v266, 1
      %v269 = vshll.u32 %v255, 16
      %v271 = vrot.slane %v269, 2
      %v272 = vor.u32 %v268, %v271
      %v273 = vsel %vm256, %v264, %v272
      %v282 = vunpack.c.l.b16 %v240
      %v283 = vunpack.c.l.b16 %v241
      %v284 = vunpack.c.l.b16 %v242
      %v285 = vunpack.c.l.b16 %v243
      %v286 = vunpack.c.l.b16 %v244
      %v287 = vunpack.c.l.b16 %v245
      %v288 = vunpack.c.l.b16 %v246
      %v289 = vunpack.c.l.b16 %v247
      %v290 = vpack.c.b16 %v283, %v282
      %v291 = vpack.c.b16 %v285, %v284
      %v292 = vpack.c.b16 %v287, %v286
      %v293 = vpack.c.b16 %v289, %v288
      %vm298 = vcmask 523264
      %v300 = vsel %vm298, %v273, 0
      %v303 = vsel %vm298, %v272, 0
      %305 = vmatprep.subr.bf16.mxu0 0
      %306 = vmatpush1.bf16.msra.mxu0 0
      %307 = vmatprep.subr.bf16.mxu0 0
      %308 = vmatpush1.bf16.msra.mxu0 0
      %309 = vmatprep.subr.bf16.mxu0 0
      %310 = vmatpush1.bf16.msra.mxu0 0
      %311 = vmatprep.subr.bf16.mxu0 0
      %312 = vmatpush1.bf16.msra.mxu0 0
      %313 = vmatprep.subr.bf16.mxu0 0
      %314 = vmatpush1.bf16.msra.mxu0 %v293
      %315 = vmatprep.subr.bf16.mxu0 0
      %316 = vmatpush1.bf16.msra.mxu0 %v292
      %317 = vmatprep.subr.bf16.mxu0 0
      %318 = vmatpush1.bf16.msra.mxu0 %v291
      %319 = vmatprep.subr.bf16.mxu0 0
      %320 = vmatpush1.bf16.msra.mxu0 %v290
      %321 = vmatprep.subr.bf16.mxu0 0
      %322 = vmatpush2.bf16.msra.mxu0 0
      %323 = vmatprep.subr.bf16.mxu0 0
      %324 = vmatpush2.bf16.msra.mxu0 0
      %325 = vmatprep.subr.bf16.mxu0 0
      %326 = vmatpush2.bf16.msra.mxu0 0
      %327 = vmatprep.subr.bf16.mxu0 0
      %328 = vmatpush2.bf16.msra.mxu0 0
      %329 = vmatprep.subr.bf16.mxu0 0
      %330 = vmatpush2.bf16.msra.mxu0 0
      %331 = vmatprep.subr.bf16.mxu0 0
      %332 = vmatpush2.bf16.msra.mxu0 0
      %333 = vmatprep.subr.bf16.mxu0 0
      %334 = vmatpush2.bf16.msra.mxu0 0
      %335 = vmatprep.subr.bf16.mxu0 0
      %336 = vmatpush2.bf16.msra.mxu0 0
      %337 = vmatprep.mubr.bf16.mxu0 0
      %338 = vmatmul.mubr.bf16.gmra.mxu0 %v300
      %v339 = vpop.f32.mrf.mxu0
      %v340 = vadd.f32 0.0, %v339
      %v341 = vpop.f32.mrf.mxu0
      %v342 = vpop.f32.mrf.mxu0
      %v343 = vadd.f32 0.0, %v342
      %v344 = vpop.f32.mrf.mxu0
      %345 = vmatprep.mubr.bf16.mxu0 0
      %346 = vmatmul.mubr.bf16.gmra.mxu0 %v303
      %v347 = vpop.f32.mrf.mxu0
      %v348 = vadd.f32 0.0, %v347
      %v349 = vpop.f32.mrf.mxu0
      %v350 = vpop.f32.mrf.mxu0
      %v351 = vpop.f32.mrf.mxu0
      %352 = vdwg.mxu0
      %v355 = vunpack.c.l.b16 %v226
      %v356 = vunpack.c.l.b16 %v228
      %v357 = vpack.c.b16 %v252, %v355
      %v358 = vpack.c.b16 %v356, %v356
      %v367 = vunpack.c.l.b16 %v229
      %v368 = vunpack.c.l.b16 %v230
      %v369 = vunpack.c.l.b16 %v231
      %v370 = vunpack.c.l.b16 %v232
      %v371 = vunpack.c.l.b16 %v233
      %v372 = vunpack.c.l.b16 %v234
      %v373 = vunpack.c.l.b16 %v235
      %v374 = vunpack.c.l.b16 %v236
      %v375 = vpack.c.b16 %v368, %v367
      %v376 = vpack.c.b16 %v370, %v369
      %v377 = vpack.c.b16 %v372, %v371
      %v378 = vpack.c.b16 %v374, %v373
      %v384 = vsel %vm298, %v357, 0
      %v387 = vsel %vm298, %v358, 0
      %389 = vmatprep.subr.bf16.mxu0 0
      %390 = vmatpush1.bf16.msra.mxu0 0
      %391 = vmatprep.subr.bf16.mxu0 0
      %392 = vmatpush1.bf16.msra.mxu0 0
      %393 = vmatprep.subr.bf16.mxu0 0
      %394 = vmatpush1.bf16.msra.mxu0 0
      %395 = vmatprep.subr.bf16.mxu0 0
      %396 = vmatpush1.bf16.msra.mxu0 0
      %397 = vmatprep.subr.bf16.mxu0 0
      %398 = vmatpush1.bf16.msra.mxu0 %v378
      %399 = vmatprep.subr.bf16.mxu0 0
      %400 = vmatpush1.bf16.msra.mxu0 %v377
      %401 = vmatprep.subr.bf16.mxu0 0
      %402 = vmatpush1.bf16.msra.mxu0 %v376
      %403 = vmatprep.subr.bf16.mxu0 0
      %404 = vmatpush1.bf16.msra.mxu0 %v375
      %405 = vmatprep.subr.bf16.mxu0 0
      %406 = vmatpush2.bf16.msra.mxu0 0
      %407 = vmatprep.subr.bf16.mxu0 0
      %408 = vmatpush2.bf16.msra.mxu0 0
      %409 = vmatprep.subr.bf16.mxu0 0
      %410 = vmatpush2.bf16.msra.mxu0 0
      %411 = vmatprep.subr.bf16.mxu0 0
      %412 = vmatpush2.bf16.msra.mxu0 0
      %413 = vmatprep.subr.bf16.mxu0 0
      %414 = vmatpush2.bf16.msra.mxu0 0
      %415 = vmatprep.subr.bf16.mxu0 0
      %416 = vmatpush2.bf16.msra.mxu0 0
      %417 = vmatprep.subr.bf16.mxu0 0
      %418 = vmatpush2.bf16.msra.mxu0 0
      %419 = vmatprep.subr.bf16.mxu0 0
      %420 = vmatpush2.bf16.msra.mxu0 0
      %421 = vmatprep.mubr.bf16.mxu0 0
      %422 = vmatmul.mubr.bf16.gmra.mxu0 %v384
      %v423 = vpop.f32.mrf.mxu0
      %v424 = vadd.f32 %v340, %v423
      %v425 = vpop.f32.mrf.mxu0
      %v426 = vpop.f32.mrf.mxu0
      %v427 = vadd.f32 %v343, %v426
      %v428 = vpop.f32.mrf.mxu0
      %429 = vmatprep.mubr.bf16.mxu0 0
      %430 = vmatmul.mubr.bf16.gmra.mxu0 %v387
      %v431 = vpop.f32.mrf.mxu0
      %v432 = vadd.f32 %v348, %v431
      %v433 = vpop.f32.mrf.mxu0
      %v434 = vpop.f32.mrf.mxu0
      %v435 = vpop.f32.mrf.mxu0
      %436 = vdwg.mxu0
      %v437 = vld [vmem:[%s219] sm:$0x8]
      %v438 = vld [vmem:[%s219 + $0x8] sm:$0xf]
      %s439 = scalar_lea.vmem %s1, 64
      %v440 = vld [vmem:[%s439] sm:$0xf]
      %v441 = vld [vmem:[%s439 + $0x4] sm:$0xf]
      %v442 = vld [vmem:[%s439 + $0x8] sm:$0xf]
      %v443 = vld [vmem:[%s439 + $0xc] sm:$0xf]
      %v444 = vld [vmem:[%s439 + $0x10] sm:$0xf]
      %v445 = vld [vmem:[%s439 + $0x14] sm:$0xf]
      %v446 = vld [vmem:[%s439 + $0x18] sm:$0xf]
      %v447 = vld [vmem:[%s439 + $0x1c] sm:$0xf]
      %v450 = vunpack.c.l.b16 %v437
      %v451 = vunpack.c.l.b16 %v438
      %v452 = vpack.c.b16 %v252, %v450
      %v453 = vpack.c.b16 %v451, %v451
      %vm454 = vcmask 1044480
      %v455 = vrot.slane %v452, 3
      %v456 = vrot.slane %v453, 3
      %v457 = vsel %vm454, %v455, %v456
      %v466 = vunpack.c.l.b16 %v440
      %v467 = vunpack.c.l.b16 %v441
      %v468 = vunpack.c.l.b16 %v442
      %v469 = vunpack.c.l.b16 %v443
      %v470 = vunpack.c.l.b16 %v444
      %v471 = vunpack.c.l.b16 %v445
      %v472 = vunpack.c.l.b16 %v446
      %v473 = vunpack.c.l.b16 %v447
      %v474 = vpack.c.b16 %v467, %v466
      %v475 = vpack.c.b16 %v469, %v468
      %v476 = vpack.c.b16 %v471, %v470
      %v477 = vpack.c.b16 %v473, %v472
      %v483 = vsel %vm298, %v457, 0
      %v486 = vsel %vm298, %v456, 0
      %488 = vmatprep.subr.bf16.mxu0 0
      %489 = vmatpush1.bf16.msra.mxu0 0
      %490 = vmatprep.subr.bf16.mxu0 0
      %491 = vmatpush1.bf16.msra.mxu0 0
      %492 = vmatprep.subr.bf16.mxu0 0
      %493 = vmatpush1.bf16.msra.mxu0 0
      %494 = vmatprep.subr.bf16.mxu0 0
      %495 = vmatpush1.bf16.msra.mxu0 0
      %496 = vmatprep.subr.bf16.mxu0 0
      %497 = vmatpush1.bf16.msra.mxu0 %v477
      %498 = vmatprep.subr.bf16.mxu0 0
      %499 = vmatpush1.bf16.msra.mxu0 %v476
      %500 = vmatprep.subr.bf16.mxu0 0
      %501 = vmatpush1.bf16.msra.mxu0 %v475
      %502 = vmatprep.subr.bf16.mxu0 0
      %503 = vmatpush1.bf16.msra.mxu0 %v474
      %504 = vmatprep.subr.bf16.mxu0 0
      %505 = vmatpush2.bf16.msra.mxu0 0
      %506 = vmatprep.subr.bf16.mxu0 0
      %507 = vmatpush2.bf16.msra.mxu0 0
      %508 = vmatprep.subr.bf16.mxu0 0
      %509 = vmatpush2.bf16.msra.mxu0 0
      %510 = vmatprep.subr.bf16.mxu0 0
      %511 = vmatpush2.bf16.msra.mxu0 0
      %512 = vmatprep.subr.bf16.mxu0 0
      %513 = vmatpush2.bf16.msra.mxu0 0
      %514 = vmatprep.subr.bf16.mxu0 0
      %515 = vmatpush2.bf16.msra.mxu0 0
      %516 = vmatprep.subr.bf16.mxu0 0
      %517 = vmatpush2.bf16.msra.mxu0 0
      %518 = vmatprep.subr.bf16.mxu0 0
      %519 = vmatpush2.bf16.msra.mxu0 0
      %520 = vmatprep.mubr.bf16.mxu0 0
      %521 = vmatmul.mubr.bf16.gmra.mxu0 %v483
      %v522 = vpop.f32.mrf.mxu0
      %v523 = vadd.f32 0.0, %v522
      %v524 = vpop.f32.mrf.mxu0
      %v525 = vpop.f32.mrf.mxu0
      %v526 = vadd.f32 0.0, %v525
      %v527 = vpop.f32.mrf.mxu0
      %528 = vmatprep.mubr.bf16.mxu0 0
      %529 = vmatmul.mubr.bf16.gmra.mxu0 %v486
      %v530 = vpop.f32.mrf.mxu0
      %v531 = vadd.f32 0.0, %v530
      %v532 = vpop.f32.mrf.mxu0
      %v533 = vpop.f32.mrf.mxu0
      %v534 = vpop.f32.mrf.mxu0
      %535 = vdwg.mxu0
      %v536 = vadd.f32 %v424, %v523
      %v537 = vadd.f32 %v427, %v526
      %v538 = vadd.f32 %v432, %v531
      %v539 = vld [vmem:[%s219 + $0x4] sm:$0xf]
      %v540 = vld [vmem:[%s219 + $0x8] sm:$0xf]
      %v541 = vld [vmem:[%s219 + $0xc] sm:$0x3]
      %s542 = scalar_lea.vmem %s1, 96
      %v543 = vld [vmem:[%s542] sm:$0xf]
      %v544 = vld [vmem:[%s542 + $0x4] sm:$0xf]
      %v545 = vld [vmem:[%s542 + $0x8] sm:$0xf]
      %v546 = vld [vmem:[%s542 + $0xc] sm:$0xf]
      %v547 = vld [vmem:[%s542 + $0x10] sm:$0xf]
      %v548 = vld [vmem:[%s542 + $0x14] sm:$0xf]
      %v549 = vld [vmem:[%s542 + $0x18] sm:$0xf]
      %v550 = vld [vmem:[%s542 + $0x1c] sm:$0xf]
      %v554 = vunpack.c.l.b16 %v539
      %v555 = vunpack.c.l.b16 %v540
      %v556 = vunpack.c.l.b16 %v541
      %v557 = vpack.c.b16 %v555, %v554
      %v558 = vpack.c.b16 %v556, %v556
      %vm559 = vsmask.f32 7424
      %v561 = vshrl.u32 %v557, 16
      %v563 = vshll.u32 %v557, 16
      %v565 = vrot.slane %v563, 1
      %v566 = vor.u32 %v561, %v565
      %v568 = vshll.u32 %v558, 16
      %v570 = vrot.slane %v568, 1
      %v571 = vsel %vm559, %v566, %v570
      %v572 = vshrl.u32 %v558, 16
      %v574 = vor.u32 %v572, %v570
      %v583 = vunpack.c.l.b16 %v543
      %v584 = vunpack.c.l.b16 %v544
      %v585 = vunpack.c.l.b16 %v545
      %v586 = vunpack.c.l.b16 %v546
      %v587 = vunpack.c.l.b16 %v547
      %v588 = vunpack.c.l.b16 %v548
      %v589 = vunpack.c.l.b16 %v549
      %v590 = vunpack.c.l.b16 %v550
      %v591 = vpack.c.b16 %v584, %v583
      %v592 = vpack.c.b16 %v586, %v585
      %v593 = vpack.c.b16 %v588, %v587
      %v594 = vpack.c.b16 %v590, %v589
      %v600 = vsel %vm298, %v571, 0
      %v603 = vsel %vm298, %v574, 0
      %605 = vmatprep.subr.bf16.mxu0 0
      %606 = vmatpush1.bf16.msra.mxu0 0
      %607 = vmatprep.subr.bf16.mxu0 0
      %608 = vmatpush1.bf16.msra.mxu0 0
      %609 = vmatprep.subr.bf16.mxu0 0
      %610 = vmatpush1.bf16.msra.mxu0 0
      %611 = vmatprep.subr.bf16.mxu0 0
      %612 = vmatpush1.bf16.msra.mxu0 0
      %613 = vmatprep.subr.bf16.mxu0 0
      %614 = vmatpush1.bf16.msra.mxu0 %v594
      %615 = vmatprep.subr.bf16.mxu0 0
      %616 = vmatpush1.bf16.msra.mxu0 %v593
      %617 = vmatprep.subr.bf16.mxu0 0
      %618 = vmatpush1.bf16.msra.mxu0 %v592
      %619 = vmatprep.subr.bf16.mxu0 0
      %620 = vmatpush1.bf16.msra.mxu0 %v591
      %621 = vmatprep.subr.bf16.mxu0 0
      %622 = vmatpush2.bf16.msra.mxu0 0
      %623 = vmatprep.subr.bf16.mxu0 0
      %624 = vmatpush2.bf16.msra.mxu0 0
      %625 = vmatprep.subr.bf16.mxu0 0
      %626 = vmatpush2.bf16.msra.mxu0 0
      %627 = vmatprep.subr.bf16.mxu0 0
      %628 = vmatpush2.bf16.msra.mxu0 0
      %629 = vmatprep.subr.bf16.mxu0 0
      %630 = vmatpush2.bf16.msra.mxu0 0
      %631 = vmatprep.subr.bf16.mxu0 0
      %632 = vmatpush2.bf16.msra.mxu0 0
      %633 = vmatprep.subr.bf16.mxu0 0
      %634 = vmatpush2.bf16.msra.mxu0 0
      %635 = vmatprep.subr.bf16.mxu0 0
      %636 = vmatpush2.bf16.msra.mxu0 0
      %637 = vmatprep.mubr.bf16.mxu0 0
      %638 = vmatmul.mubr.bf16.gmra.mxu0 %v600
      %v639 = vpop.f32.mrf.mxu0
      %v640 = vadd.f32 0.0, %v639
      %v641 = vpop.f32.mrf.mxu0
      %v642 = vpop.f32.mrf.mxu0
      %v643 = vadd.f32 0.0, %v642
      %v644 = vpop.f32.mrf.mxu0
      %645 = vmatprep.mubr.bf16.mxu0 0
      %646 = vmatmul.mubr.bf16.gmra.mxu0 %v603
      %v647 = vpop.f32.mrf.mxu0
      %v648 = vadd.f32 0.0, %v647
      %v649 = vpop.f32.mrf.mxu0
      %v650 = vpop.f32.mrf.mxu0
      %v651 = vpop.f32.mrf.mxu0
      %652 = vdwg.mxu0
      %v653 = vadd.f32 %v536, %v640
      %v654 = vadd.f32 %v537, %v643
      %v655 = vadd.f32 %v538, %v648
      %v656 = vld [vmem:[%s219 + $0x4] sm:$0xc]
      %v657 = vld [vmem:[%s219 + $0xc] sm:$0x7]
      %s658 = scalar_lea.vmem %s1, 128
      %v659 = vld [vmem:[%s658] sm:$0xf]
      %v660 = vld [vmem:[%s658 + $0x4] sm:$0xf]
      %v661 = vld [vmem:[%s658 + $0x8] sm:$0xf]
      %v662 = vld [vmem:[%s658 + $0xc] sm:$0xf]
      %v663 = vld [vmem:[%s658 + $0x10] sm:$0xf]
      %v664 = vld [vmem:[%s658 + $0x14] sm:$0xf]
      %v665 = vld [vmem:[%s658 + $0x18] sm:$0xf]
      %v666 = vld [vmem:[%s658 + $0x1c] sm:$0xf]
      %v669 = vunpack.c.l.b16 %v656
      %v670 = vunpack.c.l.b16 %v657
      %v671 = vpack.c.b16 %v555, %v669
      %v672 = vpack.c.b16 %v670, %v670
      %vm673 = vcmask 1045504
      %v674 = vrot.slane %v671, 2
      %v675 = vrot.slane %v672, 2
      %v676 = vsel %vm673, %v674, %v675
      %v685 = vunpack.c.l.b16 %v659
      %v686 = vunpack.c.l.b16 %v660
      %v687 = vunpack.c.l.b16 %v661
      %v688 = vunpack.c.l.b16 %v662
      %v689 = vunpack.c.l.b16 %v663
      %v690 = vunpack.c.l.b16 %v664
      %v691 = vunpack.c.l.b16 %v665
      %v692 = vunpack.c.l.b16 %v666
      %v693 = vpack.c.b16 %v686, %v685
      %v694 = vpack.c.b16 %v688, %v687
      %v695 = vpack.c.b16 %v690, %v689
      %v696 = vpack.c.b16 %v692, %v691
      %v702 = vsel %vm298, %v676, 0
      %v705 = vsel %vm298, %v675, 0
      %707 = vmatprep.subr.bf16.mxu0 0
      %708 = vmatpush1.bf16.msra.mxu0 0
      %709 = vmatprep.subr.bf16.mxu0 0
      %710 = vmatpush1.bf16.msra.mxu0 0
      %711 = vmatprep.subr.bf16.mxu0 0
      %712 = vmatpush1.bf16.msra.mxu0 0
      %713 = vmatprep.subr.bf16.mxu0 0
      %714 = vmatpush1.bf16.msra.mxu0 0
      %715 = vmatprep.subr.bf16.mxu0 0
      %716 = vmatpush1.bf16.msra.mxu0 %v696
      %717 = vmatprep.subr.bf16.mxu0 0
      %718 = vmatpush1.bf16.msra.mxu0 %v695
      %719 = vmatprep.subr.bf16.mxu0 0
      %720 = vmatpush1.bf16.msra.mxu0 %v694
      %721 = vmatprep.subr.bf16.mxu0 0
      %722 = vmatpush1.bf16.msra.mxu0 %v693
      %723 = vmatprep.subr.bf16.mxu0 0
      %724 = vmatpush2.bf16.msra.mxu0 0
      %725 = vmatprep.subr.bf16.mxu0 0
      %726 = vmatpush2.bf16.msra.mxu0 0
      %727 = vmatprep.subr.bf16.mxu0 0
      %728 = vmatpush2.bf16.msra.mxu0 0
      %729 = vmatprep.subr.bf16.mxu0 0
      %730 = vmatpush2.bf16.msra.mxu0 0
      %731 = vmatprep.subr.bf16.mxu0 0
      %732 = vmatpush2.bf16.msra.mxu0 0
      %733 = vmatprep.subr.bf16.mxu0 0
      %734 = vmatpush2.bf16.msra.mxu0 0
      %735 = vmatprep.subr.bf16.mxu0 0
      %736 = vmatpush2.bf16.msra.mxu0 0
      %737 = vmatprep.subr.bf16.mxu0 0
      %738 = vmatpush2.bf16.msra.mxu0 0
      %739 = vmatprep.mubr.bf16.mxu0 0
      %740 = vmatmul.mubr.bf16.gmra.mxu0 %v702
      %v741 = vpop.f32.mrf.mxu0
      %v742 = vadd.f32 0.0, %v741
      %v743 = vpop.f32.mrf.mxu0
      %v744 = vpop.f32.mrf.mxu0
      %v745 = vadd.f32 0.0, %v744
      %v746 = vpop.f32.mrf.mxu0
      %747 = vmatprep.mubr.bf16.mxu0 0
      %748 = vmatmul.mubr.bf16.gmra.mxu0 %v705
      %v749 = vpop.f32.mrf.mxu0
      %v750 = vadd.f32 0.0, %v749
      %v751 = vpop.f32.mrf.mxu0
      %v752 = vpop.f32.mrf.mxu0
      %v753 = vpop.f32.mrf.mxu0
      %754 = vdwg.mxu0
      %v755 = vadd.f32 %v653, %v742
      %v756 = vadd.f32 %v654, %v745
      %v757 = vadd.f32 %v655, %v750
      %v758 = vld [vmem:[%s219 + $0x4] sm:$0x8]
      %v759 = vld [vmem:[%s219 + $0x8] sm:$0xf]
      %v760 = vld [vmem:[%s219 + $0xc] sm:$0xf]
      %v761 = vld [vmem:[%s219 + $0x10] sm:$0x1]
      %s762 = scalar_lea.vmem %s1, 160
      %v763 = vld [vmem:[%s762] sm:$0xf]
      %v764 = vld [vmem:[%s762 + $0x4] sm:$0xf]
      %v765 = vld [vmem:[%s762 + $0x8] sm:$0xf]
      %v766 = vld [vmem:[%s762 + $0xc] sm:$0xf]
      %v767 = vld [vmem:[%s762 + $0x10] sm:$0xf]
      %v768 = vld [vmem:[%s762 + $0x14] sm:$0xf]
      %v769 = vld [vmem:[%s762 + $0x18] sm:$0xf]
      %v770 = vld [vmem:[%s762 + $0x1c] sm:$0xf]
      %v775 = vunpack.c.l.b16 %v758
      %v776 = vunpack.c.l.b16 %v759
      %v777 = vunpack.c.l.b16 %v760
      %v778 = vunpack.c.l.b16 %v761
      %v779 = vpack.c.b16 %v776, %v775
      %v780 = vpack.c.b16 %v778, %v777
      %vm781 = vsmask.f32 4352
      %v783 = vshrl.u32 %v779, 16
      %v785 = vrot.slane %v783, 3
      %v786 = vshll.u32 %v779, 16
      %v788 = vrot.slane %v786, 4
      %v789 = vor.u32 %v785, %v788
      %v791 = vshrl.u32 %v780, 16
      %v793 = vrot.slane %v791, 3
      %v794 = vshll.u32 %v780, 16
      %v796 = vrot.slane %v794, 4
      %v797 = vor.u32 %v793, %v796
      %v798 = vsel %vm781, %v789, %v797
      %v807 = vunpack.c.l.b16 %v763
      %v808 = vunpack.c.l.b16 %v764
      %v809 = vunpack.c.l.b16 %v765
      %v810 = vunpack.c.l.b16 %v766
      %v811 = vunpack.c.l.b16 %v767
      %v812 = vunpack.c.l.b16 %v768
      %v813 = vunpack.c.l.b16 %v769
      %v814 = vunpack.c.l.b16 %v770
      %v815 = vpack.c.b16 %v808, %v807
      %v816 = vpack.c.b16 %v810, %v809
      %v817 = vpack.c.b16 %v812, %v811
      %v818 = vpack.c.b16 %v814, %v813
      %v824 = vsel %vm298, %v798, 0
      %v827 = vsel %vm298, %v797, 0
      %829 = vmatprep.subr.bf16.mxu0 0
      %830 = vmatpush1.bf16.msra.mxu0 0
      %831 = vmatprep.subr.bf16.mxu0 0
      %832 = vmatpush1.bf16.msra.mxu0 0
      %833 = vmatprep.subr.bf16.mxu0 0
      %834 = vmatpush1.bf16.msra.mxu0 0
      %835 = vmatprep.subr.bf16.mxu0 0
      %836 = vmatpush1.bf16.msra.mxu0 0
      %837 = vmatprep.subr.bf16.mxu0 0
      %838 = vmatpush1.bf16.msra.mxu0 %v818
      %839 = vmatprep.subr.bf16.mxu0 0
      %840 = vmatpush1.bf16.msra.mxu0 %v817
      %841 = vmatprep.subr.bf16.mxu0 0
      %842 = vmatpush1.bf16.msra.mxu0 %v816
      %843 = vmatprep.subr.bf16.mxu0 0
      %844 = vmatpush1.bf16.msra.mxu0 %v815
      %845 = vmatprep.subr.bf16.mxu0 0
      %846 = vmatpush2.bf16.msra.mxu0 0
      %847 = vmatprep.subr.bf16.mxu0 0
      %848 = vmatpush2.bf16.msra.mxu0 0
      %849 = vmatprep.subr.bf16.mxu0 0
      %850 = vmatpush2.bf16.msra.mxu0 0
      %851 = vmatprep.subr.bf16.mxu0 0
      %852 = vmatpush2.bf16.msra.mxu0 0
      %853 = vmatprep.subr.bf16.mxu0 0
      %854 = vmatpush2.bf16.msra.mxu0 0
      %855 = vmatprep.subr.bf16.mxu0 0
      %856 = vmatpush2.bf16.msra.mxu0 0
      %857 = vmatprep.subr.bf16.mxu0 0
      %858 = vmatpush2.bf16.msra.mxu0 0
      %859 = vmatprep.subr.bf16.mxu0 0
      %860 = vmatpush2.bf16.msra.mxu0 0
      %861 = vmatprep.mubr.bf16.mxu0 0
      %862 = vmatmul.mubr.bf16.gmra.mxu0 %v824
      %v863 = vpop.f32.mrf.mxu0
      %v864 = vadd.f32 0.0, %v863
      %v865 = vpop.f32.mrf.mxu0
      %v866 = vpop.f32.mrf.mxu0
      %v867 = vadd.f32 0.0, %v866
      %v868 = vpop.f32.mrf.mxu0
      %869 = vmatprep.mubr.bf16.mxu0 0
      %870 = vmatmul.mubr.bf16.gmra.mxu0 %v827
      %v871 = vpop.f32.mrf.mxu0
      %v872 = vadd.f32 0.0, %v871
      %v873 = vpop.f32.mrf.mxu0
      %v874 = vpop.f32.mrf.mxu0
      %v875 = vpop.f32.mrf.mxu0
      %876 = vdwg.mxu0
      %v877 = vadd.f32 %v755, %v864
      %v878 = vadd.f32 %v756, %v867
      %v879 = vadd.f32 %v757, %v872
      %v880 = vld [vmem:[%s219 + $0x8] sm:$0xe]
      %v881 = vld [vmem:[%s219 + $0x10] sm:$0x3]
      %s882 = scalar_lea.vmem %s1, 192
      %v883 = vld [vmem:[%s882] sm:$0xf]
      %v884 = vld [vmem:[%s882 + $0x4] sm:$0xf]
      %v885 = vld [vmem:[%s882 + $0x8] sm:$0xf]
      %v886 = vld [vmem:[%s882 + $0xc] sm:$0xf]
      %v887 = vld [vmem:[%s882 + $0x10] sm:$0xf]
      %v888 = vld [vmem:[%s882 + $0x14] sm:$0xf]
      %v889 = vld [vmem:[%s882 + $0x18] sm:$0xf]
      %v890 = vld [vmem:[%s882 + $0x1c] sm:$0xf]
      %v893 = vunpack.c.l.b16 %v880
      %v894 = vunpack.c.l.b16 %v881
      %v895 = vpack.c.b16 %v777, %v893
      %v896 = vpack.c.b16 %v894, %v894
      %vm897 = vcmask 1046528
      %v898 = vrot.slane %v895, 1
      %v899 = vrot.slane %v896, 1
      %v900 = vsel %vm897, %v898, %v899
      %v909 = vunpack.c.l.b16 %v883
      %v910 = vunpack.c.l.b16 %v884
      %v911 = vunpack.c.l.b16 %v885
      %v912 = vunpack.c.l.b16 %v886
      %v913 = vunpack.c.l.b16 %v887
      %v914 = vunpack.c.l.b16 %v888
      %v915 = vunpack.c.l.b16 %v889
      %v916 = vunpack.c.l.b16 %v890
      %v917 = vpack.c.b16 %v910, %v909
      %v918 = vpack.c.b16 %v912, %v911
      %v919 = vpack.c.b16 %v914, %v913
      %v920 = vpack.c.b16 %v916, %v915
      %v926 = vsel %vm298, %v900, 0
      %v929 = vsel %vm298, %v899, 0
      %931 = vmatprep.subr.bf16.mxu0 0
      %932 = vmatpush1.bf16.msra.mxu0 0
      %933 = vmatprep.subr.bf16.mxu0 0
      %934 = vmatpush1.bf16.msra.mxu0 0
      %935 = vmatprep.subr.bf16.mxu0 0
      %936 = vmatpush1.bf16.msra.mxu0 0
      %937 = vmatprep.subr.bf16.mxu0 0
      %938 = vmatpush1.bf16.msra.mxu0 0
      %939 = vmatprep.subr.bf16.mxu0 0
      %940 = vmatpush1.bf16.msra.mxu0 %v920
      %941 = vmatprep.subr.bf16.mxu0 0
      %942 = vmatpush1.bf16.msra.mxu0 %v919
      %943 = vmatprep.subr.bf16.mxu0 0
      %944 = vmatpush1.bf16.msra.mxu0 %v918
      %945 = vmatprep.subr.bf16.mxu0 0
      %946 = vmatpush1.bf16.msra.mxu0 %v917
      %947 = vmatprep.subr.bf16.mxu0 0
      %948 = vmatpush2.bf16.msra.mxu0 0
      %949 = vmatprep.subr.bf16.mxu0 0
      %950 = vmatpush2.bf16.msra.mxu0 0
      %951 = vmatprep.subr.bf16.mxu0 0
      %952 = vmatpush2.bf16.msra.mxu0 0
      %953 = vmatprep.subr.bf16.mxu0 0
      %954 = vmatpush2.bf16.msra.mxu0 0
      %955 = vmatprep.subr.bf16.mxu0 0
      %956 = vmatpush2.bf16.msra.mxu0 0
      %957 = vmatprep.subr.bf16.mxu0 0
      %958 = vmatpush2.bf16.msra.mxu0 0
      %959 = vmatprep.subr.bf16.mxu0 0
      %960 = vmatpush2.bf16.msra.mxu0 0
      %961 = vmatprep.subr.bf16.mxu0 0
      %962 = vmatpush2.bf16.msra.mxu0 0
      %963 = vmatprep.mubr.bf16.mxu0 0
      %964 = vmatmul.mubr.bf16.gmra.mxu0 %v926
      %v965 = vpop.f32.mrf.mxu0
      %v966 = vadd.f32 0.0, %v965
      %v967 = vpop.f32.mrf.mxu0
      %v968 = vpop.f32.mrf.mxu0
      %v969 = vadd.f32 0.0, %v968
      %v970 = vpop.f32.mrf.mxu0
      %971 = vmatprep.mubr.bf16.mxu0 0
      %972 = vmatmul.mubr.bf16.gmra.mxu0 %v929
      %v973 = vpop.f32.mrf.mxu0
      %v974 = vadd.f32 0.0, %v973
      %v975 = vpop.f32.mrf.mxu0
      %v976 = vpop.f32.mrf.mxu0
      %v977 = vpop.f32.mrf.mxu0
      %978 = vdwg.mxu0
      %v979 = vadd.f32 %v877, %v966
      %v980 = vadd.f32 %v878, %v969
      %v981 = vadd.f32 %v879, %v974
      %v982 = vld [vmem:[%s2] sm:$0x1]
      %v984 = vlaneseq
      %v985 = vshrl.u32 %v984, 7
      %v986 = vsub.s32 0, %v985
      %v987 = vrot.slane %v982, %v986
      %v989 = vadd.f32 %v979, %v987
      %v990 = vadd.f32 %v980, %v987
      %v991 = vadd.f32 %v981, %v987
      %v992 = vmax.f32 %v989, 0.0
      %v993 = vmax.f32 %v990, 0.0
      %v994 = vmax.f32 %v991, 0.0
      %v995 = vld [vmem:[%s3] sm:$0x1]
      %v997 = vlaneseq
      %v998 = vshrl.u32 %v997, 7
      %v999 = vsub.s32 0, %v998
      %v1000 = vrot.slane %v995, %v999
      %v1002 = vmul.f32 %v992, %v1000
      %v1003 = vmul.f32 %v993, %v1000
      %v1004 = vmul.f32 %v994, %v1000
      %v1005 = vld [vmem:[%s4] sm:$0x1]
      %v1007 = vlaneseq
      %v1008 = vshrl.u32 %v1007, 7
      %v1009 = vsub.s32 0, %v1008
      %v1010 = vrot.slane %v1005, %v1009
      %v1012 = vadd.f32 %v1002, %v1010
      %v1013 = vadd.f32 %v1003, %v1010
      %v1014 = vadd.f32 %v1004, %v1010
      %v1015 = vpack.c.bf16 %v1013, %v1012
      %v1016 = vpack.c.bf16 %v1014, %v1014
      %v1019 = vunpack.c.l.b16 %v1015
      %v1020 = vunpack.c.h.b16 %v1015
      %v1021 = vunpack.c.l.b16 %v1016
      %v1022 = vpack.c.b16 %v1019, %v1019
      %v1023 = vpack.c.b16 %v1020, %v1020
      %v1024 = vpack.c.b16 %v1021, %v1021
      %vm1028 = vcmask 519168
      %1029 = vst.msk [vmem:[%s224] sm:$0xf] %vm1028, %v1022
      %1030 = vst.msk [vmem:[%s224 + $0x4] sm:$0xf] %vm1028, %v1023
      %vm1031 = vcmask 516096
      %1032 = vst.msk [vmem:[%s224 + $0x8] sm:$0x1] %vm1031, %v1024
      %p1033 = scmp.lt.s32.totalorder %s16, 1
      %s1034 = scalar_select %p1033, %s16, 1
      %s1035 = smul.addr %s1034, 3
      %s1036 = smul.addr %s1035, 4
      %s1037 = scalar_lea.vmem %s5, %s1036
      // Predicated region
      $region41: #{_lambda_.7} parent=39 // pred_check
        %p1038 = pneg %p144
      $region42: #{_lambda_.7} parent=39 // pred_check_branch
        %1040 = sbr.rel (%p1038) target = $region44
      $region43: #{_lambda_.7} parent=39 // pred_region
        _
      $region44: #{_lambda_.7} parent=39 // pred_fallthru
        _
    $region40: #{_lambda_.7} parent=5 // pred_fallthru
      _
    %p1041 = scmp.le.s32.totalorder 2, %s11
    // Predicated region
    $region45: #{_lambda_.7} parent=5 // pred_check
      %p1042 = pneg %p1041
    $region46: #{_lambda_.7} parent=5 // pred_check_branch
      %1044 = sbr.rel (%p1042) target = $region48
    $region47: #{_lambda_.7} parent=5 // pred_region
      %s1045 = ssub.s32 %s11, 2
      // Predicated region
      $region49: #{_lambda_.7} parent=47 // pred_check
        %p1046 = pneg %p150
      $region50: #{_lambda_.7} parent=47 // pred_check_branch
        %1048 = sbr.rel (%p1046) target = $region52
      $region51: #{_lambda_.7} parent=47 // pred_region
        %p1049 = scmp.lt.s32.totalorder %s17, 1
        %s1050 = scalar_select %p1049, %s17, 1
        %s1051 = smul.addr %s1050, 3
        %s1052 = smul.addr %s1051, 4
        %s1053 = scalar_lea.vmem %s5, %s1052
      $region52: #{_lambda_.7} parent=47 // pred_fallthru
        _
    $region48: #{_lambda_.7} parent=5 // pred_fallthru
      _
  $region6: #{_lambda_.7} parent=0 // loop_footer
    %s15 = sadd.s32 1, %s11
  $region7: #{_lambda_.7} parent=0 // loop_footer_branch
    %10 = sbr.rel target = $region3
  $region8: #{_lambda_.7} parent=0 // loop_exit
    _

// kernel: _lambda_.8
$region0: #{_lambda_.8}
  #allocation0 [shape = 'u32[]', space=smem, size = 0x4, offset = 0x4, fixed_abs, tag = 'smem constant byte address 0x4 - core index']
  #allocation1 [shape = 'u32[144,128]{1,0:T(1,128)}', space=vmem, size = 0x12000, scoped, tag = 'internal scratch']
  #allocation2 [shape = 'f32[1,128]{1,0:T(1,128)}', space=vmem, size = 0x200, scoped, tag = 'scratch operand']
  #allocation3 [shape = 'f32[1,128]{1,0:T(1,128)}', space=vmem, size = 0x200, scoped, tag = 'scratch operand']
  %s0 = inlined_call_operand.vmem [shape: bf16[2,18,64], index: 0, kind: input, shape index: {}]
  %s1 = inlined_call_operand.vmem [shape: bf16[64,64], index: 1, kind: input, shape index: {}]
  %s2 = inlined_call_operand.vmem [shape: f32[1,64], index: 2, kind: input, shape index: {}]
  %s3 = inlined_call_operand.vmem [shape: f32[1,64], index: 3, kind: input, shape index: {}]
  %s4 = inlined_call_operand.vmem [shape: f32[1,64], index: 4, kind: input, shape index: {}]
  %s5 = inlined_call_operand.vmem [shape: bf16[64,128], index: 5, kind: input, shape index: {}]
  %s6 = inlined_call_operand.vmem [shape: f32[1,128], index: 6, kind: input, shape index: {}]
  %s7 = inlined_call_operand.vmem [shape: f32[1,128], index: 7, kind: input, shape index: {}]
  %s8 = inlined_call_operand.vmem [shape: f32[1,128], index: 8, kind: input, shape index: {}]
  %s9 = inlined_call_operand.vmem [shape: f32[2,2,128], index: 9, kind: output, shape index: {}]
  %s10 = sld [smem:[#allocation0]]
  $region77: #{_lambda_.8} parent=0
    _
  %s12 = ssub.s32 1, %s10
  %s13 = scalar_select 0, %s12, %s10
  loop: start=0, step=1, limit=8
  $region2: #{_lambda_.8} parent=0 // loop_pre_header
    _
  $region3: #{_lambda_.8} parent=0 // loop_header
    %s15 = sphi 0, %s19
    %p16 = scmp.ge.s32.totalorder %s15, 8
    %s22 = sphi 0, %s34
    %s23 = sphi 0, %s30
    %s24 = sphi 0, %s22
    %s25 = sphi 0, %s23
    %s26 = sphi 0, %s24
    %s27 = sphi 0, %s25
    %s39 = sphi 0, %s41
    %s42 = sphi 0, %s39
    %s43 = sphi 0, %s42
    %s59 = sphi 0, %s43
    %s63 = sphi 0, %s63
    %s65 = sphi 0, %s63
    %s66 = sphi 0, %s65
    %s80 = sphi 0, %s66
    %s84 = sphi 0, %s84
    %s86 = sphi 0, %s84
    %s87 = sphi 0, %s86
    %s101 = sphi 0, %s87
    %s105 = sphi 0, %s105
    %s107 = sphi 0, %s105
    %s108 = sphi 0, %s107
    %s122 = sphi 0, %s108
    %s126 = sphi 0, %s126
    %s128 = sphi 0, %s126
    %s129 = sphi 0, %s128
    %s143 = sphi 0, %s129
    %s147 = sphi 0, %s147
    %s149 = sphi 0, %s147
    %s150 = sphi 0, %s149
    %s164 = sphi 0, %s150
    %s168 = sphi 0, %s168
    %s170 = sphi 0, %s168
    %s171 = sphi 0, %s170
    %s185 = sphi 0, %s171
    %s189 = sphi 0, %s189
    %s191 = sphi 0, %s189
    %s192 = sphi 0, %s191
    %s206 = sphi 0, %s192
    %s210 = sphi 0, %s210
    %s212 = sphi 0, %s210
    %s213 = sphi 0, %s212
    %s227 = sphi 0, %s213
    %s233 = sphi 0, %s235
    %s236 = sphi 0, %s233
    %s237 = sphi 0, %s236
    %s253 = sphi 0, %s237
  $region4: #{_lambda_.8} parent=0 // loop_header_branch
    %18 = sbr.rel (%p16) target = $region8
  $region5: #{_lambda_.8} parent=0 // loop_body
    %s20 = ssub.s32 %s15, 1
    %s21 = ssub.s32 %s15, 2
    %s28 = sadd.s32 1, %s23
    %p29 = scmp.ge.s32.totalorder %s28, 3
    %s30 = scalar_select %p29, 0, %s28
    %s31 = sadd.s32 1, %s22
    %s32 = scalar_select %p29, %s31, %s22
    %p33 = scmp.ge.s32.totalorder %s32, 2
    %s34 = scalar_select %p33, 0, %s32
    %s35 = ssub.s32 %s22, %s34
    %s36 = ssub.s32 %s23, %s30
    %s37 = sor.u32 %s35, %s36
    %p38 = scmp.eq.s32.totalorder %s37, 0
    %s40 = sadd.s32 %s39, 1
    %s41 = scalar_select %p38, %s39, %s40
    %p44 = pneg %p38
    %p45 = scmp.eq.s32.totalorder %s15, 5
    %p46 = por %p44, %p45
    %p47 = scmp.ne.s32.totalorder %s39, %s42
    %p48 = scmp.eq.s32.totalorder %s15, 0
    %p49 = por %p47, %p48
    %p50 = scmp.ne.s32.totalorder %s39, %s42
    %p51 = scmp.eq.s32.totalorder %s20, 5
    %p52 = por %p50, %p51
    %p53 = scmp.ne.s32.totalorder %s42, %s43
    %p54 = scmp.eq.s32.totalorder %s20, 0
    %p55 = por %p53, %p54
    %p56 = scmp.ne.s32.totalorder %s42, %s43
    %p57 = scmp.eq.s32.totalorder %s21, 5
    %p58 = por %p56, %p57
    %p60 = scmp.ne.s32.totalorder %s43, %s59
    %p61 = scmp.eq.s32.totalorder %s21, 0
    %p62 = por %p60, %p61
    %s64 = sadd.s32 %s63, 1
    %p67 = scmp.eq.s32.totalorder %s15, 5
    %p68 = scmp.ne.s32.totalorder %s63, %s65
    %p69 = scmp.eq.s32.totalorder %s15, 0
    %p70 = por %p68, %p69
    %p71 = scmp.ne.s32.totalorder %s63, %s65
    %p72 = scmp.eq.s32.totalorder %s20, 5
    %p73 = por %p71, %p72
    %p74 = scmp.ne.s32.totalorder %s65, %s66
    %p75 = scmp.eq.s32.totalorder %s20, 0
    %p76 = por %p74, %p75
    %p77 = scmp.ne.s32.totalorder %s65, %s66
    %p78 = scmp.eq.s32.totalorder %s21, 5
    %p79 = por %p77, %p78
    %p81 = scmp.ne.s32.totalorder %s66, %s80
    %p82 = scmp.eq.s32.totalorder %s21, 0
    %p83 = por %p81, %p82
    %s85 = sadd.s32 %s84, 1
    %p88 = scmp.eq.s32.totalorder %s15, 5
    %p89 = scmp.ne.s32.totalorder %s84, %s86
    %p90 = scmp.eq.s32.totalorder %s15, 0
    %p91 = por %p89, %p90
    %p92 = scmp.ne.s32.totalorder %s84, %s86
    %p93 = scmp.eq.s32.totalorder %s20, 5
    %p94 = por %p92, %p93
    %p95 = scmp.ne.s32.totalorder %s86, %s87
    %p96 = scmp.eq.s32.totalorder %s20, 0
    %p97 = por %p95, %p96
    %p98 = scmp.ne.s32.totalorder %s86, %s87
    %p99 = scmp.eq.s32.totalorder %s21, 5
    %p100 = por %p98, %p99
    %p102 = scmp.ne.s32.totalorder %s87, %s101
    %p103 = scmp.eq.s32.totalorder %s21, 0
    %p104 = por %p102, %p103
    %s106 = sadd.s32 %s105, 1
    %p109 = scmp.eq.s32.totalorder %s15, 5
    %p110 = scmp.ne.s32.totalorder %s105, %s107
    %p111 = scmp.eq.s32.totalorder %s15, 0
    %p112 = por %p110, %p111
    %p113 = scmp.ne.s32.totalorder %s105, %s107
    %p114 = scmp.eq.s32.totalorder %s20, 5
    %p115 = por %p113, %p114
    %p116 = scmp.ne.s32.totalorder %s107, %s108
    %p117 = scmp.eq.s32.totalorder %s20, 0
    %p118 = por %p116, %p117
    %p119 = scmp.ne.s32.totalorder %s107, %s108
    %p120 = scmp.eq.s32.totalorder %s21, 5
    %p121 = por %p119, %p120
    %p123 = scmp.ne.s32.totalorder %s108, %s122
    %p124 = scmp.eq.s32.totalorder %s21, 0
    %p125 = por %p123, %p124
    %s127 = sadd.s32 %s126, 1
    %p130 = scmp.eq.s32.totalorder %s15, 5
    %p131 = scmp.ne.s32.totalorder %s126, %s128
    %p132 = scmp.eq.s32.totalorder %s15, 0
    %p133 = por %p131, %p132
    %p134 = scmp.ne.s32.totalorder %s126, %s128
    %p135 = scmp.eq.s32.totalorder %s20, 5
    %p136 = por %p134, %p135
    %p137 = scmp.ne.s32.totalorder %s128, %s129
    %p138 = scmp.eq.s32.totalorder %s20, 0
    %p139 = por %p137, %p138
    %p140 = scmp.ne.s32.totalorder %s128, %s129
    %p141 = scmp.eq.s32.totalorder %s21, 5
    %p142 = por %p140, %p141
    %p144 = scmp.ne.s32.totalorder %s129, %s143
    %p145 = scmp.eq.s32.totalorder %s21, 0
    %p146 = por %p144, %p145
    %s148 = sadd.s32 %s147, 1
    %p151 = scmp.eq.s32.totalorder %s15, 5
    %p152 = scmp.ne.s32.totalorder %s147, %s149
    %p153 = scmp.eq.s32.totalorder %s15, 0
    %p154 = por %p152, %p153
    %p155 = scmp.ne.s32.totalorder %s147, %s149
    %p156 = scmp.eq.s32.totalorder %s20, 5
    %p157 = por %p155, %p156
    %p158 = scmp.ne.s32.totalorder %s149, %s150
    %p159 = scmp.eq.s32.totalorder %s20, 0
    %p160 = por %p158, %p159
    %p161 = scmp.ne.s32.totalorder %s149, %s150
    %p162 = scmp.eq.s32.totalorder %s21, 5
    %p163 = por %p161, %p162
    %p165 = scmp.ne.s32.totalorder %s150, %s164
    %p166 = scmp.eq.s32.totalorder %s21, 0
    %p167 = por %p165, %p166
    %s169 = sadd.s32 %s168, 1
    %p172 = scmp.eq.s32.totalorder %s15, 5
    %p173 = scmp.ne.s32.totalorder %s168, %s170
    %p174 = scmp.eq.s32.totalorder %s15, 0
    %p175 = por %p173, %p174
    %p176 = scmp.ne.s32.totalorder %s168, %s170
    %p177 = scmp.eq.s32.totalorder %s20, 5
    %p178 = por %p176, %p177
    %p179 = scmp.ne.s32.totalorder %s170, %s171
    %p180 = scmp.eq.s32.totalorder %s20, 0
    %p181 = por %p179, %p180
    %p182 = scmp.ne.s32.totalorder %s170, %s171
    %p183 = scmp.eq.s32.totalorder %s21, 5
    %p184 = por %p182, %p183
    %p186 = scmp.ne.s32.totalorder %s171, %s185
    %p187 = scmp.eq.s32.totalorder %s21, 0
    %p188 = por %p186, %p187
    %s190 = sadd.s32 %s189, 1
    %p193 = scmp.eq.s32.totalorder %s15, 5
    %p194 = scmp.ne.s32.totalorder %s189, %s191
    %p195 = scmp.eq.s32.totalorder %s15, 0
    %p196 = por %p194, %p195
    %p197 = scmp.ne.s32.totalorder %s189, %s191
    %p198 = scmp.eq.s32.totalorder %s20, 5
    %p199 = por %p197, %p198
    %p200 = scmp.ne.s32.totalorder %s191, %s192
    %p201 = scmp.eq.s32.totalorder %s20, 0
    %p202 = por %p200, %p201
    %p203 = scmp.ne.s32.totalorder %s191, %s192
    %p204 = scmp.eq.s32.totalorder %s21, 5
    %p205 = por %p203, %p204
    %p207 = scmp.ne.s32.totalorder %s192, %s206
    %p208 = scmp.eq.s32.totalorder %s21, 0
    %p209 = por %p207, %p208
    %s211 = sadd.s32 %s210, 1
    %p214 = scmp.eq.s32.totalorder %s15, 5
    %p215 = scmp.ne.s32.totalorder %s210, %s212
    %p216 = scmp.eq.s32.totalorder %s15, 0
    %p217 = por %p215, %p216
    %p218 = scmp.ne.s32.totalorder %s210, %s212
    %p219 = scmp.eq.s32.totalorder %s20, 5
    %p220 = por %p218, %p219
    %p221 = scmp.ne.s32.totalorder %s212, %s213
    %p222 = scmp.eq.s32.totalorder %s20, 0
    %p223 = por %p221, %p222
    %p224 = scmp.ne.s32.totalorder %s212, %s213
    %p225 = scmp.eq.s32.totalorder %s21, 5
    %p226 = por %p224, %p225
    %p228 = scmp.ne.s32.totalorder %s213, %s227
    %p229 = scmp.eq.s32.totalorder %s21, 0
    %p230 = por %p228, %p229
    %s231 = ssub.s32 %s22, %s34
    %p232 = scmp.eq.s32.totalorder %s231, 0
    %s234 = sadd.s32 %s233, 1
    %s235 = scalar_select %p232, %s233, %s234
    %p238 = pneg %p232
    %p239 = scmp.eq.s32.totalorder %s15, 5
    %p240 = por %p238, %p239
    %p241 = scmp.ne.s32.totalorder %s233, %s236
    %p242 = scmp.eq.s32.totalorder %s15, 0
    %p243 = por %p241, %p242
    %p244 = scmp.ne.s32.totalorder %s233, %s236
    %p245 = scmp.eq.s32.totalorder %s20, 5
    %p246 = por %p244, %p245
    %p247 = scmp.ne.s32.totalorder %s236, %s237
    %p248 = scmp.eq.s32.totalorder %s20, 0
    %p249 = por %p247, %p248
    %p250 = scmp.ne.s32.totalorder %s236, %s237
    %p251 = scmp.eq.s32.totalorder %s21, 5
    %p252 = por %p250, %p251
    %p254 = scmp.ne.s32.totalorder %s237, %s253
    %p255 = scmp.eq.s32.totalorder %s21, 0
    %p256 = por %p254, %p255
    %p257 = scmp.le.s32.totalorder 1, %s15
    %p258 = scmp.lt.s32.totalorder %s15, 7
    %p259 = pnand %p257, %p258
    %p260 = pneg %p259
    // Predicated region
    $region9: #{_lambda_.8} parent=5 // pred_check
      _
    $region10: #{_lambda_.8} parent=5 // pred_check_branch
      %262 = sbr.rel (%p259) target = $region12
    $region11: #{_lambda_.8} parent=5 // pred_region
      %s263 = ssub.s32 %s15, 1
      // Predicated region
      $region13: #{_lambda_.8} parent=11 // pred_check
        %p264 = pneg %p76
      $region14: #{_lambda_.8} parent=11 // pred_check_branch
        %266 = sbr.rel (%p264) target = $region16
      $region15: #{_lambda_.8} parent=11 // pred_region
        _
      $region16: #{_lambda_.8} parent=11 // pred_fallthru
        _
      // Predicated region
      $region17: #{_lambda_.8} parent=11 // pred_check
        %p267 = pneg %p97
      $region18: #{_lambda_.8} parent=11 // pred_check_branch
        %269 = sbr.rel (%p267) target = $region20
      $region19: #{_lambda_.8} parent=11 // pred_region
        _
      $region20: #{_lambda_.8} parent=11 // pred_fallthru
        _
      // Predicated region
      $region21: #{_lambda_.8} parent=11 // pred_check
        %p270 = pneg %p118
      $region22: #{_lambda_.8} parent=11 // pred_check_branch
        %272 = sbr.rel (%p270) target = $region24
      $region23: #{_lambda_.8} parent=11 // pred_region
        _
      $region24: #{_lambda_.8} parent=11 // pred_fallthru
        _
      // Predicated region
      $region25: #{_lambda_.8} parent=11 // pred_check
        %p273 = pneg %p139
      $region26: #{_lambda_.8} parent=11 // pred_check_branch
        %275 = sbr.rel (%p273) target = $region28
      $region27: #{_lambda_.8} parent=11 // pred_region
        _
      $region28: #{_lambda_.8} parent=11 // pred_fallthru
        _
      // Predicated region
      $region29: #{_lambda_.8} parent=11 // pred_check
        %p276 = pneg %p160
      $region30: #{_lambda_.8} parent=11 // pred_check_branch
        %278 = sbr.rel (%p276) target = $region32
      $region31: #{_lambda_.8} parent=11 // pred_region
        _
      $region32: #{_lambda_.8} parent=11 // pred_fallthru
        _
      // Predicated region
      $region33: #{_lambda_.8} parent=11 // pred_check
        %p279 = pneg %p181
      $region34: #{_lambda_.8} parent=11 // pred_check_branch
        %281 = sbr.rel (%p279) target = $region36
      $region35: #{_lambda_.8} parent=11 // pred_region
        _
      $region36: #{_lambda_.8} parent=11 // pred_fallthru
        _
      // Predicated region
      $region37: #{_lambda_.8} parent=11 // pred_check
        %p282 = pneg %p202
      $region38: #{_lambda_.8} parent=11 // pred_check_branch
        %284 = sbr.rel (%p282) target = $region40
      $region39: #{_lambda_.8} parent=11 // pred_region
        _
      $region40: #{_lambda_.8} parent=11 // pred_fallthru
        _
      // Predicated region
      $region41: #{_lambda_.8} parent=11 // pred_check
        %p285 = pneg %p223
      $region42: #{_lambda_.8} parent=11 // pred_check_branch
        %287 = sbr.rel (%p285) target = $region44
      $region43: #{_lambda_.8} parent=11 // pred_region
        _
      $region44: #{_lambda_.8} parent=11 // pred_fallthru
        _
    $region12: #{_lambda_.8} parent=5 // pred_fallthru
      _
    %p288 = scmp.lt.s32.totalorder %s15, 6
    // Predicated region
    $region45: #{_lambda_.8} parent=5 // pred_check
      %p289 = pneg %p288
    $region46: #{_lambda_.8} parent=5 // pred_check_branch
      %291 = sbr.rel (%p289) target = $region48
    $region47: #{_lambda_.8} parent=5 // pred_region
      // Predicated region
      $region49: #{_lambda_.8} parent=47 // pred_check
        %p292 = pneg %p49
      $region50: #{_lambda_.8} parent=47 // pred_check_branch
        %294 = sbr.rel (%p292) target = $region52
      $region51: #{_lambda_.8} parent=47 // pred_region
        %p295 = scmp.lt.s32.totalorder %s22, 1
        %s296 = scalar_select %p295, %s22, 1
        %p297 = scmp.lt.s32.totalorder %s23, 2
        %s298 = scalar_select %p297, %s23, 2
        %s299 = smul.addr %s296, 3
        %s300 = sadd.s32 %s298, %s299
        %s301 = smul.addr %s300, 4
        %s302 = scalar_lea.vmem %s0, %s301
      $region52: #{_lambda_.8} parent=47 // pred_fallthru
        _
    $region48: #{_lambda_.8} parent=5 // pred_fallthru
      _
    %p303 = scmp.le.s32.totalorder 1, %s15
    %p304 = scmp.lt.s32.totalorder %s15, 7
    %p305 = pnand %p303, %p304
    %p306 = pneg %p305
    // Predicated region
    $region53: #{_lambda_.8} parent=5 // pred_check
      _
    $region54: #{_lambda_.8} parent=5 // pred_check_branch
      %308 = sbr.rel (%p305) target = $region56
    $region55: #{_lambda_.8} parent=5 // pred_region
      %s309 = ssub.s32 %s15, 1
      %p310 = scmp.lt.s32.totalorder %s24, 1
      %s311 = scalar_select %p310, %s24, 1
      %p312 = scmp.lt.s32.totalorder %s25, 2
      %s313 = scalar_select %p312, %s25, 2
      %s314 = smul.addr %s311, 3
      %s315 = sadd.s32 %s313, %s314
      %s316 = smul.addr %s315, 4
      %s317 = scalar_lea.vmem %s0, %s316
      %p318 = pneg %p55
      %p319 = pneg %p52
      %p320 = pneg %p76
      %p321 = pneg %p73
      %p322 = pneg %p97
      %p323 = pneg %p94
      %p324 = pneg %p118
      %p325 = pneg %p115
      %p326 = pneg %p139
      %p327 = pneg %p136
      %p328 = pneg %p160
      %p329 = pneg %p157
      %p330 = pneg %p181
      %p331 = pneg %p178
      %p332 = pneg %p202
      %p333 = pneg %p199
      %p334 = pneg %p223
      %p335 = pneg %p220
      %p336 = pneg %p249
      %p337 = pneg %p246
      %p338 = scmp.lt.s32.totalorder %s24, 1
      %s339 = scalar_select %p338, %s24, 1
      %s340 = smul.addr %s339, 2
      %s341 = scalar_lea.vmem %s9, %s340
      %p342 = scmp.lt.s32.totalorder %s24, 1
      %s343 = scalar_select %p342, %s24, 1
      %p344 = scmp.lt.s32.totalorder %s25, 2
      %s345 = scalar_select %p344, %s25, 2
      %s346 = smul.addr %s343, 3
      %s347 = sadd.s32 %s345, %s346
      %s348 = smul.addr %s347, 4
      %s349 = scalar_lea.vmem %s0, %s348
      %p350 = scmp.lt.s32.totalorder %s24, 1
      %s351 = scalar_select %p350, %s24, 1
      %s352 = smul.addr %s351, 2
      %s353 = scalar_lea.vmem %s9, %s352
      %p355 = scmp.eq.s32.totalorder %s25, 0
      // Predicated region
      $region57: #{_lambda_.8} parent=55 // pred_check
        %p356 = pneg %p355
      $region58: #{_lambda_.8} parent=55 // pred_check_branch
        %358 = sbr.rel (%p356) target = $region60
      $region59: #{_lambda_.8} parent=55 // pred_region
        %359 = vst [vmem:[#allocation2] sm:$0x1] 0.0
        %360 = vst [vmem:[#allocation3] sm:$0x1] 0.0
      $region60: #{_lambda_.8} parent=55 // pred_fallthru
        _
      %v361 = vld [vmem:[%s349] sm:$0xf]
      %v362 = vld [vmem:[%s1] sm:$0xf]
      %v363 = vld [vmem:[%s1 + $0x4] sm:$0xf]
      %v364 = vld [vmem:[%s1 + $0x8] sm:$0xf]
      %v365 = vld [vmem:[%s1 + $0xc] sm:$0xf]
      %v366 = vld [vmem:[%s1 + $0x10] sm:$0xf]
      %v367 = vld [vmem:[%s1 + $0x14] sm:$0xf]
      %v368 = vld [vmem:[%s1 + $0x18] sm:$0xf]
      %v369 = vld [vmem:[%s1 + $0x1c] sm:$0xf]
      %v370 = vld [vmem:[%s2] sm:$0x1]
      %v372 = vlaneseq
      %v373 = vshrl.u32 %v372, 7
      %v374 = vsub.s32 0, %v373
      %v375 = vrot.slane %v370, %v374
      %v385 = vunpack.c.l.b16 %v362
      %v386 = vunpack.c.l.b16 %v363
      %v387 = vunpack.c.l.b16 %v364
      %v388 = vunpack.c.l.b16 %v365
      %v389 = vunpack.c.l.b16 %v366
      %v390 = vunpack.c.l.b16 %v367
      %v391 = vunpack.c.l.b16 %v368
      %v392 = vunpack.c.l.b16 %v369
      %v393 = vpack.c.b16 %v386, %v385
      %v394 = vpack.c.b16 %v388, %v387
      %v395 = vpack.c.b16 %v390, %v389
      %v396 = vpack.c.b16 %v392, %v391
      %vm401 = vcmask 523264
      %v403 = vsel %vm401, %v361, 0
      %405 = vmatprep.subr.bf16.mxu0 0
      %406 = vmatpush1.bf16.msra.mxu0 0
      %407 = vmatprep.subr.bf16.mxu0 0
      %408 = vmatpush1.bf16.msra.mxu0 0
      %409 = vmatprep.subr.bf16.mxu0 0
      %410 = vmatpush1.bf16.msra.mxu0 0
      %411 = vmatprep.subr.bf16.mxu0 0
      %412 = vmatpush1.bf16.msra.mxu0 0
      %413 = vmatprep.subr.bf16.mxu0 0
      %414 = vmatpush1.bf16.msra.mxu0 %v396
      %415 = vmatprep.subr.bf16.mxu0 0
      %416 = vmatpush1.bf16.msra.mxu0 %v395
      %417 = vmatprep.subr.bf16.mxu0 0
      %418 = vmatpush1.bf16.msra.mxu0 %v394
      %419 = vmatprep.subr.bf16.mxu0 0
      %420 = vmatpush1.bf16.msra.mxu0 %v393
      %421 = vmatprep.subr.bf16.mxu0 0
      %422 = vmatpush2.bf16.msra.mxu0 0
      %423 = vmatprep.subr.bf16.mxu0 0
      %424 = vmatpush2.bf16.msra.mxu0 0
      %425 = vmatprep.subr.bf16.mxu0 0
      %426 = vmatpush2.bf16.msra.mxu0 0
      %427 = vmatprep.subr.bf16.mxu0 0
      %428 = vmatpush2.bf16.msra.mxu0 0
      %429 = vmatprep.subr.bf16.mxu0 0
      %430 = vmatpush2.bf16.msra.mxu0 0
      %431 = vmatprep.subr.bf16.mxu0 0
      %432 = vmatpush2.bf16.msra.mxu0 0
      %433 = vmatprep.subr.bf16.mxu0 0
      %434 = vmatpush2.bf16.msra.mxu0 0
      %435 = vmatprep.subr.bf16.mxu0 0
      %436 = vmatpush2.bf16.msra.mxu0 0
      %437 = vmatprep.mubr.bf16.mxu0 0
      %438 = vmatmul.mubr.bf16.gmra.mxu0 %v403
      %v439 = vpop.f32.mrf.mxu0
      %v440 = vadd.f32 %v375, %v439
      %v441 = vpop.f32.mrf.mxu0
      %v442 = vpop.f32.mrf.mxu0
      %v443 = vpop.f32.mrf.mxu0
      %444 = vdwg.mxu0
      %v445 = vmax.f32 %v440, 0.0
      %v446 = vld [vmem:[%s3] sm:$0x1]
      %v448 = vlaneseq
      %v449 = vshrl.u32 %v448, 7
      %v450 = vsub.s32 0, %v449
      %v451 = vrot.slane %v446, %v450
      %v453 = vmul.f32 %v445, %v451
      %v454 = vld [vmem:[%s4] sm:$0x1]
      %v456 = vlaneseq
      %v457 = vshrl.u32 %v456, 7
      %v458 = vsub.s32 0, %v457
      %v459 = vrot.slane %v454, %v458
      %v461 = vadd.f32 %v453, %v459
      %v462 = vpack.c.bf16 %v461, %v461
      %v463 = vld [vmem:[%s5] sm:$0xf]
      %v464 = vld [vmem:[%s5 + $0x4] sm:$0xf]
      %v465 = vld [vmem:[%s5 + $0x8] sm:$0xf]
      %v466 = vld [vmem:[%s5 + $0xc] sm:$0xf]
      %v467 = vld [vmem:[%s5 + $0x10] sm:$0xf]
      %v468 = vld [vmem:[%s5 + $0x14] sm:$0xf]
      %v469 = vld [vmem:[%s5 + $0x18] sm:$0xf]
      %v470 = vld [vmem:[%s5 + $0x1c] sm:$0xf]
      %v471 = vld [vmem:[%s6] sm:$0x1]
      %v473 = vlaneseq
      %v474 = vshrl.u32 %v473, 7
      %v475 = vsub.s32 0, %v474
      %v476 = vrot.slane %v471, %v475
      %v486 = vunpack.c.l.b16 %v463
      %v487 = vunpack.c.l.b16 %v464
      %v488 = vunpack.c.l.b16 %v465
      %v489 = vunpack.c.l.b16 %v466
      %v490 = vunpack.c.l.b16 %v467
      %v491 = vunpack.c.l.b16 %v468
      %v492 = vunpack.c.l.b16 %v469
      %v493 = vunpack.c.l.b16 %v470
      %v494 = vpack.c.b16 %v487, %v486
      %v495 = vpack.c.b16 %v489, %v488
      %v496 = vpack.c.b16 %v491, %v490
      %v497 = vpack.c.b16 %v493, %v492
      %v503 = vsel %vm401, %v462, 0
      %505 = vmatprep.subr.bf16.mxu0 0
      %506 = vmatpush1.bf16.msra.mxu0 0
      %507 = vmatprep.subr.bf16.mxu0 0
      %508 = vmatpush1.bf16.msra.mxu0 0
      %509 = vmatprep.subr.bf16.mxu0 0
      %510 = vmatpush1.bf16.msra.mxu0 0
      %511 = vmatprep.subr.bf16.mxu0 0
      %512 = vmatpush1.bf16.msra.mxu0 0
      %513 = vmatprep.subr.bf16.mxu0 0
      %514 = vmatpush1.bf16.msra.mxu0 %v497
      %515 = vmatprep.subr.bf16.mxu0 0
      %516 = vmatpush1.bf16.msra.mxu0 %v496
      %517 = vmatprep.subr.bf16.mxu0 0
      %518 = vmatpush1.bf16.msra.mxu0 %v495
      %519 = vmatprep.subr.bf16.mxu0 0
      %520 = vmatpush1.bf16.msra.mxu0 %v494
      %521 = vmatprep.subr.bf16.mxu0 0
      %522 = vmatpush2.bf16.msra.mxu0 0
      %523 = vmatprep.subr.bf16.mxu0 0
      %524 = vmatpush2.bf16.msra.mxu0 0
      %525 = vmatprep.subr.bf16.mxu0 0
      %526 = vmatpush2.bf16.msra.mxu0 0
      %527 = vmatprep.subr.bf16.mxu0 0
      %528 = vmatpush2.bf16.msra.mxu0 0
      %529 = vmatprep.subr.bf16.mxu0 0
      %530 = vmatpush2.bf16.msra.mxu0 0
      %531 = vmatprep.subr.bf16.mxu0 0
      %532 = vmatpush2.bf16.msra.mxu0 0
      %533 = vmatprep.subr.bf16.mxu0 0
      %534 = vmatpush2.bf16.msra.mxu0 0
      %535 = vmatprep.subr.bf16.mxu0 0
      %536 = vmatpush2.bf16.msra.mxu0 0
      %537 = vmatprep.mubr.bf16.mxu0 0
      %538 = vmatmul.mubr.bf16.gmra.mxu0 %v503
      %v539 = vpop.f32.mrf.mxu0
      %v540 = vadd.f32 %v476, %v539
      %v541 = vpop.f32.mrf.mxu0
      %v542 = vpop.f32.mrf.mxu0
      %v543 = vpop.f32.mrf.mxu0
      %544 = vdwg.mxu0
      %v545 = vmax.f32 %v540, 0.0
      %v546 = vld [vmem:[%s7] sm:$0x1]
      %v548 = vlaneseq
      %v549 = vshrl.u32 %v548, 7
      %v550 = vsub.s32 0, %v549
      %v551 = vrot.slane %v546, %v550
      %v553 = vmul.f32 %v545, %v551
      %v554 = vld [vmem:[%s8] sm:$0x1]
      %v556 = vlaneseq
      %v557 = vshrl.u32 %v556, 7
      %v558 = vsub.s32 0, %v557
      %v559 = vrot.slane %v554, %v558
      %v561 = vadd.f32 %v553, %v559
      %v562 = vlaneseq
      %v563 = vshrl.u32 %v562, 7
      %s564 = smul.u32 %s25, 8
      %v565 = vstv %s564
      %v566 = vadd.s32 %v565, %v563
      %vm567 = vcmp.lt.s32.totalorder %v566, 18
      %v568 = vsel %vm567, 1, 0
      %vm569 = vcmp.eq.s32.totalorder %v568, 1
      %v570 = vsel %vm569, %v561, 0.0
      %v571 = vld [vmem:[#allocation2] sm:$0x1]
      %v572 = vrot.slane %v570, 4
      %v573 = vadd.f32 %v570, %v572
      %v574 = vrot.slane %v573, 2
      %v575 = vadd.f32 %v573, %v574
      %v576 = vrot.slane %v575, 1
      %v577 = vadd.f32 %v575, %v576
      %v578 = vadd.f32 %v571, %v577
      %579 = vst [vmem:[#allocation2] sm:$0x1] %v578
      %v580 = vld [vmem:[#allocation3] sm:$0x1]
      %v581 = vmul.f32 %v570, %v570
      %v582 = vrot.slane %v581, 4
      %v583 = vadd.f32 %v581, %v582
      %v584 = vrot.slane %v583, 2
      %v585 = vadd.f32 %v583, %v584
      %v586 = vrot.slane %v585, 1
      %v587 = vadd.f32 %v585, %v586
      %v588 = vadd.f32 %v580, %v587
      %589 = vst [vmem:[#allocation3] sm:$0x1] %v588
      %p590 = scmp.eq.s32.totalorder %s25, 2
      // Predicated region
      $region61: #{_lambda_.8} parent=55 // pred_check
        %p591 = pneg %p590
      $region62: #{_lambda_.8} parent=55 // pred_check_branch
        %593 = sbr.rel (%p591) target = $region64
      $region63: #{_lambda_.8} parent=55 // pred_region
        %v594 = vld [vmem:[#allocation2] sm:$0x1]
        %v595 = vmul.f32 %v594, 0.055555556
        %v596 = vld [vmem:[#allocation3] sm:$0x1]
        %v597 = vmul.f32 %v595, 18.0
        %v598 = vmul.f32 %v597, %v595
        %v599 = vsub.f32 %v596, %v598
        %v600 = vmul.f32 %v599, 0.05882353
        %v601 = vmax.f32 %v600, 0.0
        %v602 = vrsqrt.pop %v601
        %v603 = vmul.f32 %v601, %v602
        %vm604 = vcmp.eq.f32.partialorder %v601, inf
        %v605 = vsel %vm604, %v601, %v603
        %vm606 = vcmp.eq.f32.partialorder %v601, 0.0
        %v607 = vand.u32 %v601, 2147483648
        %v608 = vsel %vm606, %v607, %v605
        %609 = vst [vmem:[%s353] sm:$0x1] %v595
        %610 = vst [vmem:[%s353 + $0x1] sm:$0x1] %v608
      $region64: #{_lambda_.8} parent=55 // pred_fallthru
        _
      %p611 = scmp.lt.s32.totalorder %s24, 1
      %s612 = scalar_select %p611, %s24, 1
      %s613 = smul.addr %s612, 2
      %s614 = scalar_lea.vmem %s9, %s613
      // Predicated region
      $region65: #{_lambda_.8} parent=55 // pred_check
        %p615 = pneg %p246
      $region66: #{_lambda_.8} parent=55 // pred_check_branch
        %617 = sbr.rel (%p615) target = $region68
      $region67: #{_lambda_.8} parent=55 // pred_region
        _
      $region68: #{_lambda_.8} parent=55 // pred_fallthru
        _
    $region56: #{_lambda_.8} parent=5 // pred_fallthru
      _
    %p618 = scmp.le.s32.totalorder 2, %s15
    // Predicated region
    $region69: #{_lambda_.8} parent=5 // pred_check
      %p619 = pneg %p618
    $region70: #{_lambda_.8} parent=5 // pred_check_branch
      %621 = sbr.rel (%p619) target = $region72
    $region71: #{_lambda_.8} parent=5 // pred_region
      %s622 = ssub.s32 %s15, 2
      // Predicated region
      $region73: #{_lambda_.8} parent=71 // pred_check
        %p623 = pneg %p252
      $region74: #{_lambda_.8} parent=71 // pred_check_branch
        %625 = sbr.rel (%p623) target = $region76
      $region75: #{_lambda_.8} parent=71 // pred_region
        %p626 = scmp.lt.s32.totalorder %s26, 1
        %s627 = scalar_select %p626, %s26, 1
        %s628 = smul.addr %s627, 2
        %s629 = scalar_lea.vmem %s9, %s628
      $region76: #{_lambda_.8} parent=71 // pred_fallthru
        _
    $region72: #{_lambda_.8} parent=5 // pred_fallthru
      _
  $region6: #{_lambda_.8} parent=0 // loop_footer
    %s19 = sadd.s32 1, %s15
  $region7: #{_lambda_.8} parent=0 // loop_footer_branch
    %14 = sbr.rel target = $region3
  $region8: #{_lambda_.8} parent=0 // loop_exit
    _

// kernel: _lambda_.9
$region0: #{_lambda_.9}
  #allocation0 [shape = 'u32[]', space=smem, size = 0x4, offset = 0x4, fixed_abs, tag = 'smem constant byte address 0x4 - core index']
  #allocation1 [shape = 'u32[144,128]{1,0:T(1,128)}', space=vmem, size = 0x12000, scoped, tag = 'internal scratch']
  %s0 = inlined_call_operand.vmem [shape: f32[2,256], index: 0, kind: input, shape index: {}]
  %s1 = inlined_call_operand.vmem [shape: bf16[256,64], index: 1, kind: input, shape index: {}]
  %s2 = inlined_call_operand.vmem [shape: f32[1,64], index: 2, kind: input, shape index: {}]
  %s3 = inlined_call_operand.vmem [shape: f32[1,64], index: 3, kind: input, shape index: {}]
  %s4 = inlined_call_operand.vmem [shape: f32[1,64], index: 4, kind: input, shape index: {}]
  %s5 = inlined_call_operand.vmem [shape: bf16[64,64], index: 5, kind: input, shape index: {}]
  %s6 = inlined_call_operand.vmem [shape: f32[1,64], index: 6, kind: input, shape index: {}]
  %s7 = inlined_call_operand.vmem [shape: f32[1,64], index: 7, kind: input, shape index: {}]
  %s8 = inlined_call_operand.vmem [shape: f32[1,64], index: 8, kind: input, shape index: {}]
  %s9 = inlined_call_operand.vmem [shape: bf16[64,8], index: 9, kind: input, shape index: {}]
  %s10 = inlined_call_operand.vmem [shape: f32[1,8], index: 10, kind: input, shape index: {}]
  %s11 = inlined_call_operand.hbm [shape: f32[2,8], index: 11, kind: output, shape index: {}]
  %s12 = sld [smem:[#allocation0]]
  $region54: #{_lambda_.9} parent=0
    _
  %s14 = ssub.s32 1, %s12
  %s15 = scalar_select 0, %s14, %s12
  $region1: #{_lambda_.9} parent=0
    #allocation2 [shape = 'u8[1024]{0}', space=vmem, size = 0x400, scoped, tag = 'output window, operand 0, single buffered']
    #allocation3 [shape = 's32[1]{0}', space=sflag, size = 0x4, scoped, tag = 'scoped memory for _lambda_.9']
    %16 = vsyncpa [#allocation3], 0
    // Predicated region
    $region2: #{_lambda_.9} parent=1 // pred_check
      _
    $region3: #{_lambda_.9} parent=1 // pred_check_branch
      %18 = sbr.rel (0) target = $region5
    $region4: #{_lambda_.9} parent=1 // pred_region
      _
    $region5: #{_lambda_.9} parent=1 // pred_fallthru
      _
    // Predicated region
    $region6: #{_lambda_.9} parent=1 // pred_check
      _
    $region7: #{_lambda_.9} parent=1 // pred_check_branch
      %20 = sbr.rel (0) target = $region9
    $region8: #{_lambda_.9} parent=1 // pred_region
      _
    $region9: #{_lambda_.9} parent=1 // pred_fallthru
      _
    // Predicated region
    $region10: #{_lambda_.9} parent=1 // pred_check
      _
    $region11: #{_lambda_.9} parent=1 // pred_check_branch
      %22 = sbr.rel (0) target = $region13
    $region12: #{_lambda_.9} parent=1 // pred_region
      _
    $region13: #{_lambda_.9} parent=1 // pred_fallthru
      _
    // Predicated region
    $region14: #{_lambda_.9} parent=1 // pred_check
      _
    $region15: #{_lambda_.9} parent=1 // pred_check_branch
      %24 = sbr.rel (0) target = $region17
    $region16: #{_lambda_.9} parent=1 // pred_region
      _
    $region17: #{_lambda_.9} parent=1 // pred_fallthru
      _
    // Predicated region
    $region18: #{_lambda_.9} parent=1 // pred_check
      _
    $region19: #{_lambda_.9} parent=1 // pred_check_branch
      %26 = sbr.rel (0) target = $region21
    $region20: #{_lambda_.9} parent=1 // pred_region
      _
    $region21: #{_lambda_.9} parent=1 // pred_fallthru
      _
    // Predicated region
    $region22: #{_lambda_.9} parent=1 // pred_check
      _
    $region23: #{_lambda_.9} parent=1 // pred_check_branch
      %28 = sbr.rel (0) target = $region25
    $region24: #{_lambda_.9} parent=1 // pred_region
      _
    $region25: #{_lambda_.9} parent=1 // pred_fallthru
      _
    // Predicated region
    $region26: #{_lambda_.9} parent=1 // pred_check
      _
    $region27: #{_lambda_.9} parent=1 // pred_check_branch
      %30 = sbr.rel (0) target = $region29
    $region28: #{_lambda_.9} parent=1 // pred_region
      _
    $region29: #{_lambda_.9} parent=1 // pred_fallthru
      _
    // Predicated region
    $region30: #{_lambda_.9} parent=1 // pred_check
      _
    $region31: #{_lambda_.9} parent=1 // pred_check_branch
      %32 = sbr.rel (0) target = $region33
    $region32: #{_lambda_.9} parent=1 // pred_region
      _
    $region33: #{_lambda_.9} parent=1 // pred_fallthru
      _
    // Predicated region
    $region34: #{_lambda_.9} parent=1 // pred_check
      _
    $region35: #{_lambda_.9} parent=1 // pred_check_branch
      %34 = sbr.rel (0) target = $region37
    $region36: #{_lambda_.9} parent=1 // pred_region
      _
    $region37: #{_lambda_.9} parent=1 // pred_fallthru
      _
    // Predicated region
    $region38: #{_lambda_.9} parent=1 // pred_check
      _
    $region39: #{_lambda_.9} parent=1 // pred_check_branch
      %36 = sbr.rel (0) target = $region41
    $region40: #{_lambda_.9} parent=1 // pred_region
      _
    $region41: #{_lambda_.9} parent=1 // pred_fallthru
      _
    // Predicated region
    $region42: #{_lambda_.9} parent=1 // pred_check
      _
    $region43: #{_lambda_.9} parent=1 // pred_check_branch
      %38 = sbr.rel (0) target = $region45
    $region44: #{_lambda_.9} parent=1 // pred_region
      _
    $region45: #{_lambda_.9} parent=1 // pred_fallthru
      _
    %v40 = vld [vmem:[%s0] sm:$0xf]
    %v43 = vunpack.c.l.s4 1983009808
    %v44 = vunpack.c.0.s8 %v43
    %v45 = vlaneseq
    %v46 = vshrl.u32 %v45, 7
    %v47 = vsub.s32 %v44, %v46
    %v48 = vrot.slane %v40, %v47
    %v49 = vcombine.high %v48, %v48
    %v52 = vpack.c.bf16 %v48, %v48
    %v53 = vpack.c.bf16 %v49, %v49
    %v54 = vld [vmem:[%s1] sm:$0xf]
    %v55 = vld [vmem:[%s1 + $0x4] sm:$0xf]
    %v56 = vld [vmem:[%s1 + $0x8] sm:$0xf]
    %v57 = vld [vmem:[%s1 + $0xc] sm:$0xf]
    %v58 = vld [vmem:[%s1 + $0x10] sm:$0xf]
    %v59 = vld [vmem:[%s1 + $0x14] sm:$0xf]
    %v60 = vld [vmem:[%s1 + $0x18] sm:$0xf]
    %v61 = vld [vmem:[%s1 + $0x1c] sm:$0xf]
    %v62 = vld [vmem:[%s1 + $0x20] sm:$0xf]
    %v63 = vld [vmem:[%s1 + $0x24] sm:$0xf]
    %v64 = vld [vmem:[%s1 + $0x28] sm:$0xf]
    %v65 = vld [vmem:[%s1 + $0x2c] sm:$0xf]
    %v66 = vld [vmem:[%s1 + $0x30] sm:$0xf]
    %v67 = vld [vmem:[%s1 + $0x34] sm:$0xf]
    %v68 = vld [vmem:[%s1 + $0x38] sm:$0xf]
    %v69 = vld [vmem:[%s1 + $0x3c] sm:$0xf]
    %v70 = vld [vmem:[%s1 + $0x40] sm:$0xf]
    %v71 = vld [vmem:[%s1 + $0x44] sm:$0xf]
    %v72 = vld [vmem:[%s1 + $0x48] sm:$0xf]
    %v73 = vld [vmem:[%s1 + $0x4c] sm:$0xf]
    %v74 = vld [vmem:[%s1 + $0x50] sm:$0xf]
    %v75 = vld [vmem:[%s1 + $0x54] sm:$0xf]
    %v76 = vld [vmem:[%s1 + $0x58] sm:$0xf]
    %v77 = vld [vmem:[%s1 + $0x5c] sm:$0xf]
    %v78 = vld [vmem:[%s1 + $0x60] sm:$0xf]
    %v79 = vld [vmem:[%s1 + $0x64] sm:$0xf]
    %v80 = vld [vmem:[%s1 + $0x68] sm:$0xf]
    %v81 = vld [vmem:[%s1 + $0x6c] sm:$0xf]
    %v82 = vld [vmem:[%s1 + $0x70] sm:$0xf]
    %v83 = vld [vmem:[%s1 + $0x74] sm:$0xf]
    %v84 = vld [vmem:[%s1 + $0x78] sm:$0xf]
    %v85 = vld [vmem:[%s1 + $0x7c] sm:$0xf]
    %v86 = vld [vmem:[%s2] sm:$0x1]
    %v88 = vlaneseq
    %v89 = vshrl.u32 %v88, 7
    %v90 = vsub.s32 0, %v89
    %v91 = vrot.slane %v86, %v90
    %v125 = vunpack.c.l.b16 %v54
    %v126 = vunpack.c.l.b16 %v55
    %v127 = vunpack.c.l.b16 %v56
    %v128 = vunpack.c.l.b16 %v57
    %v129 = vunpack.c.l.b16 %v58
    %v130 = vunpack.c.l.b16 %v59
    %v131 = vunpack.c.l.b16 %v60
    %v132 = vunpack.c.l.b16 %v61
    %v133 = vunpack.c.l.b16 %v62
    %v134 = vunpack.c.l.b16 %v63
    %v135 = vunpack.c.l.b16 %v64
    %v136 = vunpack.c.l.b16 %v65
    %v137 = vunpack.c.l.b16 %v66
    %v138 = vunpack.c.l.b16 %v67
    %v139 = vunpack.c.l.b16 %v68
    %v140 = vunpack.c.l.b16 %v69
    %v141 = vunpack.c.l.b16 %v70
    %v142 = vunpack.c.l.b16 %v71
    %v143 = vunpack.c.l.b16 %v72
    %v144 = vunpack.c.l.b16 %v73
    %v145 = vunpack.c.l.b16 %v74
    %v146 = vunpack.c.l.b16 %v75
    %v147 = vunpack.c.l.b16 %v76
    %v148 = vunpack.c.l.b16 %v77
    %v149 = vunpack.c.l.b16 %v78
    %v150 = vunpack.c.l.b16 %v79
    %v151 = vunpack.c.l.b16 %v80
    %v152 = vunpack.c.l.b16 %v81
    %v153 = vunpack.c.l.b16 %v82
    %v154 = vunpack.c.l.b16 %v83
    %v155 = vunpack.c.l.b16 %v84
    %v156 = vunpack.c.l.b16 %v85
    %v157 = vpack.c.b16 %v126, %v125
    %v158 = vpack.c.b16 %v128, %v127
    %v159 = vpack.c.b16 %v130, %v129
    %v160 = vpack.c.b16 %v132, %v131
    %v161 = vpack.c.b16 %v134, %v133
    %v162 = vpack.c.b16 %v136, %v135
    %v163 = vpack.c.b16 %v138, %v137
    %v164 = vpack.c.b16 %v140, %v139
    %v165 = vpack.c.b16 %v142, %v141
    %v166 = vpack.c.b16 %v144, %v143
    %v167 = vpack.c.b16 %v146, %v145
    %v168 = vpack.c.b16 %v148, %v147
    %v169 = vpack.c.b16 %v150, %v149
    %v170 = vpack.c.b16 %v152, %v151
    %v171 = vpack.c.b16 %v154, %v153
    %v172 = vpack.c.b16 %v156, %v155
    %189 = vmatprep.subr.bf16.mxu0 0
    %190 = vmatpush1.bf16.msra.mxu0 %v164
    %191 = vmatprep.subr.bf16.mxu0 0
    %192 = vmatpush1.bf16.msra.mxu0 %v163
    %193 = vmatprep.subr.bf16.mxu0 0
    %194 = vmatpush1.bf16.msra.mxu0 %v162
    %195 = vmatprep.subr.bf16.mxu0 0
    %196 = vmatpush1.bf16.msra.mxu0 %v161
    %197 = vmatprep.subr.bf16.mxu0 0
    %198 = vmatpush1.bf16.msra.mxu0 %v160
    %199 = vmatprep.subr.bf16.mxu0 0
    %200 = vmatpush1.bf16.msra.mxu0 %v159
    %201 = vmatprep.subr.bf16.mxu0 0
    %202 = vmatpush1.bf16.msra.mxu0 %v158
    %203 = vmatprep.subr.bf16.mxu0 0
    %204 = vmatpush1.bf16.msra.mxu0 %v157
    %205 = vmatprep.subr.bf16.mxu0 0
    %206 = vmatpush2.bf16.msra.mxu0 %v172
    %207 = vmatprep.subr.bf16.mxu0 0
    %208 = vmatpush2.bf16.msra.mxu0 %v171
    %209 = vmatprep.subr.bf16.mxu0 0
    %210 = vmatpush2.bf16.msra.mxu0 %v170
    %211 = vmatprep.subr.bf16.mxu0 0
    %212 = vmatpush2.bf16.msra.mxu0 %v169
    %213 = vmatprep.subr.bf16.mxu0 0
    %214 = vmatpush2.bf16.msra.mxu0 %v168
    %215 = vmatprep.subr.bf16.mxu0 0
    %216 = vmatpush2.bf16.msra.mxu0 %v167
    %217 = vmatprep.subr.bf16.mxu0 0
    %218 = vmatpush2.bf16.msra.mxu0 %v166
    %219 = vmatprep.subr.bf16.mxu0 0
    %220 = vmatpush2.bf16.msra.mxu0 %v165
    %221 = vmatprep.mubr.bf16.mxu0 %v53
    %222 = vmatmul.mubr.bf16.gmra.mxu0 %v52
    %v223 = vpop.f32.mrf.mxu0
    %v224 = vadd.f32 %v91, %v223
    %v225 = vpop.f32.mrf.mxu0
    %v226 = vpop.f32.mrf.mxu0
    %v227 = vpop.f32.mrf.mxu0
    %228 = vdwg.mxu0
    %v229 = vmax.f32 %v224, 0.0
    %v230 = vld [vmem:[%s3] sm:$0x1]
    %v232 = vlaneseq
    %v233 = vshrl.u32 %v232, 7
    %v234 = vsub.s32 0, %v233
    %v235 = vrot.slane %v230, %v234
    %v237 = vmul.f32 %v229, %v235
    %v238 = vld [vmem:[%s4] sm:$0x1]
    %v240 = vlaneseq
    %v241 = vshrl.u32 %v240, 7
    %v242 = vsub.s32 0, %v241
    %v243 = vrot.slane %v238, %v242
    %v245 = vadd.f32 %v237, %v243
    %v246 = vpack.c.bf16 %v245, %v245
    %v247 = vld [vmem:[%s5] sm:$0xf]
    %v248 = vld [vmem:[%s5 + $0x4] sm:$0xf]
    %v249 = vld [vmem:[%s5 + $0x8] sm:$0xf]
    %v250 = vld [vmem:[%s5 + $0xc] sm:$0xf]
    %v251 = vld [vmem:[%s5 + $0x10] sm:$0xf]
    %v252 = vld [vmem:[%s5 + $0x14] sm:$0xf]
    %v253 = vld [vmem:[%s5 + $0x18] sm:$0xf]
    %v254 = vld [vmem:[%s5 + $0x1c] sm:$0xf]
    %v255 = vld [vmem:[%s6] sm:$0x1]
    %v257 = vlaneseq
    %v258 = vshrl.u32 %v257, 7
    %v259 = vsub.s32 0, %v258
    %v260 = vrot.slane %v255, %v259
    %v270 = vunpack.c.l.b16 %v247
    %v271 = vunpack.c.l.b16 %v248
    %v272 = vunpack.c.l.b16 %v249
    %v273 = vunpack.c.l.b16 %v250
    %v274 = vunpack.c.l.b16 %v251
    %v275 = vunpack.c.l.b16 %v252
    %v276 = vunpack.c.l.b16 %v253
    %v277 = vunpack.c.l.b16 %v254
    %v278 = vpack.c.b16 %v271, %v270
    %v279 = vpack.c.b16 %v273, %v272
    %v280 = vpack.c.b16 %v275, %v274
    %v281 = vpack.c.b16 %v277, %v276
    %vm286 = vcmask 523264
    %v288 = vsel %vm286, %v246, 0
    %290 = vmatprep.subr.bf16.mxu0 0
    %291 = vmatpush1.bf16.msra.mxu0 0
    %292 = vmatprep.subr.bf16.mxu0 0
    %293 = vmatpush1.bf16.msra.mxu0 0
    %294 = vmatprep.subr.bf16.mxu0 0
    %295 = vmatpush1.bf16.msra.mxu0 0
    %296 = vmatprep.subr.bf16.mxu0 0
    %297 = vmatpush1.bf16.msra.mxu0 0
    %298 = vmatprep.subr.bf16.mxu0 0
    %299 = vmatpush1.bf16.msra.mxu0 %v281
    %300 = vmatprep.subr.bf16.mxu0 0
    %301 = vmatpush1.bf16.msra.mxu0 %v280
    %302 = vmatprep.subr.bf16.mxu0 0
    %303 = vmatpush1.bf16.msra.mxu0 %v279
    %304 = vmatprep.subr.bf16.mxu0 0
    %305 = vmatpush1.bf16.msra.mxu0 %v278
    %306 = vmatprep.subr.bf16.mxu0 0
    %307 = vmatpush2.bf16.msra.mxu0 0
    %308 = vmatprep.subr.bf16.mxu0 0
    %309 = vmatpush2.bf16.msra.mxu0 0
    %310 = vmatprep.subr.bf16.mxu0 0
    %311 = vmatpush2.bf16.msra.mxu0 0
    %312 = vmatprep.subr.bf16.mxu0 0
    %313 = vmatpush2.bf16.msra.mxu0 0
    %314 = vmatprep.subr.bf16.mxu0 0
    %315 = vmatpush2.bf16.msra.mxu0 0
    %316 = vmatprep.subr.bf16.mxu0 0
    %317 = vmatpush2.bf16.msra.mxu0 0
    %318 = vmatprep.subr.bf16.mxu0 0
    %319 = vmatpush2.bf16.msra.mxu0 0
    %320 = vmatprep.subr.bf16.mxu0 0
    %321 = vmatpush2.bf16.msra.mxu0 0
    %322 = vmatprep.mubr.bf16.mxu0 0
    %323 = vmatmul.mubr.bf16.gmra.mxu0 %v288
    %v324 = vpop.f32.mrf.mxu0
    %v325 = vadd.f32 %v260, %v324
    %v326 = vpop.f32.mrf.mxu0
    %v327 = vpop.f32.mrf.mxu0
    %v328 = vpop.f32.mrf.mxu0
    %329 = vdwg.mxu0
    %v330 = vmax.f32 %v325, 0.0
    %v331 = vld [vmem:[%s7] sm:$0x1]
    %v333 = vlaneseq
    %v334 = vshrl.u32 %v333, 7
    %v335 = vsub.s32 0, %v334
    %v336 = vrot.slane %v331, %v335
    %v338 = vmul.f32 %v330, %v336
    %v339 = vld [vmem:[%s8] sm:$0x1]
    %v341 = vlaneseq
    %v342 = vshrl.u32 %v341, 7
    %v343 = vsub.s32 0, %v342
    %v344 = vrot.slane %v339, %v343
    %v346 = vadd.f32 %v338, %v344
    %v347 = vpack.c.bf16 %v346, %v346
    %v348 = vld [vmem:[%s9] sm:$0xf]
    %v349 = vld [vmem:[%s9 + $0x4] sm:$0xf]
    %v350 = vld [vmem:[%s9 + $0x8] sm:$0xf]
    %v351 = vld [vmem:[%s9 + $0xc] sm:$0xf]
    %v352 = vld [vmem:[%s9 + $0x10] sm:$0xf]
    %v353 = vld [vmem:[%s9 + $0x14] sm:$0xf]
    %v354 = vld [vmem:[%s9 + $0x18] sm:$0xf]
    %v355 = vld [vmem:[%s9 + $0x1c] sm:$0xf]
    %v356 = vld [vmem:[%s10] sm:$0x1]
    %v358 = vlaneseq
    %v359 = vshrl.u32 %v358, 7
    %v360 = vsub.s32 0, %v359
    %v361 = vrot.slane %v356, %v360
    %v371 = vunpack.c.l.b16 %v348
    %v372 = vunpack.c.l.b16 %v349
    %v373 = vunpack.c.l.b16 %v350
    %v374 = vunpack.c.l.b16 %v351
    %v375 = vunpack.c.l.b16 %v352
    %v376 = vunpack.c.l.b16 %v353
    %v377 = vunpack.c.l.b16 %v354
    %v378 = vunpack.c.l.b16 %v355
    %v379 = vpack.c.b16 %v372, %v371
    %v380 = vpack.c.b16 %v374, %v373
    %v381 = vpack.c.b16 %v376, %v375
    %v382 = vpack.c.b16 %v378, %v377
    %v388 = vsel %vm286, %v347, 0
    %390 = vmatprep.subr.bf16.mxu0 0
    %391 = vmatpush1.bf16.msra.mxu0 0
    %392 = vmatprep.subr.bf16.mxu0 0
    %393 = vmatpush1.bf16.msra.mxu0 0
    %394 = vmatprep.subr.bf16.mxu0 0
    %395 = vmatpush1.bf16.msra.mxu0 0
    %396 = vmatprep.subr.bf16.mxu0 0
    %397 = vmatpush1.bf16.msra.mxu0 0
    %398 = vmatprep.subr.bf16.mxu0 0
    %399 = vmatpush1.bf16.msra.mxu0 %v382
    %400 = vmatprep.subr.bf16.mxu0 0
    %401 = vmatpush1.bf16.msra.mxu0 %v381
    %402 = vmatprep.subr.bf16.mxu0 0
    %403 = vmatpush1.bf16.msra.mxu0 %v380
    %404 = vmatprep.subr.bf16.mxu0 0
    %405 = vmatpush1.bf16.msra.mxu0 %v379
    %406 = vmatprep.subr.bf16.mxu0 0
    %407 = vmatpush2.bf16.msra.mxu0 0
    %408 = vmatprep.subr.bf16.mxu0 0
    %409 = vmatpush2.bf16.msra.mxu0 0
    %410 = vmatprep.subr.bf16.mxu0 0
    %411 = vmatpush2.bf16.msra.mxu0 0
    %412 = vmatprep.subr.bf16.mxu0 0
    %413 = vmatpush2.bf16.msra.mxu0 0
    %414 = vmatprep.subr.bf16.mxu0 0
    %415 = vmatpush2.bf16.msra.mxu0 0
    %416 = vmatprep.subr.bf16.mxu0 0
    %417 = vmatpush2.bf16.msra.mxu0 0
    %418 = vmatprep.subr.bf16.mxu0 0
    %419 = vmatpush2.bf16.msra.mxu0 0
    %420 = vmatprep.subr.bf16.mxu0 0
    %421 = vmatpush2.bf16.msra.mxu0 0
    %422 = vmatprep.mubr.bf16.mxu0 0
    %423 = vmatmul.mubr.bf16.gmra.mxu0 %v388
    %v424 = vpop.f32.mrf.mxu0
    %v425 = vadd.f32 %v361, %v424
    %v426 = vpop.f32.mrf.mxu0
    %v427 = vpop.f32.mrf.mxu0
    %v428 = vpop.f32.mrf.mxu0
    %429 = vdwg.mxu0
    %vm430 = vcmask 58368
    %431 = vst.msk [vmem:[#allocation2] sm:$0x3] %vm430, %v425
    // Predicated region
    $region46: #{_lambda_.9} parent=1 // pred_check
      _
    $region47: #{_lambda_.9} parent=1 // pred_check_branch
      %433 = sbr.rel (0) target = $region49
    $region48: #{_lambda_.9} parent=1 // pred_region
      %s435 = ssub.s32 32, 32
      %436 = vsyncadd [#allocation3], %s435
      %s438 = sshll.u32 [#allocation2], 4
      %s439 = int_to_ptr.vmem [resolvable:$true] %s438
      %441 = dma.vmem_to_hbm [thread:$0]  %s439, 32, %s11, [#allocation3]
    $region49: #{_lambda_.9} parent=1 // pred_fallthru
      _
    // Predicated region
    $region50: #{_lambda_.9} parent=1 // pred_check
      _
    $region51: #{_lambda_.9} parent=1 // pred_check_branch
      %443 = sbr.rel (0) target = $region53
    $region52: #{_lambda_.9} parent=1 // pred_region
      %444 = dma.done [#allocation3], 32
    $region53: #{_lambda_.9} parent=1 // pred_fallthru
      _
    %445 = vsyncpa [#allocation3], 1

</llo_original>
